<compile_context>
chip_gen: v7x
topology: tpu7x:2x2x1
jax: 0.10.0
libtpu: 0.0.40
codegen_flags: <defaults>
</compile_context>

<pallas_src>
import functools
import math

import numpy as np

import jax
import jax.numpy as jnp
from jax.experimental import pallas as pl
from jax.experimental.pallas import tpu as pltpu


# ----------------------------------------------------------------------------
# Fused forward kernel (per batch tile of `tbi` images, everything VMEM-resident)
# ----------------------------------------------------------------------------
def lenet_kernel(x_ref, t1_ref, b1_ref, t2_ref, b2_ref,
                 f1w_ref, f1b_ref, f2w_ref, f2b_ref, f3w_ref, f3b_ref,
                 o_ref, *, tbi):
    f32 = jnp.float32
    bf16 = jnp.bfloat16

    b1 = b1_ref[...]          # (1, 72)  f32   conv1 bias, lanes = (c_out, col)
    b2 = b2_ref[...]          # (1, 64)  f32   conv2 bias, lanes = (c_out, col)
    f1b = f1b_ref[...]        # (1, 120) f32
    f2b = f2b_ref[...]        # (1, 84)  f32
    f3b = f3b_ref[...]        # (1, 10)  f32

    for bi in range(tbi):
        img = x_ref[bi]       # (4, 7, 28) bf16 : img[rho, q, c] = x[4*q + rho, c]

        # --- conv1 (5x5) + bias + 2x2 max-pool + ReLU --------------------------
        # Pooled row i = 2*q + rp.  Input rows needed for window member u and
        # kernel row di are 4*q + (2*rp + u + di) for all q at once -> one static
        # slice of a row-parity plane.  Column taps dj and the W-direction pooling
        # are folded into t1 (output lanes ordered (v, c_out, j)).
        z1 = []
        for rp in range(2):                                   # parity of pooled row
            acc = [jnp.zeros((6, 144), f32), jnp.zeros((6, 144), f32)]
            for u in range(2):                                # pool-window row member
                for di in range(5):                           # conv kernel row
                    s = 2 * rp + u + di
                    lhs = img[s % 4, s // 4:s // 4 + 6, :]    # (6, 28)
                    acc[u] = acc[u] + jnp.dot(lhs, t1_ref[di],
                                              preferred_element_type=f32)
            m = jnp.maximum(acc[0], acc[1])                   # pool over rows
            m = jnp.maximum(m[:, :72], m[:, 72:])             # pool over cols (v halves)
            z1.append(jnp.maximum(m + b1, 0.0).astype(bf16))  # (6, 72) lanes=(c_in, col)

        # --- conv2 (5x5, 6->16) + bias + 2x2 max-pool + ReLU -------------------
        # (Dropout2d before the pool: identity in eval mode.)
        acc2 = [jnp.zeros((4, 128), f32), jnp.zeros((4, 128), f32)]
        for u in range(2):
            for di in range(5):
                t = u + di
                lhs = z1[t % 2][t // 2:t // 2 + 4, :]         # (4, 72)
                acc2[u] = acc2[u] + jnp.dot(lhs, t2_ref[di],
                                            preferred_element_type=f32)
        m2 = jnp.maximum(acc2[0], acc2[1])
        m2 = jnp.maximum(m2[:, :64], m2[:, 64:])
        z2 = jnp.maximum(m2 + b2, 0.0).astype(bf16)           # (4, 64) lanes=(c_out, w)

        # --- fc1 + ReLU (PyTorch NCHW flatten folded into 4 per-row matmuls) ---
        h = jnp.zeros((1, 120), f32)
        for hh in range(4):
            h = h + jnp.dot(z2[hh:hh + 1, :], f1w_ref[hh],
                            preferred_element_type=f32)
        h = jnp.maximum(h + f1b, 0.0).astype(bf16)

        # --- fc2 + ReLU ---------------------------------------------------------
        h2 = jnp.dot(h, f2w_ref[...], preferred_element_type=f32)
        h2 = jnp.maximum(h2 + f2b, 0.0).astype(bf16)
        # TODO(synk): F.dropout would apply here in training mode (identity in eval).

        # --- fc3 + log_softmax --------------------------------------------------
        logits = jnp.dot(h2, f3w_ref[...], preferred_element_type=f32) + f3b  # (1, 10)
        mx = jnp.max(logits, axis=-1, keepdims=True)
        sh = logits - mx
        lse = jnp.log(jnp.sum(jnp.exp(sh), axis=-1, keepdims=True))
        o_ref[bi] = sh - lse


# ----------------------------------------------------------------------------
# One-time weight preparation (banded matrices, permutations, bf16) -- not per call
# ----------------------------------------------------------------------------
def prepare_params(params):
    w1 = np.asarray(params["conv1_w"], np.float32)    # (6, 1, 5, 5)
    b1 = np.asarray(params["conv1_b"], np.float32)
    w2 = np.asarray(params["conv2_w"], np.float32)    # (16, 6, 5, 5)
    b2 = np.asarray(params["conv2_b"], np.float32)
    f1 = np.asarray(params["fc1_w"], np.float32)      # (120, 256)
    f2 = np.asarray(params["fc2_w"], np.float32)      # (84, 120)
    f3 = np.asarray(params["fc3_w"], np.float32)      # (10, 84)

    # conv1 banded matrices: T1[di, c, v*72 + co*12 + j] = w1[co, 0, di, c - (2j + v)]
    t1 = np.zeros((5, 28, 144), np.float32)
    for di in range(5):
        for v in range(2):
            for co in range(6):
                for j in range(12):
                    col = v * 72 + co * 12 + j
                    for dj in range(5):
                        t1[di, 2 * j + v + dj, col] = w1[co, 0, di, dj]
    b1v = np.repeat(b1, 12)[None, :]                  # (1, 72), lanes = (co, j)

    # conv2 banded matrices: T2[di, ci*12 + j, v*64 + co*4 + w] = w2[co, ci, di, j - (2w + v)]
    t2 = np.zeros((5, 72, 128), np.float32)
    for di in range(5):
        for ci in range(6):
            for v in range(2):
                for co in range(16):
                    for w in range(4):
                        col = v * 64 + co * 4 + w
                        for dj in range(5):
                            t2[di, ci * 12 + (2 * w + v + dj), col] = w2[co, ci, di, dj]
    b2v = np.repeat(b2, 4)[None, :]                   # (1, 64), lanes = (co, w)

    # fc1 rows regrouped per conv2 output row h so the NCHW flatten (c, h, w order)
    # is consumed without any in-kernel reshape: F1[h, co*4 + w, n] = fc1_w[n, co*16 + h*4 + w]
    f1r = np.transpose(f1.reshape(120, 16, 4, 4), (2, 1, 3, 0)).reshape(4, 64, 120)

    bf = jnp.bfloat16
    return {
        "t1": jnp.asarray(t1, bf), "b1v": jnp.asarray(b1v, jnp.float32),
        "t2": jnp.asarray(t2, bf), "b2v": jnp.asarray(b2v, jnp.float32),
        "f1w": jnp.asarray(f1r, bf),
        "f1b": jnp.asarray(np.asarray(params["fc1_b"], np.float32)[None, :]),
        "f2w": jnp.asarray(f2.T, bf),
        "f2b": jnp.asarray(np.asarray(params["fc2_b"], np.float32)[None, :]),
        "f3w": jnp.asarray(f3.T, bf),
        "f3b": jnp.asarray(np.asarray(params["fc3_b"], np.float32)[None, :]),
    }


# ----------------------------------------------------------------------------
# Forward pass wrapper: one pallas_call for the whole network
# ----------------------------------------------------------------------------
@jax.jit
def net_forward(x_nchw, prep):
    """(B, 1, 28, 28) -> (B, 10) log-probabilities."""
    B = x_nchw.shape[0]
    # Tiny XLA glue on the raw input only (no expansion): drop the channel dim,
    # split rows by parity mod 4 (so every conv row access is a static slice)
    # and cast to bf16 (halves the only activation HBM read).
    x = x_nchw.reshape(B, 28, 28).astype(jnp.float32)
    x = x.reshape(B, 7, 4, 28).transpose(0, 2, 1, 3).astype(jnp.bfloat16)  # (B, 4, 7, 28)

    # 8 images/step when that divides B (amortizes ~0.35us/step), else 1 image/step.
    # Keeps the "parallel" grid >= 2 steps for any B >= 2 (v7x dual TensorCore) and
    # never pads runtime-sized tensors; only two tile variants -> few recompiles.
    tbi = 8 if (B % 8 == 0 and B >= 16) else 1
    grid = (B // tbi,)

    out = pl.pallas_call(
        functools.partial(lenet_kernel, tbi=tbi),
        out_shape=jax.ShapeDtypeStruct((B, 1, 10), jnp.float32),
        grid=grid,
        in_specs=[
            pl.BlockSpec((tbi, 4, 7, 28), lambda i: (i, 0, 0, 0)),   # image tile
            pl.BlockSpec((5, 28, 144), lambda i: (0, 0, 0)),         # conv1 banded W (resident)
            pl.BlockSpec((1, 72), lambda i: (0, 0)),
            pl.BlockSpec((5, 72, 128), lambda i: (0, 0, 0)),         # conv2 banded W (resident)
            pl.BlockSpec((1, 64), lambda i: (0, 0)),
            pl.BlockSpec((4, 64, 120), lambda i: (0, 0, 0)),         # fc1 (per-row groups)
            pl.BlockSpec((1, 120), lambda i: (0, 0)),
            pl.BlockSpec((120, 84), lambda i: (0, 0)),
            pl.BlockSpec((1, 84), lambda i: (0, 0)),
            pl.BlockSpec((84, 10), lambda i: (0, 0)),
            pl.BlockSpec((1, 10), lambda i: (0, 0)),
        ],
        out_specs=pl.BlockSpec((tbi, 1, 10), lambda i: (i, 0, 0)),
        compiler_params=pltpu.CompilerParams(
            dimension_semantics=("parallel",),
            vmem_limit_bytes=32 * 1024 * 1024),
    )(x, prep["t1"], prep["b1v"], prep["t2"], prep["b2v"],
      prep["f1w"], prep["f1b"], prep["f2w"], prep["f2b"],
      prep["f3w"], prep["f3b"])
    return out.reshape(B, 10)


# ----------------------------------------------------------------------------
# Pure-JAX (XLA) reference of the PyTorch module, eval mode
# ----------------------------------------------------------------------------
def _bf16_round(a):
    return jnp.asarray(a, jnp.bfloat16).astype(jnp.float32)


def _maxpool2(y):
    b, c, h, w = y.shape
    return y.reshape(b, c, h // 2, 2, w // 2, 2).max(axis=(3, 5))


def reference_forward(x_nchw, params):
    dn = ("NCHW", "OIHW", "NCHW")
    x = _bf16_round(x_nchw.astype(jnp.float32))
    y = jax.lax.conv_general_dilated(x, _bf16_round(params["conv1_w"]), (1, 1), "VALID",
                                     dimension_numbers=dn)
    y = y + params["conv1_b"][None, :, None, None]
    y = jax.nn.relu(_maxpool2(y))
    y = jax.lax.conv_general_dilated(y, _bf16_round(params["conv2_w"]), (1, 1), "VALID",
                                     dimension_numbers=dn)
    y = y + params["conv2_b"][None, :, None, None]
    y = jax.nn.relu(_maxpool2(y))
    y = y.reshape(y.shape[0], 16 * 4 * 4)
    y = jax.nn.relu(y @ _bf16_round(params["fc1_w"]).T + params["fc1_b"])
    y = jax.nn.relu(y @ _bf16_round(params["fc2_w"]).T + params["fc2_b"])
    y = y @ _bf16_round(params["fc3_w"]).T + params["fc3_b"]
    return jax.nn.log_softmax(y, axis=-1)


def init_params(key):
    """PyTorch-default-style U(-1/sqrt(fan_in), 1/sqrt(fan_in)) init."""
    ks = jax.random.split(key, 10)

    def u(k, shape, fan_in):
        bound = 1.0 / math.sqrt(fan_in)
        return jax.random.uniform(k, shape, jnp.float32, -bound, bound)

    return {
        "conv1_w": u(ks[0], (6, 1, 5, 5), 25),
        "conv1_b": u(ks[1], (6,), 25),
        "conv2_w": u(ks[2], (16, 6, 5, 5), 150),
        "conv2_b": u(ks[3], (16,), 150),
        "fc1_w": u(ks[4], (120, 256), 256),
        "fc1_b": u(ks[5], (120,), 256),
        "fc2_w": u(ks[6], (84, 120), 120),
        "fc2_b": u(ks[7], (84,), 120),
        "fc3_w": u(ks[8], (10, 84), 84),
        "fc3_b": u(ks[9], (10,), 84),
    }


if __name__ == "__main__":
    root = jax.random.PRNGKey(0)
    k_x, k_p = jax.random.split(root)
    # 28x28 input is required by the module (16*4*4 flatten after two conv+pool stages).
    x = jax.random.normal(k_x, (2, 1, 28, 28), dtype=jnp.float32)
    params = init_params(k_p)
    prep = prepare_params(params)          # one-time weight repack (not per forward)

    out = net_forward(x, prep)
    out = jax.block_until_ready(out)

    assert out.shape == (2, 10)
    assert bool(jnp.all(jnp.isfinite(out)))
    # rows of log_softmax should exponentiate-sum to ~1
    assert bool(jnp.allclose(jnp.sum(jnp.exp(out), axis=1), 1.0, atol=1e-4))

    # cross-check against a pure-JAX reference of the PyTorch module
    ref = reference_forward(x, params)
    max_err = float(jnp.max(jnp.abs(out - ref)))
    assert max_err < 5e-2, f"mismatch vs pure-JAX reference: {max_err}"

    print("KERNEL_OK")
</pallas_src>

<mosaic_0001>
module attributes {stable_mosaic.version = 11 : i64} {
  func.func @lenet_kernel(%arg0: i32, %arg1: memref<1x4x7x28xbf16, #tpu.memory_space<vmem>>, %arg2: memref<5x28x144xbf16, #tpu.memory_space<vmem>>, %arg3: memref<1x72xf32, #tpu.memory_space<vmem>>, %arg4: memref<5x72x128xbf16, #tpu.memory_space<vmem>>, %arg5: memref<1x64xf32, #tpu.memory_space<vmem>>, %arg6: memref<4x64x120xbf16, #tpu.memory_space<vmem>>, %arg7: memref<1x120xf32, #tpu.memory_space<vmem>>, %arg8: memref<120x84xbf16, #tpu.memory_space<vmem>>, %arg9: memref<1x84xf32, #tpu.memory_space<vmem>>, %arg10: memref<84x10xbf16, #tpu.memory_space<vmem>>, %arg11: memref<1x10xf32, #tpu.memory_space<vmem>>, %arg12: memref<1x1x10xf32, #tpu.memory_space<vmem>>) attributes {dimension_semantics = [#tpu.dimension_semantics<parallel>], iteration_bounds = array<i64: 2>, scalar_prefetch = 0 : i64, scratch_operands = 0 : i64, tpu.core_type = #tpu.core_type<tc>, window_params = [{transform_indices = @transform_0, window_bounds = array<i64: 1, 4, 7, 28>}, {pipeline_mode = #tpu.pipeline_mode<synchronous>, transform_indices = @transform_1, window_bounds = array<i64: 5, 28, 144>}, {pipeline_mode = #tpu.pipeline_mode<synchronous>, transform_indices = @transform_2, window_bounds = array<i64: 1, 72>}, {pipeline_mode = #tpu.pipeline_mode<synchronous>, transform_indices = @transform_3, window_bounds = array<i64: 5, 72, 128>}, {pipeline_mode = #tpu.pipeline_mode<synchronous>, transform_indices = @transform_4, window_bounds = array<i64: 1, 64>}, {pipeline_mode = #tpu.pipeline_mode<synchronous>, transform_indices = @transform_5, window_bounds = array<i64: 4, 64, 120>}, {pipeline_mode = #tpu.pipeline_mode<synchronous>, transform_indices = @transform_6, window_bounds = array<i64: 1, 120>}, {pipeline_mode = #tpu.pipeline_mode<synchronous>, transform_indices = @transform_7, window_bounds = array<i64: 120, 84>}, {pipeline_mode = #tpu.pipeline_mode<synchronous>, transform_indices = @transform_8, window_bounds = array<i64: 1, 84>}, {pipeline_mode = #tpu.pipeline_mode<synchronous>, transform_indices = @transform_9, window_bounds = array<i64: 84, 10>}, {pipeline_mode = #tpu.pipeline_mode<synchronous>, transform_indices = @transform_10, window_bounds = array<i64: 1, 10>}, {transform_indices = @transform_11, window_bounds = array<i64: 1, 1, 10>}]} {
    %c0 = arith.constant 0 : index
    %c0_0 = arith.constant 0 : index
    %0 = vector.load %arg3[%c0, %c0_0] : memref<1x72xf32, #tpu.memory_space<vmem>>, vector<1x72xf32>
    %c0_1 = arith.constant 0 : index
    %c0_2 = arith.constant 0 : index
    %1 = vector.load %arg5[%c0_1, %c0_2] : memref<1x64xf32, #tpu.memory_space<vmem>>, vector<1x64xf32>
    %c0_3 = arith.constant 0 : index
    %c0_4 = arith.constant 0 : index
    %2 = vector.load %arg7[%c0_3, %c0_4] : memref<1x120xf32, #tpu.memory_space<vmem>>, vector<1x120xf32>
    %c0_5 = arith.constant 0 : index
    %c0_6 = arith.constant 0 : index
    %3 = vector.load %arg9[%c0_5, %c0_6] : memref<1x84xf32, #tpu.memory_space<vmem>>, vector<1x84xf32>
    %c0_7 = arith.constant 0 : index
    %c0_8 = arith.constant 0 : index
    %4 = vector.load %arg11[%c0_7, %c0_8] : memref<1x10xf32, #tpu.memory_space<vmem>>, vector<1x10xf32>
    %c0_9 = arith.constant 0 : index
    %c0_10 = arith.constant 0 : index
    %c0_11 = arith.constant 0 : index
    %c0_12 = arith.constant 0 : index
    %5 = vector.load %arg1[%c0_9, %c0_10, %c0_11, %c0_12] : memref<1x4x7x28xbf16, #tpu.memory_space<vmem>>, vector<1x4x7x28xbf16>
    %6 = vector.shape_cast %5 : vector<1x4x7x28xbf16> to vector<4x7x28xbf16>
    %cst = arith.constant 0.000000e+00 : f32
    %7 = vector.broadcast %cst : f32 to vector<6x144xf32>
    %cst_13 = arith.constant 0.000000e+00 : f32
    %8 = vector.broadcast %cst_13 : f32 to vector<6x144xf32>
    %9 = vector.extract_strided_slice %6 {offsets = [0, 0, 0], sizes = [1, 6, 28], strides = [1, 1, 1]} : vector<4x7x28xbf16> to vector<1x6x28xbf16>
    %10 = vector.shape_cast %9 : vector<1x6x28xbf16> to vector<6x28xbf16>
    %c0_14 = arith.constant 0 : index
    %c0_15 = arith.constant 0 : index
    %c0_16 = arith.constant 0 : index
    %11 = vector.load %arg2[%c0_14, %c0_15, %c0_16] : memref<5x28x144xbf16, #tpu.memory_space<vmem>>, vector<1x28x144xbf16>
    %12 = vector.shape_cast %11 : vector<1x28x144xbf16> to vector<28x144xbf16>
    %cst_17 = arith.constant dense<0.000000e+00> : vector<6x144xf32>
    %13 = tpu.matmul %10, %12, %cst_17 {dimension_numbers = #tpu.dot_dimension_numbers<[1], [0], [0], [1], [0, 0, 1, 1], [], []>} : vector<6x28xbf16>, vector<28x144xbf16>, vector<6x144xf32> -> vector<6x144xf32>
    %14 = arith.addf %7, %13 : vector<6x144xf32>
    %15 = vector.extract_strided_slice %6 {offsets = [1, 0, 0], sizes = [1, 6, 28], strides = [1, 1, 1]} : vector<4x7x28xbf16> to vector<1x6x28xbf16>
    %16 = vector.shape_cast %15 : vector<1x6x28xbf16> to vector<6x28xbf16>
    %c1 = arith.constant 1 : index
    %c0_18 = arith.constant 0 : index
    %c0_19 = arith.constant 0 : index
    %17 = vector.load %arg2[%c1, %c0_18, %c0_19] : memref<5x28x144xbf16, #tpu.memory_space<vmem>>, vector<1x28x144xbf16>
    %18 = vector.shape_cast %17 : vector<1x28x144xbf16> to vector<28x144xbf16>
    %cst_20 = arith.constant dense<0.000000e+00> : vector<6x144xf32>
    %19 = tpu.matmul %16, %18, %cst_20 {dimension_numbers = #tpu.dot_dimension_numbers<[1], [0], [0], [1], [0, 0, 1, 1], [], []>} : vector<6x28xbf16>, vector<28x144xbf16>, vector<6x144xf32> -> vector<6x144xf32>
    %20 = arith.addf %14, %19 : vector<6x144xf32>
    %21 = vector.extract_strided_slice %6 {offsets = [2, 0, 0], sizes = [1, 6, 28], strides = [1, 1, 1]} : vector<4x7x28xbf16> to vector<1x6x28xbf16>
    %22 = vector.shape_cast %21 : vector<1x6x28xbf16> to vector<6x28xbf16>
    %c2 = arith.constant 2 : index
    %c0_21 = arith.constant 0 : index
    %c0_22 = arith.constant 0 : index
    %23 = vector.load %arg2[%c2, %c0_21, %c0_22] : memref<5x28x144xbf16, #tpu.memory_space<vmem>>, vector<1x28x144xbf16>
    %24 = vector.shape_cast %23 : vector<1x28x144xbf16> to vector<28x144xbf16>
    %cst_23 = arith.constant dense<0.000000e+00> : vector<6x144xf32>
    %25 = tpu.matmul %22, %24, %cst_23 {dimension_numbers = #tpu.dot_dimension_numbers<[1], [0], [0], [1], [0, 0, 1, 1], [], []>} : vector<6x28xbf16>, vector<28x144xbf16>, vector<6x144xf32> -> vector<6x144xf32>
    %26 = arith.addf %20, %25 : vector<6x144xf32>
    %27 = vector.extract_strided_slice %6 {offsets = [3, 0, 0], sizes = [1, 6, 28], strides = [1, 1, 1]} : vector<4x7x28xbf16> to vector<1x6x28xbf16>
    %28 = vector.shape_cast %27 : vector<1x6x28xbf16> to vector<6x28xbf16>
    %c3 = arith.constant 3 : index
    %c0_24 = arith.constant 0 : index
    %c0_25 = arith.constant 0 : index
    %29 = vector.load %arg2[%c3, %c0_24, %c0_25] : memref<5x28x144xbf16, #tpu.memory_space<vmem>>, vector<1x28x144xbf16>
    %30 = vector.shape_cast %29 : vector<1x28x144xbf16> to vector<28x144xbf16>
    %cst_26 = arith.constant dense<0.000000e+00> : vector<6x144xf32>
    %31 = tpu.matmul %28, %30, %cst_26 {dimension_numbers = #tpu.dot_dimension_numbers<[1], [0], [0], [1], [0, 0, 1, 1], [], []>} : vector<6x28xbf16>, vector<28x144xbf16>, vector<6x144xf32> -> vector<6x144xf32>
    %32 = arith.addf %26, %31 : vector<6x144xf32>
    %33 = vector.extract_strided_slice %6 {offsets = [0, 1, 0], sizes = [1, 6, 28], strides = [1, 1, 1]} : vector<4x7x28xbf16> to vector<1x6x28xbf16>
    %34 = vector.shape_cast %33 : vector<1x6x28xbf16> to vector<6x28xbf16>
    %c4 = arith.constant 4 : index
    %c0_27 = arith.constant 0 : index
    %c0_28 = arith.constant 0 : index
    %35 = vector.load %arg2[%c4, %c0_27, %c0_28] : memref<5x28x144xbf16, #tpu.memory_space<vmem>>, vector<1x28x144xbf16>
    %36 = vector.shape_cast %35 : vector<1x28x144xbf16> to vector<28x144xbf16>
    %cst_29 = arith.constant dense<0.000000e+00> : vector<6x144xf32>
    %37 = tpu.matmul %34, %36, %cst_29 {dimension_numbers = #tpu.dot_dimension_numbers<[1], [0], [0], [1], [0, 0, 1, 1], [], []>} : vector<6x28xbf16>, vector<28x144xbf16>, vector<6x144xf32> -> vector<6x144xf32>
    %38 = arith.addf %32, %37 : vector<6x144xf32>
    %39 = vector.extract_strided_slice %6 {offsets = [1, 0, 0], sizes = [1, 6, 28], strides = [1, 1, 1]} : vector<4x7x28xbf16> to vector<1x6x28xbf16>
    %40 = vector.shape_cast %39 : vector<1x6x28xbf16> to vector<6x28xbf16>
    %c0_30 = arith.constant 0 : index
    %c0_31 = arith.constant 0 : index
    %c0_32 = arith.constant 0 : index
    %41 = vector.load %arg2[%c0_30, %c0_31, %c0_32] : memref<5x28x144xbf16, #tpu.memory_space<vmem>>, vector<1x28x144xbf16>
    %42 = vector.shape_cast %41 : vector<1x28x144xbf16> to vector<28x144xbf16>
    %cst_33 = arith.constant dense<0.000000e+00> : vector<6x144xf32>
    %43 = tpu.matmul %40, %42, %cst_33 {dimension_numbers = #tpu.dot_dimension_numbers<[1], [0], [0], [1], [0, 0, 1, 1], [], []>} : vector<6x28xbf16>, vector<28x144xbf16>, vector<6x144xf32> -> vector<6x144xf32>
    %44 = arith.addf %8, %43 : vector<6x144xf32>
    %45 = vector.extract_strided_slice %6 {offsets = [2, 0, 0], sizes = [1, 6, 28], strides = [1, 1, 1]} : vector<4x7x28xbf16> to vector<1x6x28xbf16>
    %46 = vector.shape_cast %45 : vector<1x6x28xbf16> to vector<6x28xbf16>
    %c1_34 = arith.constant 1 : index
    %c0_35 = arith.constant 0 : index
    %c0_36 = arith.constant 0 : index
    %47 = vector.load %arg2[%c1_34, %c0_35, %c0_36] : memref<5x28x144xbf16, #tpu.memory_space<vmem>>, vector<1x28x144xbf16>
    %48 = vector.shape_cast %47 : vector<1x28x144xbf16> to vector<28x144xbf16>
    %cst_37 = arith.constant dense<0.000000e+00> : vector<6x144xf32>
    %49 = tpu.matmul %46, %48, %cst_37 {dimension_numbers = #tpu.dot_dimension_numbers<[1], [0], [0], [1], [0, 0, 1, 1], [], []>} : vector<6x28xbf16>, vector<28x144xbf16>, vector<6x144xf32> -> vector<6x144xf32>
    %50 = arith.addf %44, %49 : vector<6x144xf32>
    %51 = vector.extract_strided_slice %6 {offsets = [3, 0, 0], sizes = [1, 6, 28], strides = [1, 1, 1]} : vector<4x7x28xbf16> to vector<1x6x28xbf16>
    %52 = vector.shape_cast %51 : vector<1x6x28xbf16> to vector<6x28xbf16>
    %c2_38 = arith.constant 2 : index
    %c0_39 = arith.constant 0 : index
    %c0_40 = arith.constant 0 : index
    %53 = vector.load %arg2[%c2_38, %c0_39, %c0_40] : memref<5x28x144xbf16, #tpu.memory_space<vmem>>, vector<1x28x144xbf16>
    %54 = vector.shape_cast %53 : vector<1x28x144xbf16> to vector<28x144xbf16>
    %cst_41 = arith.constant dense<0.000000e+00> : vector<6x144xf32>
    %55 = tpu.matmul %52, %54, %cst_41 {dimension_numbers = #tpu.dot_dimension_numbers<[1], [0], [0], [1], [0, 0, 1, 1], [], []>} : vector<6x28xbf16>, vector<28x144xbf16>, vector<6x144xf32> -> vector<6x144xf32>
    %56 = arith.addf %50, %55 : vector<6x144xf32>
    %57 = vector.extract_strided_slice %6 {offsets = [0, 1, 0], sizes = [1, 6, 28], strides = [1, 1, 1]} : vector<4x7x28xbf16> to vector<1x6x28xbf16>
    %58 = vector.shape_cast %57 : vector<1x6x28xbf16> to vector<6x28xbf16>
    %c3_42 = arith.constant 3 : index
    %c0_43 = arith.constant 0 : index
    %c0_44 = arith.constant 0 : index
    %59 = vector.load %arg2[%c3_42, %c0_43, %c0_44] : memref<5x28x144xbf16, #tpu.memory_space<vmem>>, vector<1x28x144xbf16>
    %60 = vector.shape_cast %59 : vector<1x28x144xbf16> to vector<28x144xbf16>
    %cst_45 = arith.constant dense<0.000000e+00> : vector<6x144xf32>
    %61 = tpu.matmul %58, %60, %cst_45 {dimension_numbers = #tpu.dot_dimension_numbers<[1], [0], [0], [1], [0, 0, 1, 1], [], []>} : vector<6x28xbf16>, vector<28x144xbf16>, vector<6x144xf32> -> vector<6x144xf32>
    %62 = arith.addf %56, %61 : vector<6x144xf32>
    %63 = vector.extract_strided_slice %6 {offsets = [1, 1, 0], sizes = [1, 6, 28], strides = [1, 1, 1]} : vector<4x7x28xbf16> to vector<1x6x28xbf16>
    %64 = vector.shape_cast %63 : vector<1x6x28xbf16> to vector<6x28xbf16>
    %c4_46 = arith.constant 4 : index
    %c0_47 = arith.constant 0 : index
    %c0_48 = arith.constant 0 : index
    %65 = vector.load %arg2[%c4_46, %c0_47, %c0_48] : memref<5x28x144xbf16, #tpu.memory_space<vmem>>, vector<1x28x144xbf16>
    %66 = vector.shape_cast %65 : vector<1x28x144xbf16> to vector<28x144xbf16>
    %cst_49 = arith.constant dense<0.000000e+00> : vector<6x144xf32>
    %67 = tpu.matmul %64, %66, %cst_49 {dimension_numbers = #tpu.dot_dimension_numbers<[1], [0], [0], [1], [0, 0, 1, 1], [], []>} : vector<6x28xbf16>, vector<28x144xbf16>, vector<6x144xf32> -> vector<6x144xf32>
    %68 = arith.addf %62, %67 : vector<6x144xf32>
    %69 = arith.maximumf %38, %68 : vector<6x144xf32>
    %70 = vector.extract_strided_slice %69 {offsets = [0, 0], sizes = [6, 72], strides = [1, 1]} : vector<6x144xf32> to vector<6x72xf32>
    %71 = vector.extract_strided_slice %69 {offsets = [0, 72], sizes = [6, 72], strides = [1, 1]} : vector<6x144xf32> to vector<6x72xf32>
    %72 = arith.maximumf %70, %71 : vector<6x72xf32>
    %73 = vector.broadcast %0 : vector<1x72xf32> to vector<6x72xf32>
    %74 = arith.addf %72, %73 : vector<6x72xf32>
    %cst_50 = arith.constant 0.000000e+00 : f32
    %75 = vector.broadcast %cst_50 : f32 to vector<6x72xf32>
    %76 = arith.maximumf %74, %75 : vector<6x72xf32>
    %77 = arith.truncf %76 : vector<6x72xf32> to vector<6x72xbf16>
    %cst_51 = arith.constant 0.000000e+00 : f32
    %78 = vector.broadcast %cst_51 : f32 to vector<6x144xf32>
    %cst_52 = arith.constant 0.000000e+00 : f32
    %79 = vector.broadcast %cst_52 : f32 to vector<6x144xf32>
    %80 = vector.extract_strided_slice %6 {offsets = [2, 0, 0], sizes = [1, 6, 28], strides = [1, 1, 1]} : vector<4x7x28xbf16> to vector<1x6x28xbf16>
    %81 = vector.shape_cast %80 : vector<1x6x28xbf16> to vector<6x28xbf16>
    %c0_53 = arith.constant 0 : index
    %c0_54 = arith.constant 0 : index
    %c0_55 = arith.constant 0 : index
    %82 = vector.load %arg2[%c0_53, %c0_54, %c0_55] : memref<5x28x144xbf16, #tpu.memory_space<vmem>>, vector<1x28x144xbf16>
    %83 = vector.shape_cast %82 : vector<1x28x144xbf16> to vector<28x144xbf16>
    %cst_56 = arith.constant dense<0.000000e+00> : vector<6x144xf32>
    %84 = tpu.matmul %81, %83, %cst_56 {dimension_numbers = #tpu.dot_dimension_numbers<[1], [0], [0], [1], [0, 0, 1, 1], [], []>} : vector<6x28xbf16>, vector<28x144xbf16>, vector<6x144xf32> -> vector<6x144xf32>
    %85 = arith.addf %78, %84 : vector<6x144xf32>
    %86 = vector.extract_strided_slice %6 {offsets = [3, 0, 0], sizes = [1, 6, 28], strides = [1, 1, 1]} : vector<4x7x28xbf16> to vector<1x6x28xbf16>
    %87 = vector.shape_cast %86 : vector<1x6x28xbf16> to vector<6x28xbf16>
    %c1_57 = arith.constant 1 : index
    %c0_58 = arith.constant 0 : index
    %c0_59 = arith.constant 0 : index
    %88 = vector.load %arg2[%c1_57, %c0_58, %c0_59] : memref<5x28x144xbf16, #tpu.memory_space<vmem>>, vector<1x28x144xbf16>
    %89 = vector.shape_cast %88 : vector<1x28x144xbf16> to vector<28x144xbf16>
    %cst_60 = arith.constant dense<0.000000e+00> : vector<6x144xf32>
    %90 = tpu.matmul %87, %89, %cst_60 {dimension_numbers = #tpu.dot_dimension_numbers<[1], [0], [0], [1], [0, 0, 1, 1], [], []>} : vector<6x28xbf16>, vector<28x144xbf16>, vector<6x144xf32> -> vector<6x144xf32>
    %91 = arith.addf %85, %90 : vector<6x144xf32>
    %92 = vector.extract_strided_slice %6 {offsets = [0, 1, 0], sizes = [1, 6, 28], strides = [1, 1, 1]} : vector<4x7x28xbf16> to vector<1x6x28xbf16>
    %93 = vector.shape_cast %92 : vector<1x6x28xbf16> to vector<6x28xbf16>
    %c2_61 = arith.constant 2 : index
    %c0_62 = arith.constant 0 : index
    %c0_63 = arith.constant 0 : index
    %94 = vector.load %arg2[%c2_61, %c0_62, %c0_63] : memref<5x28x144xbf16, #tpu.memory_space<vmem>>, vector<1x28x144xbf16>
    %95 = vector.shape_cast %94 : vector<1x28x144xbf16> to vector<28x144xbf16>
    %cst_64 = arith.constant dense<0.000000e+00> : vector<6x144xf32>
    %96 = tpu.matmul %93, %95, %cst_64 {dimension_numbers = #tpu.dot_dimension_numbers<[1], [0], [0], [1], [0, 0, 1, 1], [], []>} : vector<6x28xbf16>, vector<28x144xbf16>, vector<6x144xf32> -> vector<6x144xf32>
    %97 = arith.addf %91, %96 : vector<6x144xf32>
    %98 = vector.extract_strided_slice %6 {offsets = [1, 1, 0], sizes = [1, 6, 28], strides = [1, 1, 1]} : vector<4x7x28xbf16> to vector<1x6x28xbf16>
    %99 = vector.shape_cast %98 : vector<1x6x28xbf16> to vector<6x28xbf16>
    %c3_65 = arith.constant 3 : index
    %c0_66 = arith.constant 0 : index
    %c0_67 = arith.constant 0 : index
    %100 = vector.load %arg2[%c3_65, %c0_66, %c0_67] : memref<5x28x144xbf16, #tpu.memory_space<vmem>>, vector<1x28x144xbf16>
    %101 = vector.shape_cast %100 : vector<1x28x144xbf16> to vector<28x144xbf16>
    %cst_68 = arith.constant dense<0.000000e+00> : vector<6x144xf32>
    %102 = tpu.matmul %99, %101, %cst_68 {dimension_numbers = #tpu.dot_dimension_numbers<[1], [0], [0], [1], [0, 0, 1, 1], [], []>} : vector<6x28xbf16>, vector<28x144xbf16>, vector<6x144xf32> -> vector<6x144xf32>
    %103 = arith.addf %97, %102 : vector<6x144xf32>
    %104 = vector.extract_strided_slice %6 {offsets = [2, 1, 0], sizes = [1, 6, 28], strides = [1, 1, 1]} : vector<4x7x28xbf16> to vector<1x6x28xbf16>
    %105 = vector.shape_cast %104 : vector<1x6x28xbf16> to vector<6x28xbf16>
    %c4_69 = arith.constant 4 : index
    %c0_70 = arith.constant 0 : index
    %c0_71 = arith.constant 0 : index
    %106 = vector.load %arg2[%c4_69, %c0_70, %c0_71] : memref<5x28x144xbf16, #tpu.memory_space<vmem>>, vector<1x28x144xbf16>
    %107 = vector.shape_cast %106 : vector<1x28x144xbf16> to vector<28x144xbf16>
    %cst_72 = arith.constant dense<0.000000e+00> : vector<6x144xf32>
    %108 = tpu.matmul %105, %107, %cst_72 {dimension_numbers = #tpu.dot_dimension_numbers<[1], [0], [0], [1], [0, 0, 1, 1], [], []>} : vector<6x28xbf16>, vector<28x144xbf16>, vector<6x144xf32> -> vector<6x144xf32>
    %109 = arith.addf %103, %108 : vector<6x144xf32>
    %110 = vector.extract_strided_slice %6 {offsets = [3, 0, 0], sizes = [1, 6, 28], strides = [1, 1, 1]} : vector<4x7x28xbf16> to vector<1x6x28xbf16>
    %111 = vector.shape_cast %110 : vector<1x6x28xbf16> to vector<6x28xbf16>
    %c0_73 = arith.constant 0 : index
    %c0_74 = arith.constant 0 : index
    %c0_75 = arith.constant 0 : index
    %112 = vector.load %arg2[%c0_73, %c0_74, %c0_75] : memref<5x28x144xbf16, #tpu.memory_space<vmem>>, vector<1x28x144xbf16>
    %113 = vector.shape_cast %112 : vector<1x28x144xbf16> to vector<28x144xbf16>
    %cst_76 = arith.constant dense<0.000000e+00> : vector<6x144xf32>
    %114 = tpu.matmul %111, %113, %cst_76 {dimension_numbers = #tpu.dot_dimension_numbers<[1], [0], [0], [1], [0, 0, 1, 1], [], []>} : vector<6x28xbf16>, vector<28x144xbf16>, vector<6x144xf32> -> vector<6x144xf32>
    %115 = arith.addf %79, %114 : vector<6x144xf32>
    %116 = vector.extract_strided_slice %6 {offsets = [0, 1, 0], sizes = [1, 6, 28], strides = [1, 1, 1]} : vector<4x7x28xbf16> to vector<1x6x28xbf16>
    %117 = vector.shape_cast %116 : vector<1x6x28xbf16> to vector<6x28xbf16>
    %c1_77 = arith.constant 1 : index
    %c0_78 = arith.constant 0 : index
    %c0_79 = arith.constant 0 : index
    %118 = vector.load %arg2[%c1_77, %c0_78, %c0_79] : memref<5x28x144xbf16, #tpu.memory_space<vmem>>, vector<1x28x144xbf16>
    %119 = vector.shape_cast %118 : vector<1x28x144xbf16> to vector<28x144xbf16>
    %cst_80 = arith.constant dense<0.000000e+00> : vector<6x144xf32>
    %120 = tpu.matmul %117, %119, %cst_80 {dimension_numbers = #tpu.dot_dimension_numbers<[1], [0], [0], [1], [0, 0, 1, 1], [], []>} : vector<6x28xbf16>, vector<28x144xbf16>, vector<6x144xf32> -> vector<6x144xf32>
    %121 = arith.addf %115, %120 : vector<6x144xf32>
    %122 = vector.extract_strided_slice %6 {offsets = [1, 1, 0], sizes = [1, 6, 28], strides = [1, 1, 1]} : vector<4x7x28xbf16> to vector<1x6x28xbf16>
    %123 = vector.shape_cast %122 : vector<1x6x28xbf16> to vector<6x28xbf16>
    %c2_81 = arith.constant 2 : index
    %c0_82 = arith.constant 0 : index
    %c0_83 = arith.constant 0 : index
    %124 = vector.load %arg2[%c2_81, %c0_82, %c0_83] : memref<5x28x144xbf16, #tpu.memory_space<vmem>>, vector<1x28x144xbf16>
    %125 = vector.shape_cast %124 : vector<1x28x144xbf16> to vector<28x144xbf16>
    %cst_84 = arith.constant dense<0.000000e+00> : vector<6x144xf32>
    %126 = tpu.matmul %123, %125, %cst_84 {dimension_numbers = #tpu.dot_dimension_numbers<[1], [0], [0], [1], [0, 0, 1, 1], [], []>} : vector<6x28xbf16>, vector<28x144xbf16>, vector<6x144xf32> -> vector<6x144xf32>
    %127 = arith.addf %121, %126 : vector<6x144xf32>
    %128 = vector.extract_strided_slice %6 {offsets = [2, 1, 0], sizes = [1, 6, 28], strides = [1, 1, 1]} : vector<4x7x28xbf16> to vector<1x6x28xbf16>
    %129 = vector.shape_cast %128 : vector<1x6x28xbf16> to vector<6x28xbf16>
    %c3_85 = arith.constant 3 : index
    %c0_86 = arith.constant 0 : index
    %c0_87 = arith.constant 0 : index
    %130 = vector.load %arg2[%c3_85, %c0_86, %c0_87] : memref<5x28x144xbf16, #tpu.memory_space<vmem>>, vector<1x28x144xbf16>
    %131 = vector.shape_cast %130 : vector<1x28x144xbf16> to vector<28x144xbf16>
    %cst_88 = arith.constant dense<0.000000e+00> : vector<6x144xf32>
    %132 = tpu.matmul %129, %131, %cst_88 {dimension_numbers = #tpu.dot_dimension_numbers<[1], [0], [0], [1], [0, 0, 1, 1], [], []>} : vector<6x28xbf16>, vector<28x144xbf16>, vector<6x144xf32> -> vector<6x144xf32>
    %133 = arith.addf %127, %132 : vector<6x144xf32>
    %134 = vector.extract_strided_slice %6 {offsets = [3, 1, 0], sizes = [1, 6, 28], strides = [1, 1, 1]} : vector<4x7x28xbf16> to vector<1x6x28xbf16>
    %135 = vector.shape_cast %134 : vector<1x6x28xbf16> to vector<6x28xbf16>
    %c4_89 = arith.constant 4 : index
    %c0_90 = arith.constant 0 : index
    %c0_91 = arith.constant 0 : index
    %136 = vector.load %arg2[%c4_89, %c0_90, %c0_91] : memref<5x28x144xbf16, #tpu.memory_space<vmem>>, vector<1x28x144xbf16>
    %137 = vector.shape_cast %136 : vector<1x28x144xbf16> to vector<28x144xbf16>
    %cst_92 = arith.constant dense<0.000000e+00> : vector<6x144xf32>
    %138 = tpu.matmul %135, %137, %cst_92 {dimension_numbers = #tpu.dot_dimension_numbers<[1], [0], [0], [1], [0, 0, 1, 1], [], []>} : vector<6x28xbf16>, vector<28x144xbf16>, vector<6x144xf32> -> vector<6x144xf32>
    %139 = arith.addf %133, %138 : vector<6x144xf32>
    %140 = arith.maximumf %109, %139 : vector<6x144xf32>
    %141 = vector.extract_strided_slice %140 {offsets = [0, 0], sizes = [6, 72], strides = [1, 1]} : vector<6x144xf32> to vector<6x72xf32>
    %142 = vector.extract_strided_slice %140 {offsets = [0, 72], sizes = [6, 72], strides = [1, 1]} : vector<6x144xf32> to vector<6x72xf32>
    %143 = arith.maximumf %141, %142 : vector<6x72xf32>
    %144 = vector.broadcast %0 : vector<1x72xf32> to vector<6x72xf32>
    %145 = arith.addf %143, %144 : vector<6x72xf32>
    %cst_93 = arith.constant 0.000000e+00 : f32
    %146 = vector.broadcast %cst_93 : f32 to vector<6x72xf32>
    %147 = arith.maximumf %145, %146 : vector<6x72xf32>
    %148 = arith.truncf %147 : vector<6x72xf32> to vector<6x72xbf16>
    %cst_94 = arith.constant 0.000000e+00 : f32
    %149 = vector.broadcast %cst_94 : f32 to vector<4x128xf32>
    %cst_95 = arith.constant 0.000000e+00 : f32
    %150 = vector.broadcast %cst_95 : f32 to vector<4x128xf32>
    %151 = vector.extract_strided_slice %77 {offsets = [0, 0], sizes = [4, 72], strides = [1, 1]} : vector<6x72xbf16> to vector<4x72xbf16>
    %c0_96 = arith.constant 0 : index
    %c0_97 = arith.constant 0 : index
    %c0_98 = arith.constant 0 : index
    %152 = vector.load %arg4[%c0_96, %c0_97, %c0_98] : memref<5x72x128xbf16, #tpu.memory_space<vmem>>, vector<1x72x128xbf16>
    %153 = vector.shape_cast %152 : vector<1x72x128xbf16> to vector<72x128xbf16>
    %cst_99 = arith.constant dense<0.000000e+00> : vector<4x128xf32>
    %154 = tpu.matmul %151, %153, %cst_99 {dimension_numbers = #tpu.dot_dimension_numbers<[1], [0], [0], [1], [0, 0, 1, 1], [], []>} : vector<4x72xbf16>, vector<72x128xbf16>, vector<4x128xf32> -> vector<4x128xf32>
    %155 = arith.addf %149, %154 : vector<4x128xf32>
    %156 = vector.extract_strided_slice %148 {offsets = [0, 0], sizes = [4, 72], strides = [1, 1]} : vector<6x72xbf16> to vector<4x72xbf16>
    %c1_100 = arith.constant 1 : index
    %c0_101 = arith.constant 0 : index
    %c0_102 = arith.constant 0 : index
    %157 = vector.load %arg4[%c1_100, %c0_101, %c0_102] : memref<5x72x128xbf16, #tpu.memory_space<vmem>>, vector<1x72x128xbf16>
    %158 = vector.shape_cast %157 : vector<1x72x128xbf16> to vector<72x128xbf16>
    %cst_103 = arith.constant dense<0.000000e+00> : vector<4x128xf32>
    %159 = tpu.matmul %156, %158, %cst_103 {dimension_numbers = #tpu.dot_dimension_numbers<[1], [0], [0], [1], [0, 0, 1, 1], [], []>} : vector<4x72xbf16>, vector<72x128xbf16>, vector<4x128xf32> -> vector<4x128xf32>
    %160 = arith.addf %155, %159 : vector<4x128xf32>
    %161 = vector.extract_strided_slice %77 {offsets = [1, 0], sizes = [4, 72], strides = [1, 1]} : vector<6x72xbf16> to vector<4x72xbf16>
    %c2_104 = arith.constant 2 : index
    %c0_105 = arith.constant 0 : index
    %c0_106 = arith.constant 0 : index
    %162 = vector.load %arg4[%c2_104, %c0_105, %c0_106] : memref<5x72x128xbf16, #tpu.memory_space<vmem>>, vector<1x72x128xbf16>
    %163 = vector.shape_cast %162 : vector<1x72x128xbf16> to vector<72x128xbf16>
    %cst_107 = arith.constant dense<0.000000e+00> : vector<4x128xf32>
    %164 = tpu.matmul %161, %163, %cst_107 {dimension_numbers = #tpu.dot_dimension_numbers<[1], [0], [0], [1], [0, 0, 1, 1], [], []>} : vector<4x72xbf16>, vector<72x128xbf16>, vector<4x128xf32> -> vector<4x128xf32>
    %165 = arith.addf %160, %164 : vector<4x128xf32>
    %166 = vector.extract_strided_slice %148 {offsets = [1, 0], sizes = [4, 72], strides = [1, 1]} : vector<6x72xbf16> to vector<4x72xbf16>
    %c3_108 = arith.constant 3 : index
    %c0_109 = arith.constant 0 : index
    %c0_110 = arith.constant 0 : index
    %167 = vector.load %arg4[%c3_108, %c0_109, %c0_110] : memref<5x72x128xbf16, #tpu.memory_space<vmem>>, vector<1x72x128xbf16>
    %168 = vector.shape_cast %167 : vector<1x72x128xbf16> to vector<72x128xbf16>
    %cst_111 = arith.constant dense<0.000000e+00> : vector<4x128xf32>
    %169 = tpu.matmul %166, %168, %cst_111 {dimension_numbers = #tpu.dot_dimension_numbers<[1], [0], [0], [1], [0, 0, 1, 1], [], []>} : vector<4x72xbf16>, vector<72x128xbf16>, vector<4x128xf32> -> vector<4x128xf32>
    %170 = arith.addf %165, %169 : vector<4x128xf32>
    %171 = vector.extract_strided_slice %77 {offsets = [2, 0], sizes = [4, 72], strides = [1, 1]} : vector<6x72xbf16> to vector<4x72xbf16>
    %c4_112 = arith.constant 4 : index
    %c0_113 = arith.constant 0 : index
    %c0_114 = arith.constant 0 : index
    %172 = vector.load %arg4[%c4_112, %c0_113, %c0_114] : memref<5x72x128xbf16, #tpu.memory_space<vmem>>, vector<1x72x128xbf16>
    %173 = vector.shape_cast %172 : vector<1x72x128xbf16> to vector<72x128xbf16>
    %cst_115 = arith.constant dense<0.000000e+00> : vector<4x128xf32>
    %174 = tpu.matmul %171, %173, %cst_115 {dimension_numbers = #tpu.dot_dimension_numbers<[1], [0], [0], [1], [0, 0, 1, 1], [], []>} : vector<4x72xbf16>, vector<72x128xbf16>, vector<4x128xf32> -> vector<4x128xf32>
    %175 = arith.addf %170, %174 : vector<4x128xf32>
    %176 = vector.extract_strided_slice %148 {offsets = [0, 0], sizes = [4, 72], strides = [1, 1]} : vector<6x72xbf16> to vector<4x72xbf16>
    %c0_116 = arith.constant 0 : index
    %c0_117 = arith.constant 0 : index
    %c0_118 = arith.constant 0 : index
    %177 = vector.load %arg4[%c0_116, %c0_117, %c0_118] : memref<5x72x128xbf16, #tpu.memory_space<vmem>>, vector<1x72x128xbf16>
    %178 = vector.shape_cast %177 : vector<1x72x128xbf16> to vector<72x128xbf16>
    %cst_119 = arith.constant dense<0.000000e+00> : vector<4x128xf32>
    %179 = tpu.matmul %176, %178, %cst_119 {dimension_numbers = #tpu.dot_dimension_numbers<[1], [0], [0], [1], [0, 0, 1, 1], [], []>} : vector<4x72xbf16>, vector<72x128xbf16>, vector<4x128xf32> -> vector<4x128xf32>
    %180 = arith.addf %150, %179 : vector<4x128xf32>
    %181 = vector.extract_strided_slice %77 {offsets = [1, 0], sizes = [4, 72], strides = [1, 1]} : vector<6x72xbf16> to vector<4x72xbf16>
    %c1_120 = arith.constant 1 : index
    %c0_121 = arith.constant 0 : index
    %c0_122 = arith.constant 0 : index
    %182 = vector.load %arg4[%c1_120, %c0_121, %c0_122] : memref<5x72x128xbf16, #tpu.memory_space<vmem>>, vector<1x72x128xbf16>
    %183 = vector.shape_cast %182 : vector<1x72x128xbf16> to vector<72x128xbf16>
    %cst_123 = arith.constant dense<0.000000e+00> : vector<4x128xf32>
    %184 = tpu.matmul %181, %183, %cst_123 {dimension_numbers = #tpu.dot_dimension_numbers<[1], [0], [0], [1], [0, 0, 1, 1], [], []>} : vector<4x72xbf16>, vector<72x128xbf16>, vector<4x128xf32> -> vector<4x128xf32>
    %185 = arith.addf %180, %184 : vector<4x128xf32>
    %186 = vector.extract_strided_slice %148 {offsets = [1, 0], sizes = [4, 72], strides = [1, 1]} : vector<6x72xbf16> to vector<4x72xbf16>
    %c2_124 = arith.constant 2 : index
    %c0_125 = arith.constant 0 : index
    %c0_126 = arith.constant 0 : index
    %187 = vector.load %arg4[%c2_124, %c0_125, %c0_126] : memref<5x72x128xbf16, #tpu.memory_space<vmem>>, vector<1x72x128xbf16>
    %188 = vector.shape_cast %187 : vector<1x72x128xbf16> to vector<72x128xbf16>
    %cst_127 = arith.constant dense<0.000000e+00> : vector<4x128xf32>
    %189 = tpu.matmul %186, %188, %cst_127 {dimension_numbers = #tpu.dot_dimension_numbers<[1], [0], [0], [1], [0, 0, 1, 1], [], []>} : vector<4x72xbf16>, vector<72x128xbf16>, vector<4x128xf32> -> vector<4x128xf32>
    %190 = arith.addf %185, %189 : vector<4x128xf32>
    %191 = vector.extract_strided_slice %77 {offsets = [2, 0], sizes = [4, 72], strides = [1, 1]} : vector<6x72xbf16> to vector<4x72xbf16>
    %c3_128 = arith.constant 3 : index
    %c0_129 = arith.constant 0 : index
    %c0_130 = arith.constant 0 : index
    %192 = vector.load %arg4[%c3_128, %c0_129, %c0_130] : memref<5x72x128xbf16, #tpu.memory_space<vmem>>, vector<1x72x128xbf16>
    %193 = vector.shape_cast %192 : vector<1x72x128xbf16> to vector<72x128xbf16>
    %cst_131 = arith.constant dense<0.000000e+00> : vector<4x128xf32>
    %194 = tpu.matmul %191, %193, %cst_131 {dimension_numbers = #tpu.dot_dimension_numbers<[1], [0], [0], [1], [0, 0, 1, 1], [], []>} : vector<4x72xbf16>, vector<72x128xbf16>, vector<4x128xf32> -> vector<4x128xf32>
    %195 = arith.addf %190, %194 : vector<4x128xf32>
    %196 = vector.extract_strided_slice %148 {offsets = [2, 0], sizes = [4, 72], strides = [1, 1]} : vector<6x72xbf16> to vector<4x72xbf16>
    %c4_132 = arith.constant 4 : index
    %c0_133 = arith.constant 0 : index
    %c0_134 = arith.constant 0 : index
    %197 = vector.load %arg4[%c4_132, %c0_133, %c0_134] : memref<5x72x128xbf16, #tpu.memory_space<vmem>>, vector<1x72x128xbf16>
    %198 = vector.shape_cast %197 : vector<1x72x128xbf16> to vector<72x128xbf16>
    %cst_135 = arith.constant dense<0.000000e+00> : vector<4x128xf32>
    %199 = tpu.matmul %196, %198, %cst_135 {dimension_numbers = #tpu.dot_dimension_numbers<[1], [0], [0], [1], [0, 0, 1, 1], [], []>} : vector<4x72xbf16>, vector<72x128xbf16>, vector<4x128xf32> -> vector<4x128xf32>
    %200 = arith.addf %195, %199 : vector<4x128xf32>
    %201 = arith.maximumf %175, %200 : vector<4x128xf32>
    %202 = vector.extract_strided_slice %201 {offsets = [0, 0], sizes = [4, 64], strides = [1, 1]} : vector<4x128xf32> to vector<4x64xf32>
    %203 = vector.extract_strided_slice %201 {offsets = [0, 64], sizes = [4, 64], strides = [1, 1]} : vector<4x128xf32> to vector<4x64xf32>
    %204 = arith.maximumf %202, %203 : vector<4x64xf32>
    %205 = vector.broadcast %1 : vector<1x64xf32> to vector<4x64xf32>
    %206 = arith.addf %204, %205 : vector<4x64xf32>
    %cst_136 = arith.constant 0.000000e+00 : f32
    %207 = vector.broadcast %cst_136 : f32 to vector<4x64xf32>
    %208 = arith.maximumf %206, %207 : vector<4x64xf32>
    %209 = arith.truncf %208 : vector<4x64xf32> to vector<4x64xbf16>
    %cst_137 = arith.constant 0.000000e+00 : f32
    %210 = vector.broadcast %cst_137 : f32 to vector<1x120xf32>
    %211 = vector.extract_strided_slice %209 {offsets = [0, 0], sizes = [1, 64], strides = [1, 1]} : vector<4x64xbf16> to vector<1x64xbf16>
    %c0_138 = arith.constant 0 : index
    %c0_139 = arith.constant 0 : index
    %c0_140 = arith.constant 0 : index
    %212 = vector.load %arg6[%c0_138, %c0_139, %c0_140] : memref<4x64x120xbf16, #tpu.memory_space<vmem>>, vector<1x64x120xbf16>
    %213 = vector.shape_cast %212 : vector<1x64x120xbf16> to vector<64x120xbf16>
    %cst_141 = arith.constant dense<0.000000e+00> : vector<1x120xf32>
    %214 = tpu.matmul %211, %213, %cst_141 {dimension_numbers = #tpu.dot_dimension_numbers<[1], [0], [0], [1], [0, 0, 1, 1], [], []>} : vector<1x64xbf16>, vector<64x120xbf16>, vector<1x120xf32> -> vector<1x120xf32>
    %215 = arith.addf %210, %214 : vector<1x120xf32>
    %216 = vector.extract_strided_slice %209 {offsets = [1, 0], sizes = [1, 64], strides = [1, 1]} : vector<4x64xbf16> to vector<1x64xbf16>
    %c1_142 = arith.constant 1 : index
    %c0_143 = arith.constant 0 : index
    %c0_144 = arith.constant 0 : index
    %217 = vector.load %arg6[%c1_142, %c0_143, %c0_144] : memref<4x64x120xbf16, #tpu.memory_space<vmem>>, vector<1x64x120xbf16>
    %218 = vector.shape_cast %217 : vector<1x64x120xbf16> to vector<64x120xbf16>
    %cst_145 = arith.constant dense<0.000000e+00> : vector<1x120xf32>
    %219 = tpu.matmul %216, %218, %cst_145 {dimension_numbers = #tpu.dot_dimension_numbers<[1], [0], [0], [1], [0, 0, 1, 1], [], []>} : vector<1x64xbf16>, vector<64x120xbf16>, vector<1x120xf32> -> vector<1x120xf32>
    %220 = arith.addf %215, %219 : vector<1x120xf32>
    %221 = vector.extract_strided_slice %209 {offsets = [2, 0], sizes = [1, 64], strides = [1, 1]} : vector<4x64xbf16> to vector<1x64xbf16>
    %c2_146 = arith.constant 2 : index
    %c0_147 = arith.constant 0 : index
    %c0_148 = arith.constant 0 : index
    %222 = vector.load %arg6[%c2_146, %c0_147, %c0_148] : memref<4x64x120xbf16, #tpu.memory_space<vmem>>, vector<1x64x120xbf16>
    %223 = vector.shape_cast %222 : vector<1x64x120xbf16> to vector<64x120xbf16>
    %cst_149 = arith.constant dense<0.000000e+00> : vector<1x120xf32>
    %224 = tpu.matmul %221, %223, %cst_149 {dimension_numbers = #tpu.dot_dimension_numbers<[1], [0], [0], [1], [0, 0, 1, 1], [], []>} : vector<1x64xbf16>, vector<64x120xbf16>, vector<1x120xf32> -> vector<1x120xf32>
    %225 = arith.addf %220, %224 : vector<1x120xf32>
    %226 = vector.extract_strided_slice %209 {offsets = [3, 0], sizes = [1, 64], strides = [1, 1]} : vector<4x64xbf16> to vector<1x64xbf16>
    %c3_150 = arith.constant 3 : index
    %c0_151 = arith.constant 0 : index
    %c0_152 = arith.constant 0 : index
    %227 = vector.load %arg6[%c3_150, %c0_151, %c0_152] : memref<4x64x120xbf16, #tpu.memory_space<vmem>>, vector<1x64x120xbf16>
    %228 = vector.shape_cast %227 : vector<1x64x120xbf16> to vector<64x120xbf16>
    %cst_153 = arith.constant dense<0.000000e+00> : vector<1x120xf32>
    %229 = tpu.matmul %226, %228, %cst_153 {dimension_numbers = #tpu.dot_dimension_numbers<[1], [0], [0], [1], [0, 0, 1, 1], [], []>} : vector<1x64xbf16>, vector<64x120xbf16>, vector<1x120xf32> -> vector<1x120xf32>
    %230 = arith.addf %225, %229 : vector<1x120xf32>
    %231 = arith.addf %230, %2 : vector<1x120xf32>
    %cst_154 = arith.constant 0.000000e+00 : f32
    %232 = vector.broadcast %cst_154 : f32 to vector<1x120xf32>
    %233 = arith.maximumf %231, %232 : vector<1x120xf32>
    %234 = arith.truncf %233 : vector<1x120xf32> to vector<1x120xbf16>
    %c0_155 = arith.constant 0 : index
    %c0_156 = arith.constant 0 : index
    %235 = vector.load %arg8[%c0_155, %c0_156] : memref<120x84xbf16, #tpu.memory_space<vmem>>, vector<120x84xbf16>
    %cst_157 = arith.constant dense<0.000000e+00> : vector<1x84xf32>
    %236 = tpu.matmul %234, %235, %cst_157 {dimension_numbers = #tpu.dot_dimension_numbers<[1], [0], [0], [1], [0, 0, 1, 1], [], []>} : vector<1x120xbf16>, vector<120x84xbf16>, vector<1x84xf32> -> vector<1x84xf32>
    %237 = arith.addf %236, %3 : vector<1x84xf32>
    %cst_158 = arith.constant 0.000000e+00 : f32
    %238 = vector.broadcast %cst_158 : f32 to vector<1x84xf32>
    %239 = arith.maximumf %237, %238 : vector<1x84xf32>
    %240 = arith.truncf %239 : vector<1x84xf32> to vector<1x84xbf16>
    %c0_159 = arith.constant 0 : index
    %c0_160 = arith.constant 0 : index
    %241 = vector.load %arg10[%c0_159, %c0_160] : memref<84x10xbf16, #tpu.memory_space<vmem>>, vector<84x10xbf16>
    %cst_161 = arith.constant dense<0.000000e+00> : vector<1x10xf32>
    %242 = tpu.matmul %240, %241, %cst_161 {dimension_numbers = #tpu.dot_dimension_numbers<[1], [0], [0], [1], [0, 0, 1, 1], [], []>} : vector<1x84xbf16>, vector<84x10xbf16>, vector<1x10xf32> -> vector<1x10xf32>
    %243 = arith.addf %242, %4 : vector<1x10xf32>
    %cst_162 = arith.constant dense<0xFF800000> : vector<1xf32>
    %244 = vector.multi_reduction <maximumf>, %243, %cst_162 [1] : vector<1x10xf32> to vector<1xf32>
    %245 = vector.shape_cast %244 : vector<1xf32> to vector<1x1xf32>
    %246 = vector.broadcast %245 : vector<1x1xf32> to vector<1x10xf32>
    %247 = arith.subf %243, %246 : vector<1x10xf32>
    %248 = math.exp %247 : vector<1x10xf32>
    %cst_163 = arith.constant dense<0.000000e+00> : vector<1xf32>
    %249 = vector.multi_reduction <add>, %248, %cst_163 [1] : vector<1x10xf32> to vector<1xf32>
    %250 = vector.shape_cast %249 : vector<1xf32> to vector<1x1xf32>
    %251 = math.log %250 : vector<1x1xf32>
    %252 = vector.broadcast %251 : vector<1x1xf32> to vector<1x10xf32>
    %253 = arith.subf %247, %252 : vector<1x10xf32>
    %c0_164 = arith.constant 0 : index
    %c0_165 = arith.constant 0 : index
    %c0_166 = arith.constant 0 : index
    %254 = vector.load %arg12[%c0_164, %c0_165, %c0_166] : memref<1x1x10xf32, #tpu.memory_space<vmem>>, vector<1x1x10xf32>
    %255 = vector.shape_cast %254 : vector<1x1x10xf32> to vector<1x10xf32>
    %256 = vector.shape_cast %253 : vector<1x10xf32> to vector<1x1x10xf32>
    tpu.vector_store %arg12[%c0_164, %c0_165, %c0_166], %256 {strides = array<i32>} : memref<1x1x10xf32, #tpu.memory_space<vmem>>, vector<1x1x10xf32>,
    return
  }
  func.func @transform_0(%arg0: i32) -> (i32, i32, i32, i32) {
    %c0_i32 = arith.constant 0 : i32
    %c0_i32_0 = arith.constant 0 : i32
    %c0_i32_1 = arith.constant 0 : i32
    %c0_i32_2 = arith.constant 0 : i32
    return %arg0, %c0_i32, %c0_i32_0, %c0_i32_1 : i32, i32, i32, i32
  }
  func.func @transform_1(%arg0: i32) -> (i32, i32, i32) {
    %c0_i32 = arith.constant 0 : i32
    %c0_i32_0 = arith.constant 0 : i32
    %c0_i32_1 = arith.constant 0 : i32
    %c0_i32_2 = arith.constant 0 : i32
    return %c0_i32, %c0_i32_0, %c0_i32_1 : i32, i32, i32
  }
  func.func @transform_2(%arg0: i32) -> (i32, i32) {
    %c0_i32 = arith.constant 0 : i32
    %c0_i32_0 = arith.constant 0 : i32
    %c0_i32_1 = arith.constant 0 : i32
    return %c0_i32, %c0_i32_0 : i32, i32
  }
  func.func @transform_3(%arg0: i32) -> (i32, i32, i32) {
    %c0_i32 = arith.constant 0 : i32
    %c0_i32_0 = arith.constant 0 : i32
    %c0_i32_1 = arith.constant 0 : i32
    %c0_i32_2 = arith.constant 0 : i32
    return %c0_i32, %c0_i32_0, %c0_i32_1 : i32, i32, i32
  }
  func.func @transform_4(%arg0: i32) -> (i32, i32) {
    %c0_i32 = arith.constant 0 : i32
    %c0_i32_0 = arith.constant 0 : i32
    %c0_i32_1 = arith.constant 0 : i32
    return %c0_i32, %c0_i32_0 : i32, i32
  }
  func.func @transform_5(%arg0: i32) -> (i32, i32, i32) {
    %c0_i32 = arith.constant 0 : i32
    %c0_i32_0 = arith.constant 0 : i32
    %c0_i32_1 = arith.constant 0 : i32
    %c0_i32_2 = arith.constant 0 : i32
    return %c0_i32, %c0_i32_0, %c0_i32_1 : i32, i32, i32
  }
  func.func @transform_6(%arg0: i32) -> (i32, i32) {
    %c0_i32 = arith.constant 0 : i32
    %c0_i32_0 = arith.constant 0 : i32
    %c0_i32_1 = arith.constant 0 : i32
    return %c0_i32, %c0_i32_0 : i32, i32
  }
  func.func @transform_7(%arg0: i32) -> (i32, i32) {
    %c0_i32 = arith.constant 0 : i32
    %c0_i32_0 = arith.constant 0 : i32
    %c0_i32_1 = arith.constant 0 : i32
    return %c0_i32, %c0_i32_0 : i32, i32
  }
  func.func @transform_8(%arg0: i32) -> (i32, i32) {
    %c0_i32 = arith.constant 0 : i32
    %c0_i32_0 = arith.constant 0 : i32
    %c0_i32_1 = arith.constant 0 : i32
    return %c0_i32, %c0_i32_0 : i32, i32
  }
  func.func @transform_9(%arg0: i32) -> (i32, i32) {
    %c0_i32 = arith.constant 0 : i32
    %c0_i32_0 = arith.constant 0 : i32
    %c0_i32_1 = arith.constant 0 : i32
    return %c0_i32, %c0_i32_0 : i32, i32
  }
  func.func @transform_10(%arg0: i32) -> (i32, i32) {
    %c0_i32 = arith.constant 0 : i32
    %c0_i32_0 = arith.constant 0 : i32
    %c0_i32_1 = arith.constant 0 : i32
    return %c0_i32, %c0_i32_0 : i32, i32
  }
  func.func @transform_11(%arg0: i32) -> (i32, i32, i32) {
    %c0_i32 = arith.constant 0 : i32
    %c0_i32_0 = arith.constant 0 : i32
    %c0_i32_1 = arith.constant 0 : i32
    return %arg0, %c0_i32, %c0_i32_0 : i32, i32, i32
  }
}

</mosaic_0001>

<llo_original>
// kernel: net_forward.1
$region0: #{net_forward.1}
  #allocation0 [shape = 'u32[]', space=smem, size = 0x4, offset = 0x4, fixed_abs, tag = 'smem constant byte address 0x4 - core index']
  #allocation1 [shape = 'u32[144,128]{1,0:T(1,128)}', space=vmem, size = 0x12000, scoped, tag = 'internal scratch']
  %s0 = inlined_call_operand.vmem [shape: bf16[2,4,7,28], index: 0, kind: input, shape index: {}]
  %s1 = inlined_call_operand.vmem [shape: bf16[5,28,144], index: 1, kind: input, shape index: {}]
  %s2 = inlined_call_operand.vmem [shape: f32[1,72], index: 2, kind: input, shape index: {}]
  %s3 = inlined_call_operand.vmem [shape: bf16[5,72,128], index: 3, kind: input, shape index: {}]
  %s4 = inlined_call_operand.vmem [shape: f32[1,64], index: 4, kind: input, shape index: {}]
  %s5 = inlined_call_operand.hbm [shape: bf16[4,64,120], index: 5, kind: input, shape index: {}]
  %s6 = inlined_call_operand.vmem [shape: f32[1,120], index: 6, kind: input, shape index: {}]
  %s7 = inlined_call_operand.vmem [shape: bf16[120,84], index: 7, kind: input, shape index: {}]
  %s8 = inlined_call_operand.vmem [shape: f32[1,84], index: 8, kind: input, shape index: {}]
  %s9 = inlined_call_operand.vmem [shape: bf16[84,10], index: 9, kind: input, shape index: {}]
  %s10 = inlined_call_operand.vmem [shape: f32[1,10], index: 10, kind: input, shape index: {}]
  %s11 = inlined_call_operand.hbm [shape: f32[2,1,10], index: 11, kind: output, shape index: {}]
  %s12 = sld [smem:[#allocation0]]
  $region81: #{net_forward.1} parent=0
    _
  %s14 = ssub.s32 1, %s12
  %s15 = scalar_select 0, %s14, %s12
  $region1: #{net_forward.1} parent=0
    #allocation2 [shape = 'u8[65536]{0}', space=vmem, size = 0x10000, scoped, tag = 'input window, operand 5, single buffered']
    #allocation3 [shape = 's32[2]{0}', space=sflag, size = 0x8, scoped, tag = 'scoped memory for net_forward.1']
    #allocation4 [shape = 's32[2]{0}', space=sflag, size = 0x8, scoped, tag = 'scoped memory for net_forward.1']
    #allocation5 [shape = 'u8[1024]{0}', space=vmem, size = 0x400, scoped, tag = 'output window, operand 0']
    %16 = vsyncpa [#allocation3], 0
    %17 = vsyncpa [#allocation4], 0
    %s18 = scalar_lea.sflag [#allocation4], 1
    %19 = vsyncpa %s18, 0
    loop: start=0, step=1, limit=4
    $region2: #{net_forward.1} parent=1 // loop_pre_header
      _
    $region3: #{net_forward.1} parent=1 // loop_header
      %s21 = sphi 0, %s25
      %p22 = scmp.ge.s32.totalorder %s21, 4
      %s31 = sphi 0, %s33
      %s34 = sphi 0, %s31
      %s35 = sphi 0, %s34
      %s51 = sphi 0, %s35
      %s55 = sphi 0, %s55
      %s57 = sphi 0, %s55
      %s58 = sphi 0, %s57
      %s72 = sphi 0, %s58
      %s76 = sphi 0, %s76
      %s78 = sphi 0, %s76
      %s79 = sphi 0, %s78
      %s93 = sphi 0, %s79
      %s97 = sphi 0, %s97
      %s99 = sphi 0, %s97
      %s100 = sphi 0, %s99
      %s114 = sphi 0, %s100
      %s118 = sphi 0, %s118
      %s120 = sphi 0, %s118
      %s121 = sphi 0, %s120
      %s135 = sphi 0, %s121
      %s139 = sphi 0, %s139
      %s141 = sphi 0, %s139
      %s142 = sphi 0, %s141
      %s156 = sphi 0, %s142
      %s160 = sphi 0, %s160
      %s162 = sphi 0, %s160
      %s163 = sphi 0, %s162
      %s177 = sphi 0, %s163
      %s181 = sphi 0, %s181
      %s183 = sphi 0, %s181
      %s184 = sphi 0, %s183
      %s198 = sphi 0, %s184
      %s202 = sphi 0, %s202
      %s204 = sphi 0, %s202
      %s205 = sphi 0, %s204
      %s219 = sphi 0, %s205
      %s223 = sphi 0, %s223
      %s225 = sphi 0, %s223
      %s226 = sphi 0, %s225
      %s240 = sphi 0, %s226
      %s244 = sphi 0, %s244
      %s246 = sphi 0, %s244
      %s247 = sphi 0, %s246
      %s261 = sphi 0, %s247
      %s267 = sphi 0, %s269
      %s270 = sphi 0, %s267
      %s271 = sphi 0, %s270
      %s287 = sphi 0, %s271
    $region4: #{net_forward.1} parent=1 // loop_header_branch
      %24 = sbr.rel (%p22) target = $region8
    $region5: #{net_forward.1} parent=1 // loop_body
      %s26 = ssub.s32 %s21, 1
      %s27 = ssub.s32 %s21, 2
      %s28 = sadd.s32 %s21, 1
      %s29 = ssub.s32 %s21, %s28
      %p30 = scmp.eq.s32.totalorder %s29, 0
      %s32 = sadd.s32 %s31, 1
      %s33 = scalar_select %p30, %s31, %s32
      %p36 = pneg %p30
      %p37 = scmp.eq.s32.totalorder %s21, 1
      %p38 = por %p36, %p37
      %p39 = scmp.ne.s32.totalorder %s31, %s34
      %p40 = scmp.eq.s32.totalorder %s21, 0
      %p41 = por %p39, %p40
      %p42 = scmp.ne.s32.totalorder %s31, %s34
      %p43 = scmp.eq.s32.totalorder %s26, 1
      %p44 = por %p42, %p43
      %p45 = scmp.ne.s32.totalorder %s34, %s35
      %p46 = scmp.eq.s32.totalorder %s26, 0
      %p47 = por %p45, %p46
      %p48 = scmp.ne.s32.totalorder %s34, %s35
      %p49 = scmp.eq.s32.totalorder %s27, 1
      %p50 = por %p48, %p49
      %p52 = scmp.ne.s32.totalorder %s35, %s51
      %p53 = scmp.eq.s32.totalorder %s27, 0
      %p54 = por %p52, %p53
      %s56 = sadd.s32 %s55, 1
      %p59 = scmp.eq.s32.totalorder %s21, 1
      %p60 = scmp.ne.s32.totalorder %s55, %s57
      %p61 = scmp.eq.s32.totalorder %s21, 0
      %p62 = por %p60, %p61
      %p63 = scmp.ne.s32.totalorder %s55, %s57
      %p64 = scmp.eq.s32.totalorder %s26, 1
      %p65 = por %p63, %p64
      %p66 = scmp.ne.s32.totalorder %s57, %s58
      %p67 = scmp.eq.s32.totalorder %s26, 0
      %p68 = por %p66, %p67
      %p69 = scmp.ne.s32.totalorder %s57, %s58
      %p70 = scmp.eq.s32.totalorder %s27, 1
      %p71 = por %p69, %p70
      %p73 = scmp.ne.s32.totalorder %s58, %s72
      %p74 = scmp.eq.s32.totalorder %s27, 0
      %p75 = por %p73, %p74
      %s77 = sadd.s32 %s76, 1
      %p80 = scmp.eq.s32.totalorder %s21, 1
      %p81 = scmp.ne.s32.totalorder %s76, %s78
      %p82 = scmp.eq.s32.totalorder %s21, 0
      %p83 = por %p81, %p82
      %p84 = scmp.ne.s32.totalorder %s76, %s78
      %p85 = scmp.eq.s32.totalorder %s26, 1
      %p86 = por %p84, %p85
      %p87 = scmp.ne.s32.totalorder %s78, %s79
      %p88 = scmp.eq.s32.totalorder %s26, 0
      %p89 = por %p87, %p88
      %p90 = scmp.ne.s32.totalorder %s78, %s79
      %p91 = scmp.eq.s32.totalorder %s27, 1
      %p92 = por %p90, %p91
      %p94 = scmp.ne.s32.totalorder %s79, %s93
      %p95 = scmp.eq.s32.totalorder %s27, 0
      %p96 = por %p94, %p95
      %s98 = sadd.s32 %s97, 1
      %p101 = scmp.eq.s32.totalorder %s21, 1
      %p102 = scmp.ne.s32.totalorder %s97, %s99
      %p103 = scmp.eq.s32.totalorder %s21, 0
      %p104 = por %p102, %p103
      %p105 = scmp.ne.s32.totalorder %s97, %s99
      %p106 = scmp.eq.s32.totalorder %s26, 1
      %p107 = por %p105, %p106
      %p108 = scmp.ne.s32.totalorder %s99, %s100
      %p109 = scmp.eq.s32.totalorder %s26, 0
      %p110 = por %p108, %p109
      %p111 = scmp.ne.s32.totalorder %s99, %s100
      %p112 = scmp.eq.s32.totalorder %s27, 1
      %p113 = por %p111, %p112
      %p115 = scmp.ne.s32.totalorder %s100, %s114
      %p116 = scmp.eq.s32.totalorder %s27, 0
      %p117 = por %p115, %p116
      %s119 = sadd.s32 %s118, 1
      %p122 = scmp.eq.s32.totalorder %s21, 1
      %p123 = scmp.ne.s32.totalorder %s118, %s120
      %p124 = scmp.eq.s32.totalorder %s21, 0
      %p125 = por %p123, %p124
      %p126 = scmp.ne.s32.totalorder %s118, %s120
      %p127 = scmp.eq.s32.totalorder %s26, 1
      %p128 = por %p126, %p127
      %p129 = scmp.ne.s32.totalorder %s120, %s121
      %p130 = scmp.eq.s32.totalorder %s26, 0
      %p131 = por %p129, %p130
      %p132 = scmp.ne.s32.totalorder %s120, %s121
      %p133 = scmp.eq.s32.totalorder %s27, 1
      %p134 = por %p132, %p133
      %p136 = scmp.ne.s32.totalorder %s121, %s135
      %p137 = scmp.eq.s32.totalorder %s27, 0
      %p138 = por %p136, %p137
      %s140 = sadd.s32 %s139, 1
      %p143 = scmp.eq.s32.totalorder %s21, 1
      %p144 = scmp.ne.s32.totalorder %s139, %s141
      %p145 = scmp.eq.s32.totalorder %s21, 0
      %p146 = por %p144, %p145
      %p147 = scmp.ne.s32.totalorder %s139, %s141
      %p148 = scmp.eq.s32.totalorder %s26, 1
      %p149 = por %p147, %p148
      %p150 = scmp.ne.s32.totalorder %s141, %s142
      %p151 = scmp.eq.s32.totalorder %s26, 0
      %p152 = por %p150, %p151
      %p153 = scmp.ne.s32.totalorder %s141, %s142
      %p154 = scmp.eq.s32.totalorder %s27, 1
      %p155 = por %p153, %p154
      %p157 = scmp.ne.s32.totalorder %s142, %s156
      %p158 = scmp.eq.s32.totalorder %s27, 0
      %p159 = por %p157, %p158
      %s161 = sadd.s32 %s160, 1
      %p164 = scmp.eq.s32.totalorder %s21, 1
      %p165 = scmp.ne.s32.totalorder %s160, %s162
      %p166 = scmp.eq.s32.totalorder %s21, 0
      %p167 = por %p165, %p166
      %p168 = scmp.ne.s32.totalorder %s160, %s162
      %p169 = scmp.eq.s32.totalorder %s26, 1
      %p170 = por %p168, %p169
      %p171 = scmp.ne.s32.totalorder %s162, %s163
      %p172 = scmp.eq.s32.totalorder %s26, 0
      %p173 = por %p171, %p172
      %p174 = scmp.ne.s32.totalorder %s162, %s163
      %p175 = scmp.eq.s32.totalorder %s27, 1
      %p176 = por %p174, %p175
      %p178 = scmp.ne.s32.totalorder %s163, %s177
      %p179 = scmp.eq.s32.totalorder %s27, 0
      %p180 = por %p178, %p179
      %s182 = sadd.s32 %s181, 1
      %p185 = scmp.eq.s32.totalorder %s21, 1
      %p186 = scmp.ne.s32.totalorder %s181, %s183
      %p187 = scmp.eq.s32.totalorder %s21, 0
      %p188 = por %p186, %p187
      %p189 = scmp.ne.s32.totalorder %s181, %s183
      %p190 = scmp.eq.s32.totalorder %s26, 1
      %p191 = por %p189, %p190
      %p192 = scmp.ne.s32.totalorder %s183, %s184
      %p193 = scmp.eq.s32.totalorder %s26, 0
      %p194 = por %p192, %p193
      %p195 = scmp.ne.s32.totalorder %s183, %s184
      %p196 = scmp.eq.s32.totalorder %s27, 1
      %p197 = por %p195, %p196
      %p199 = scmp.ne.s32.totalorder %s184, %s198
      %p200 = scmp.eq.s32.totalorder %s27, 0
      %p201 = por %p199, %p200
      %s203 = sadd.s32 %s202, 1
      %p206 = scmp.eq.s32.totalorder %s21, 1
      %p207 = scmp.ne.s32.totalorder %s202, %s204
      %p208 = scmp.eq.s32.totalorder %s21, 0
      %p209 = por %p207, %p208
      %p210 = scmp.ne.s32.totalorder %s202, %s204
      %p211 = scmp.eq.s32.totalorder %s26, 1
      %p212 = por %p210, %p211
      %p213 = scmp.ne.s32.totalorder %s204, %s205
      %p214 = scmp.eq.s32.totalorder %s26, 0
      %p215 = por %p213, %p214
      %p216 = scmp.ne.s32.totalorder %s204, %s205
      %p217 = scmp.eq.s32.totalorder %s27, 1
      %p218 = por %p216, %p217
      %p220 = scmp.ne.s32.totalorder %s205, %s219
      %p221 = scmp.eq.s32.totalorder %s27, 0
      %p222 = por %p220, %p221
      %s224 = sadd.s32 %s223, 1
      %p227 = scmp.eq.s32.totalorder %s21, 1
      %p228 = scmp.ne.s32.totalorder %s223, %s225
      %p229 = scmp.eq.s32.totalorder %s21, 0
      %p230 = por %p228, %p229
      %p231 = scmp.ne.s32.totalorder %s223, %s225
      %p232 = scmp.eq.s32.totalorder %s26, 1
      %p233 = por %p231, %p232
      %p234 = scmp.ne.s32.totalorder %s225, %s226
      %p235 = scmp.eq.s32.totalorder %s26, 0
      %p236 = por %p234, %p235
      %p237 = scmp.ne.s32.totalorder %s225, %s226
      %p238 = scmp.eq.s32.totalorder %s27, 1
      %p239 = por %p237, %p238
      %p241 = scmp.ne.s32.totalorder %s226, %s240
      %p242 = scmp.eq.s32.totalorder %s27, 0
      %p243 = por %p241, %p242
      %s245 = sadd.s32 %s244, 1
      %p248 = scmp.eq.s32.totalorder %s21, 1
      %p249 = scmp.ne.s32.totalorder %s244, %s246
      %p250 = scmp.eq.s32.totalorder %s21, 0
      %p251 = por %p249, %p250
      %p252 = scmp.ne.s32.totalorder %s244, %s246
      %p253 = scmp.eq.s32.totalorder %s26, 1
      %p254 = por %p252, %p253
      %p255 = scmp.ne.s32.totalorder %s246, %s247
      %p256 = scmp.eq.s32.totalorder %s26, 0
      %p257 = por %p255, %p256
      %p258 = scmp.ne.s32.totalorder %s246, %s247
      %p259 = scmp.eq.s32.totalorder %s27, 1
      %p260 = por %p258, %p259
      %p262 = scmp.ne.s32.totalorder %s247, %s261
      %p263 = scmp.eq.s32.totalorder %s27, 0
      %p264 = por %p262, %p263
      %s265 = ssub.s32 %s21, %s28
      %p266 = scmp.eq.s32.totalorder %s265, 0
      %s268 = sadd.s32 %s267, 1
      %s269 = scalar_select %p266, %s267, %s268
      %p272 = pneg %p266
      %p273 = scmp.eq.s32.totalorder %s21, 1
      %p274 = por %p272, %p273
      %p275 = scmp.ne.s32.totalorder %s267, %s270
      %p276 = scmp.eq.s32.totalorder %s21, 0
      %p277 = por %p275, %p276
      %p278 = scmp.ne.s32.totalorder %s267, %s270
      %p279 = scmp.eq.s32.totalorder %s26, 1
      %p280 = por %p278, %p279
      %p281 = scmp.ne.s32.totalorder %s270, %s271
      %p282 = scmp.eq.s32.totalorder %s26, 0
      %p283 = por %p281, %p282
      %p284 = scmp.ne.s32.totalorder %s270, %s271
      %p285 = scmp.eq.s32.totalorder %s27, 1
      %p286 = por %p284, %p285
      %p288 = scmp.ne.s32.totalorder %s271, %s287
      %p289 = scmp.eq.s32.totalorder %s27, 0
      %p290 = por %p288, %p289
      %p291 = scmp.le.s32.totalorder 1, %s21
      %p292 = scmp.lt.s32.totalorder %s21, 3
      %p293 = pnand %p291, %p292
      %p294 = pneg %p293
      // Predicated region
      $region9: #{net_forward.1} parent=5 // pred_check
        _
      $region10: #{net_forward.1} parent=5 // pred_check_branch
        %296 = sbr.rel (%p293) target = $region12
      $region11: #{net_forward.1} parent=5 // pred_region
        %s297 = ssub.s32 %s21, 1
        // Predicated region
        $region13: #{net_forward.1} parent=11 // pred_check
          %p298 = pneg %p68
        $region14: #{net_forward.1} parent=11 // pred_check_branch
          %300 = sbr.rel (%p298) target = $region16
        $region15: #{net_forward.1} parent=11 // pred_region
          _
        $region16: #{net_forward.1} parent=11 // pred_fallthru
          _
        // Predicated region
        $region17: #{net_forward.1} parent=11 // pred_check
          %p301 = pneg %p89
        $region18: #{net_forward.1} parent=11 // pred_check_branch
          %303 = sbr.rel (%p301) target = $region20
        $region19: #{net_forward.1} parent=11 // pred_region
          _
        $region20: #{net_forward.1} parent=11 // pred_fallthru
          _
        // Predicated region
        $region21: #{net_forward.1} parent=11 // pred_check
          %p304 = pneg %p110
        $region22: #{net_forward.1} parent=11 // pred_check_branch
          %306 = sbr.rel (%p304) target = $region24
        $region23: #{net_forward.1} parent=11 // pred_region
          _
        $region24: #{net_forward.1} parent=11 // pred_fallthru
          _
        // Predicated region
        $region25: #{net_forward.1} parent=11 // pred_check
          %p307 = pneg %p131
        $region26: #{net_forward.1} parent=11 // pred_check_branch
          %309 = sbr.rel (%p307) target = $region28
        $region27: #{net_forward.1} parent=11 // pred_region
          _
        $region28: #{net_forward.1} parent=11 // pred_fallthru
          _
        // Predicated region
        $region29: #{net_forward.1} parent=11 // pred_check
          %p310 = pneg %p152
        $region30: #{net_forward.1} parent=11 // pred_check_branch
          %312 = sbr.rel (%p310) target = $region32
        $region31: #{net_forward.1} parent=11 // pred_region
          %s314 = ssub.s32 2048, 2048
          %315 = vsyncadd [#allocation3], %s314
          %s316 = sshll.u32 [#allocation2], 4
          %s317 = int_to_ptr.vmem [resolvable:$true] %s316
          %322 = dma.hbm_to_vmem [thread:$0]  %s5, 2048, %s317, [#allocation3], 64, 64, 4
        $region32: #{net_forward.1} parent=11 // pred_fallthru
          _
        // Predicated region
        $region33: #{net_forward.1} parent=11 // pred_check
          %p323 = pneg %p173
        $region34: #{net_forward.1} parent=11 // pred_check_branch
          %325 = sbr.rel (%p323) target = $region36
        $region35: #{net_forward.1} parent=11 // pred_region
          _
        $region36: #{net_forward.1} parent=11 // pred_fallthru
          _
        // Predicated region
        $region37: #{net_forward.1} parent=11 // pred_check
          %p326 = pneg %p194
        $region38: #{net_forward.1} parent=11 // pred_check_branch
          %328 = sbr.rel (%p326) target = $region40
        $region39: #{net_forward.1} parent=11 // pred_region
          _
        $region40: #{net_forward.1} parent=11 // pred_fallthru
          _
        // Predicated region
        $region41: #{net_forward.1} parent=11 // pred_check
          %p329 = pneg %p215
        $region42: #{net_forward.1} parent=11 // pred_check_branch
          %331 = sbr.rel (%p329) target = $region44
        $region43: #{net_forward.1} parent=11 // pred_region
          _
        $region44: #{net_forward.1} parent=11 // pred_fallthru
          _
        // Predicated region
        $region45: #{net_forward.1} parent=11 // pred_check
          %p332 = pneg %p236
        $region46: #{net_forward.1} parent=11 // pred_check_branch
          %334 = sbr.rel (%p332) target = $region48
        $region47: #{net_forward.1} parent=11 // pred_region
          _
        $region48: #{net_forward.1} parent=11 // pred_fallthru
          _
        // Predicated region
        $region49: #{net_forward.1} parent=11 // pred_check
          %p335 = pneg %p257
        $region50: #{net_forward.1} parent=11 // pred_check_branch
          %337 = sbr.rel (%p335) target = $region52
        $region51: #{net_forward.1} parent=11 // pred_region
          _
        $region52: #{net_forward.1} parent=11 // pred_fallthru
          _
      $region12: #{net_forward.1} parent=5 // pred_fallthru
        _
      %p338 = scmp.lt.s32.totalorder %s21, 2
      // Predicated region
      $region53: #{net_forward.1} parent=5 // pred_check
        %p339 = pneg %p338
      $region54: #{net_forward.1} parent=5 // pred_check_branch
        %341 = sbr.rel (%p339) target = $region56
      $region55: #{net_forward.1} parent=5 // pred_region
        // Predicated region
        $region57: #{net_forward.1} parent=55 // pred_check
          %p342 = pneg %p41
        $region58: #{net_forward.1} parent=55 // pred_check_branch
          %344 = sbr.rel (%p342) target = $region60
        $region59: #{net_forward.1} parent=55 // pred_region
          %p345 = scmp.lt.s32.totalorder %s21, 1
          %s346 = scalar_select %p345, %s21, 1
          %s347 = smul.addr %s346, 4
          %s348 = smul.addr %s347, 4
          %s349 = scalar_lea.vmem %s0, %s348
        $region60: #{net_forward.1} parent=55 // pred_fallthru
          _
      $region56: #{net_forward.1} parent=5 // pred_fallthru
        _
      %p350 = scmp.le.s32.totalorder 1, %s21
      %p351 = scmp.lt.s32.totalorder %s21, 3
      %p352 = pnand %p350, %p351
      %p353 = pneg %p352
      // Predicated region
      $region61: #{net_forward.1} parent=5 // pred_check
        _
      $region62: #{net_forward.1} parent=5 // pred_check_branch
        %355 = sbr.rel (%p352) target = $region64
      $region63: #{net_forward.1} parent=5 // pred_region
        %s356 = ssub.s32 %s21, 1
        // Predicated region
        $region65: #{net_forward.1} parent=63 // pred_check
          %p357 = pneg %p152
        $region66: #{net_forward.1} parent=63 // pred_check_branch
          %359 = sbr.rel (%p357) target = $region68
        $region67: #{net_forward.1} parent=63 // pred_region
          %360 = dma.done [#allocation3], 2048
        $region68: #{net_forward.1} parent=63 // pred_fallthru
          _
        %p361 = scmp.lt.s32.totalorder %s26, 1
        %s362 = scalar_select %p361, %s26, 1
        %s363 = smul.addr %s362, 4
        %s364 = smul.addr %s363, 4
        %s365 = scalar_lea.vmem %s0, %s364
        %p366 = pneg %p47
        %p367 = pneg %p44
        %p368 = pneg %p68
        %p369 = pneg %p65
        %p370 = pneg %p89
        %p371 = pneg %p86
        %p372 = pneg %p110
        %p373 = pneg %p107
        %p374 = pneg %p131
        %p375 = pneg %p128
        %p376 = pneg %p152
        %p377 = pneg %p149
        %p378 = pneg %p173
        %p379 = pneg %p170
        %p380 = pneg %p194
        %p381 = pneg %p191
        %p382 = pneg %p215
        %p383 = pneg %p212
        %p384 = pneg %p236
        %p385 = pneg %p233
        %p386 = pneg %p257
        %p387 = pneg %p254
        %p388 = pneg %p283
        %p389 = pneg %p280
        %s390 = sand.u32 %s270, 1
        %s391 = scalar_lea.sflag [#allocation4], %s390
        %s392 = sand.u32 %s270, 1
        %s393 = scalar_lea.vmem [#allocation5], %s392
        %p394 = scmp.lt.s32.totalorder %s26, 1
        %s395 = scalar_select %p394, %s26, 1
        %s396 = smul.addr %s395, 4
        %s397 = smul.addr %s396, 4
        %s398 = scalar_lea.vmem %s0, %s397
        %v400 = vld [vmem:[%s2] sm:$0x1]
        %v401 = vld [vmem:[%s4] sm:$0x1]
        %v402 = vld [vmem:[%s6] sm:$0x1]
        %v403 = vld [vmem:[%s8] sm:$0x1]
        %v404 = vld [vmem:[%s10] sm:$0x1]
        %v405 = vld [vmem:[%s398] sm:$0xf]
        %v406 = vld [vmem:[%s398 + $0x4] sm:$0xf]
        %v407 = vld [vmem:[%s398 + $0x8] sm:$0xf]
        %v408 = vld [vmem:[%s398 + $0xc] sm:$0xf]
        %v409 = vld [vmem:[%s1] sm:$0xff]
        %v410 = vld [vmem:[%s1 + $0x8] sm:$0xff]
        %v411 = vld [vmem:[%s1 + $0x10] sm:$0xff]
        %v412 = vld [vmem:[%s1 + $0x18] sm:$0x33]
        %s413 = scalar_lea.vmem %s1, 32
        %v414 = vld [vmem:[%s413] sm:$0xff]
        %v415 = vld [vmem:[%s413 + $0x8] sm:$0xff]
        %v416 = vld [vmem:[%s413 + $0x10] sm:$0xff]
        %v417 = vld [vmem:[%s413 + $0x18] sm:$0x33]
        %v422 = vunpack.c.l.b16 %v414
        %v423 = vunpack.c.h.b16 %v414
        %v424 = vunpack.c.l.b16 %v415
        %v425 = vunpack.c.h.b16 %v415
        %v426 = vunpack.c.l.b16 %v416
        %v427 = vunpack.c.h.b16 %v416
        %v428 = vunpack.c.l.b16 %v417
        %v429 = vunpack.c.h.b16 %v417
        %v430 = vpack.c.b16 %v424, %v422
        %v431 = vpack.c.b16 %v425, %v423
        %v432 = vpack.c.b16 %v428, %v426
        %v433 = vpack.c.b16 %v429, %v427
        %vm436 = vcmask 228352
        %v438 = vsel %vm436, %v406, 0
        %vm440 = vcmask 1045504
        %v442 = vsel %vm440, %v432, 0
        %v445 = vsel %vm440, %v433, 0
        %447 = vmatprep.subr.bf16.mxu0 %v431
        %448 = vmatpush1.bf16.msra.mxu0 %v430
        %449 = vmatprep.subr.bf16.mxu0 %v445
        %450 = vmatpush1.bf16.msra.mxu0 %v442
        %451 = vmatprep.subr.bf16.mxu0 0
        %452 = vmatpush1.bf16.msra.mxu0 0
        %453 = vmatprep.subr.bf16.mxu0 0
        %454 = vmatpush1.bf16.msra.mxu0 0
        %455 = vmatprep.subr.bf16.mxu0 0
        %456 = vmatpush1.bf16.msra.mxu0 0
        %457 = vmatprep.subr.bf16.mxu0 0
        %458 = vmatpush1.bf16.msra.mxu0 0
        %459 = vmatprep.subr.bf16.mxu0 0
        %460 = vmatpush1.bf16.msra.mxu0 0
        %461 = vmatprep.subr.bf16.mxu0 0
        %462 = vmatpush1.bf16.msra.mxu0 0
        %463 = vmatprep.subr.bf16.mxu0 0
        %464 = vmatpush1.bf16.msra.mxu0 0
        %465 = vmatprep.subr.bf16.mxu0 0
        %466 = vmatpush1.bf16.msra.mxu0 0
        %467 = vmatprep.subr.bf16.mxu0 0
        %468 = vmatpush1.bf16.msra.mxu0 0
        %469 = vmatprep.subr.bf16.mxu0 0
        %470 = vmatpush1.bf16.msra.mxu0 0
        %471 = vmatprep.subr.bf16.mxu0 0
        %472 = vmatpush1.bf16.msra.mxu0 0
        %473 = vmatprep.subr.bf16.mxu0 0
        %474 = vmatpush1.bf16.msra.mxu0 0
        %475 = vmatprep.subr.bf16.mxu0 0
        %476 = vmatpush1.bf16.msra.mxu0 0
        %477 = vmatprep.subr.bf16.mxu0 0
        %478 = vmatpush1.bf16.msra.mxu0 0
        %479 = vmatprep.mubr.bf16.mxu0 0
        %480 = vmatmul.mubr.bf16.gmra.mrb[0].mxu0 %v438
        %v481 = vpop.f32.mrb[0].mxu0
        %v482 = vadd.f32 0.0, %v481
        %v483 = vpop.f32.mrb[0].mxu0
        %v484 = vadd.f32 0.0, %v483
        %v485 = vpop.f32.mrb[0].mxu0
        %v486 = vpop.f32.mrb[0].mxu0
        %487 = vdwg.mxu0
        %v492 = vunpack.c.l.b16 %v409
        %v493 = vunpack.c.h.b16 %v409
        %v494 = vunpack.c.l.b16 %v410
        %v495 = vunpack.c.h.b16 %v410
        %v496 = vunpack.c.l.b16 %v411
        %v497 = vunpack.c.h.b16 %v411
        %v498 = vunpack.c.l.b16 %v412
        %v499 = vunpack.c.h.b16 %v412
        %v500 = vpack.c.b16 %v494, %v492
        %v501 = vpack.c.b16 %v495, %v493
        %v502 = vpack.c.b16 %v498, %v496
        %v503 = vpack.c.b16 %v499, %v497
        %v507 = vsel %vm436, %v405, 0
        %v510 = vsel %vm440, %v502, 0
        %v513 = vsel %vm440, %v503, 0
        %515 = vmatprep.subr.bf16.mxu0 %v501
        %516 = vmatpush1.bf16.msra.mxu0 %v500
        %517 = vmatprep.subr.bf16.mxu0 %v513
        %518 = vmatpush1.bf16.msra.mxu0 %v510
        %519 = vmatprep.subr.bf16.mxu0 0
        %520 = vmatpush1.bf16.msra.mxu0 0
        %521 = vmatprep.subr.bf16.mxu0 0
        %522 = vmatpush1.bf16.msra.mxu0 0
        %523 = vmatprep.subr.bf16.mxu0 0
        %524 = vmatpush1.bf16.msra.mxu0 0
        %525 = vmatprep.subr.bf16.mxu0 0
        %526 = vmatpush1.bf16.msra.mxu0 0
        %527 = vmatprep.subr.bf16.mxu0 0
        %528 = vmatpush1.bf16.msra.mxu0 0
        %529 = vmatprep.subr.bf16.mxu0 0
        %530 = vmatpush1.bf16.msra.mxu0 0
        %531 = vmatprep.subr.bf16.mxu0 0
        %532 = vmatpush1.bf16.msra.mxu0 0
        %533 = vmatprep.subr.bf16.mxu0 0
        %534 = vmatpush1.bf16.msra.mxu0 0
        %535 = vmatprep.subr.bf16.mxu0 0
        %536 = vmatpush1.bf16.msra.mxu0 0
        %537 = vmatprep.subr.bf16.mxu0 0
        %538 = vmatpush1.bf16.msra.mxu0 0
        %539 = vmatprep.subr.bf16.mxu0 0
        %540 = vmatpush1.bf16.msra.mxu0 0
        %541 = vmatprep.subr.bf16.mxu0 0
        %542 = vmatpush1.bf16.msra.mxu0 0
        %543 = vmatprep.subr.bf16.mxu0 0
        %544 = vmatpush1.bf16.msra.mxu0 0
        %545 = vmatprep.subr.bf16.mxu0 0
        %546 = vmatpush1.bf16.msra.mxu0 0
        %547 = vmatprep.mubr.bf16.mxu0 0
        %548 = vmatmul.mubr.bf16.gmra.mrb[0].mxu0 %v507
        %v549 = vpop.f32.mrb[0].mxu0
        %v550 = vadd.f32 %v482, %v549
        %v551 = vpop.f32.mrb[0].mxu0
        %v552 = vadd.f32 %v484, %v551
        %v553 = vpop.f32.mrb[0].mxu0
        %v554 = vpop.f32.mrb[0].mxu0
        %555 = vdwg.mxu0
        %s556 = scalar_lea.vmem %s1, 64
        %v557 = vld [vmem:[%s556] sm:$0xff]
        %v558 = vld [vmem:[%s556 + $0x8] sm:$0xff]
        %v559 = vld [vmem:[%s556 + $0x10] sm:$0xff]
        %v560 = vld [vmem:[%s556 + $0x18] sm:$0x33]
        %v565 = vunpack.c.l.b16 %v557
        %v566 = vunpack.c.h.b16 %v557
        %v567 = vunpack.c.l.b16 %v558
        %v568 = vunpack.c.h.b16 %v558
        %v569 = vunpack.c.l.b16 %v559
        %v570 = vunpack.c.h.b16 %v559
        %v571 = vunpack.c.l.b16 %v560
        %v572 = vunpack.c.h.b16 %v560
        %v573 = vpack.c.b16 %v567, %v565
        %v574 = vpack.c.b16 %v568, %v566
        %v575 = vpack.c.b16 %v571, %v569
        %v576 = vpack.c.b16 %v572, %v570
        %v580 = vsel %vm436, %v407, 0
        %v583 = vsel %vm440, %v575, 0
        %v586 = vsel %vm440, %v576, 0
        %588 = vmatprep.subr.bf16.mxu0 %v574
        %589 = vmatpush1.bf16.msra.mxu0 %v573
        %590 = vmatprep.subr.bf16.mxu0 %v586
        %591 = vmatpush1.bf16.msra.mxu0 %v583
        %592 = vmatprep.subr.bf16.mxu0 0
        %593 = vmatpush1.bf16.msra.mxu0 0
        %594 = vmatprep.subr.bf16.mxu0 0
        %595 = vmatpush1.bf16.msra.mxu0 0
        %596 = vmatprep.subr.bf16.mxu0 0
        %597 = vmatpush1.bf16.msra.mxu0 0
        %598 = vmatprep.subr.bf16.mxu0 0
        %599 = vmatpush1.bf16.msra.mxu0 0
        %600 = vmatprep.subr.bf16.mxu0 0
        %601 = vmatpush1.bf16.msra.mxu0 0
        %602 = vmatprep.subr.bf16.mxu0 0
        %603 = vmatpush1.bf16.msra.mxu0 0
        %604 = vmatprep.subr.bf16.mxu0 0
        %605 = vmatpush1.bf16.msra.mxu0 0
        %606 = vmatprep.subr.bf16.mxu0 0
        %607 = vmatpush1.bf16.msra.mxu0 0
        %608 = vmatprep.subr.bf16.mxu0 0
        %609 = vmatpush1.bf16.msra.mxu0 0
        %610 = vmatprep.subr.bf16.mxu0 0
        %611 = vmatpush1.bf16.msra.mxu0 0
        %612 = vmatprep.subr.bf16.mxu0 0
        %613 = vmatpush1.bf16.msra.mxu0 0
        %614 = vmatprep.subr.bf16.mxu0 0
        %615 = vmatpush1.bf16.msra.mxu0 0
        %616 = vmatprep.subr.bf16.mxu0 0
        %617 = vmatpush1.bf16.msra.mxu0 0
        %618 = vmatprep.subr.bf16.mxu0 0
        %619 = vmatpush1.bf16.msra.mxu0 0
        %620 = vmatprep.mubr.bf16.mxu0 0
        %621 = vmatmul.mubr.bf16.gmra.mrb[0].mxu0 %v580
        %v622 = vpop.f32.mrb[0].mxu0
        %v623 = vadd.f32 0.0, %v622
        %v624 = vpop.f32.mrb[0].mxu0
        %v625 = vadd.f32 0.0, %v624
        %v626 = vpop.f32.mrb[0].mxu0
        %v627 = vpop.f32.mrb[0].mxu0
        %628 = vdwg.mxu0
        %v629 = vadd.f32 %v550, %v623
        %v630 = vadd.f32 %v552, %v625
        %s631 = scalar_lea.vmem %s1, 96
        %v632 = vld [vmem:[%s631] sm:$0xff]
        %v633 = vld [vmem:[%s631 + $0x8] sm:$0xff]
        %v634 = vld [vmem:[%s631 + $0x10] sm:$0xff]
        %v635 = vld [vmem:[%s631 + $0x18] sm:$0x33]
        %v640 = vunpack.c.l.b16 %v632
        %v641 = vunpack.c.h.b16 %v632
        %v642 = vunpack.c.l.b16 %v633
        %v643 = vunpack.c.h.b16 %v633
        %v644 = vunpack.c.l.b16 %v634
        %v645 = vunpack.c.h.b16 %v634
        %v646 = vunpack.c.l.b16 %v635
        %v647 = vunpack.c.h.b16 %v635
        %v648 = vpack.c.b16 %v642, %v640
        %v649 = vpack.c.b16 %v643, %v641
        %v650 = vpack.c.b16 %v646, %v644
        %v651 = vpack.c.b16 %v647, %v645
        %v655 = vsel %vm436, %v408, 0
        %v658 = vsel %vm440, %v650, 0
        %v661 = vsel %vm440, %v651, 0
        %663 = vmatprep.subr.bf16.mxu0 %v649
        %664 = vmatpush1.bf16.msra.mxu0 %v648
        %665 = vmatprep.subr.bf16.mxu0 %v661
        %666 = vmatpush1.bf16.msra.mxu0 %v658
        %667 = vmatprep.subr.bf16.mxu0 0
        %668 = vmatpush1.bf16.msra.mxu0 0
        %669 = vmatprep.subr.bf16.mxu0 0
        %670 = vmatpush1.bf16.msra.mxu0 0
        %671 = vmatprep.subr.bf16.mxu0 0
        %672 = vmatpush1.bf16.msra.mxu0 0
        %673 = vmatprep.subr.bf16.mxu0 0
        %674 = vmatpush1.bf16.msra.mxu0 0
        %675 = vmatprep.subr.bf16.mxu0 0
        %676 = vmatpush1.bf16.msra.mxu0 0
        %677 = vmatprep.subr.bf16.mxu0 0
        %678 = vmatpush1.bf16.msra.mxu0 0
        %679 = vmatprep.subr.bf16.mxu0 0
        %680 = vmatpush1.bf16.msra.mxu0 0
        %681 = vmatprep.subr.bf16.mxu0 0
        %682 = vmatpush1.bf16.msra.mxu0 0
        %683 = vmatprep.subr.bf16.mxu0 0
        %684 = vmatpush1.bf16.msra.mxu0 0
        %685 = vmatprep.subr.bf16.mxu0 0
        %686 = vmatpush1.bf16.msra.mxu0 0
        %687 = vmatprep.subr.bf16.mxu0 0
        %688 = vmatpush1.bf16.msra.mxu0 0
        %689 = vmatprep.subr.bf16.mxu0 0
        %690 = vmatpush1.bf16.msra.mxu0 0
        %691 = vmatprep.subr.bf16.mxu0 0
        %692 = vmatpush1.bf16.msra.mxu0 0
        %693 = vmatprep.subr.bf16.mxu0 0
        %694 = vmatpush1.bf16.msra.mxu0 0
        %695 = vmatprep.mubr.bf16.mxu0 0
        %696 = vmatmul.mubr.bf16.gmra.mrb[0].mxu0 %v655
        %v697 = vpop.f32.mrb[0].mxu0
        %v698 = vadd.f32 0.0, %v697
        %v699 = vpop.f32.mrb[0].mxu0
        %v700 = vadd.f32 0.0, %v699
        %v701 = vpop.f32.mrb[0].mxu0
        %v702 = vpop.f32.mrb[0].mxu0
        %703 = vdwg.mxu0
        %v704 = vadd.f32 %v629, %v698
        %v705 = vadd.f32 %v630, %v700
        %s706 = scalar_lea.vmem %s1, 128
        %v707 = vld [vmem:[%s706] sm:$0xff]
        %v708 = vld [vmem:[%s706 + $0x8] sm:$0xff]
        %v709 = vld [vmem:[%s706 + $0x10] sm:$0xff]
        %v710 = vld [vmem:[%s706 + $0x18] sm:$0x33]
        %v712 = vunpack.c.l.b16 %v405
        %v713 = vpack.c.b16 %v712, %v712
        %v715 = vshrl.u32 %v713, 16
        %v717 = vshll.u32 %v713, 16
        %v719 = vrot.slane %v717, 1
        %v720 = vor.u32 %v715, %v719
        %v725 = vunpack.c.l.b16 %v707
        %v726 = vunpack.c.h.b16 %v707
        %v727 = vunpack.c.l.b16 %v708
        %v728 = vunpack.c.h.b16 %v708
        %v729 = vunpack.c.l.b16 %v709
        %v730 = vunpack.c.h.b16 %v709
        %v731 = vunpack.c.l.b16 %v710
        %v732 = vunpack.c.h.b16 %v710
        %v733 = vpack.c.b16 %v727, %v725
        %v734 = vpack.c.b16 %v728, %v726
        %v735 = vpack.c.b16 %v731, %v729
        %v736 = vpack.c.b16 %v732, %v730
        %v740 = vsel %vm436, %v720, 0
        %v743 = vsel %vm440, %v735, 0
        %v746 = vsel %vm440, %v736, 0
        %748 = vmatprep.subr.bf16.mxu0 %v734
        %749 = vmatpush1.bf16.msra.mxu0 %v733
        %750 = vmatprep.subr.bf16.mxu0 %v746
        %751 = vmatpush1.bf16.msra.mxu0 %v743
        %752 = vmatprep.subr.bf16.mxu0 0
        %753 = vmatpush1.bf16.msra.mxu0 0
        %754 = vmatprep.subr.bf16.mxu0 0
        %755 = vmatpush1.bf16.msra.mxu0 0
        %756 = vmatprep.subr.bf16.mxu0 0
        %757 = vmatpush1.bf16.msra.mxu0 0
        %758 = vmatprep.subr.bf16.mxu0 0
        %759 = vmatpush1.bf16.msra.mxu0 0
        %760 = vmatprep.subr.bf16.mxu0 0
        %761 = vmatpush1.bf16.msra.mxu0 0
        %762 = vmatprep.subr.bf16.mxu0 0
        %763 = vmatpush1.bf16.msra.mxu0 0
        %764 = vmatprep.subr.bf16.mxu0 0
        %765 = vmatpush1.bf16.msra.mxu0 0
        %766 = vmatprep.subr.bf16.mxu0 0
        %767 = vmatpush1.bf16.msra.mxu0 0
        %768 = vmatprep.subr.bf16.mxu0 0
        %769 = vmatpush1.bf16.msra.mxu0 0
        %770 = vmatprep.subr.bf16.mxu0 0
        %771 = vmatpush1.bf16.msra.mxu0 0
        %772 = vmatprep.subr.bf16.mxu0 0
        %773 = vmatpush1.bf16.msra.mxu0 0
        %774 = vmatprep.subr.bf16.mxu0 0
        %775 = vmatpush1.bf16.msra.mxu0 0
        %776 = vmatprep.subr.bf16.mxu0 0
        %777 = vmatpush1.bf16.msra.mxu0 0
        %778 = vmatprep.subr.bf16.mxu0 0
        %779 = vmatpush1.bf16.msra.mxu0 0
        %780 = vmatprep.mubr.bf16.mxu0 0
        %781 = vmatmul.mubr.bf16.gmra.mrb[0].mxu0 %v740
        %v782 = vpop.f32.mrb[0].mxu0
        %v783 = vadd.f32 0.0, %v782
        %v784 = vpop.f32.mrb[0].mxu0
        %v785 = vadd.f32 0.0, %v784
        %v786 = vpop.f32.mrb[0].mxu0
        %v787 = vpop.f32.mrb[0].mxu0
        %788 = vdwg.mxu0
        %v789 = vadd.f32 %v704, %v783
        %v790 = vadd.f32 %v705, %v785
        %791 = vmatprep.subr.bf16.mxu0 %v431
        %792 = vmatpush1.bf16.msra.mxu0 %v430
        %793 = vmatprep.subr.bf16.mxu0 %v445
        %794 = vmatpush1.bf16.msra.mxu0 %v442
        %795 = vmatprep.subr.bf16.mxu0 0
        %796 = vmatpush1.bf16.msra.mxu0 0
        %797 = vmatprep.subr.bf16.mxu0 0
        %798 = vmatpush1.bf16.msra.mxu0 0
        %799 = vmatprep.subr.bf16.mxu0 0
        %800 = vmatpush1.bf16.msra.mxu0 0
        %801 = vmatprep.subr.bf16.mxu0 0
        %802 = vmatpush1.bf16.msra.mxu0 0
        %803 = vmatprep.subr.bf16.mxu0 0
        %804 = vmatpush1.bf16.msra.mxu0 0
        %805 = vmatprep.subr.bf16.mxu0 0
        %806 = vmatpush1.bf16.msra.mxu0 0
        %807 = vmatprep.subr.bf16.mxu0 0
        %808 = vmatpush1.bf16.msra.mxu0 0
        %809 = vmatprep.subr.bf16.mxu0 0
        %810 = vmatpush1.bf16.msra.mxu0 0
        %811 = vmatprep.subr.bf16.mxu0 0
        %812 = vmatpush1.bf16.msra.mxu0 0
        %813 = vmatprep.subr.bf16.mxu0 0
        %814 = vmatpush1.bf16.msra.mxu0 0
        %815 = vmatprep.subr.bf16.mxu0 0
        %816 = vmatpush1.bf16.msra.mxu0 0
        %817 = vmatprep.subr.bf16.mxu0 0
        %818 = vmatpush1.bf16.msra.mxu0 0
        %819 = vmatprep.subr.bf16.mxu0 0
        %820 = vmatpush1.bf16.msra.mxu0 0
        %821 = vmatprep.subr.bf16.mxu0 0
        %822 = vmatpush1.bf16.msra.mxu0 0
        %823 = vmatprep.mubr.bf16.mxu0 0
        %824 = vmatmul.mubr.bf16.gmra.mrb[0].mxu0 %v580
        %v825 = vpop.f32.mrb[0].mxu0
        %v826 = vadd.f32 0.0, %v825
        %v827 = vpop.f32.mrb[0].mxu0
        %v828 = vadd.f32 0.0, %v827
        %v829 = vpop.f32.mrb[0].mxu0
        %v830 = vpop.f32.mrb[0].mxu0
        %831 = vdwg.mxu0
        %832 = vmatprep.subr.bf16.mxu0 %v501
        %833 = vmatpush1.bf16.msra.mxu0 %v500
        %834 = vmatprep.subr.bf16.mxu0 %v513
        %835 = vmatpush1.bf16.msra.mxu0 %v510
        %836 = vmatprep.subr.bf16.mxu0 0
        %837 = vmatpush1.bf16.msra.mxu0 0
        %838 = vmatprep.subr.bf16.mxu0 0
        %839 = vmatpush1.bf16.msra.mxu0 0
        %840 = vmatprep.subr.bf16.mxu0 0
        %841 = vmatpush1.bf16.msra.mxu0 0
        %842 = vmatprep.subr.bf16.mxu0 0
        %843 = vmatpush1.bf16.msra.mxu0 0
        %844 = vmatprep.subr.bf16.mxu0 0
        %845 = vmatpush1.bf16.msra.mxu0 0
        %846 = vmatprep.subr.bf16.mxu0 0
        %847 = vmatpush1.bf16.msra.mxu0 0
        %848 = vmatprep.subr.bf16.mxu0 0
        %849 = vmatpush1.bf16.msra.mxu0 0
        %850 = vmatprep.subr.bf16.mxu0 0
        %851 = vmatpush1.bf16.msra.mxu0 0
        %852 = vmatprep.subr.bf16.mxu0 0
        %853 = vmatpush1.bf16.msra.mxu0 0
        %854 = vmatprep.subr.bf16.mxu0 0
        %855 = vmatpush1.bf16.msra.mxu0 0
        %856 = vmatprep.subr.bf16.mxu0 0
        %857 = vmatpush1.bf16.msra.mxu0 0
        %858 = vmatprep.subr.bf16.mxu0 0
        %859 = vmatpush1.bf16.msra.mxu0 0
        %860 = vmatprep.subr.bf16.mxu0 0
        %861 = vmatpush1.bf16.msra.mxu0 0
        %862 = vmatprep.subr.bf16.mxu0 0
        %863 = vmatpush1.bf16.msra.mxu0 0
        %864 = vmatprep.mubr.bf16.mxu0 0
        %865 = vmatmul.mubr.bf16.gmra.mrb[0].mxu0 %v438
        %v866 = vpop.f32.mrb[0].mxu0
        %v867 = vadd.f32 %v826, %v866
        %v868 = vpop.f32.mrb[0].mxu0
        %v869 = vadd.f32 %v828, %v868
        %v870 = vpop.f32.mrb[0].mxu0
        %v871 = vpop.f32.mrb[0].mxu0
        %872 = vdwg.mxu0
        %873 = vmatprep.subr.bf16.mxu0 %v574
        %874 = vmatpush1.bf16.msra.mxu0 %v573
        %875 = vmatprep.subr.bf16.mxu0 %v586
        %876 = vmatpush1.bf16.msra.mxu0 %v583
        %877 = vmatprep.subr.bf16.mxu0 0
        %878 = vmatpush1.bf16.msra.mxu0 0
        %879 = vmatprep.subr.bf16.mxu0 0
        %880 = vmatpush1.bf16.msra.mxu0 0
        %881 = vmatprep.subr.bf16.mxu0 0
        %882 = vmatpush1.bf16.msra.mxu0 0
        %883 = vmatprep.subr.bf16.mxu0 0
        %884 = vmatpush1.bf16.msra.mxu0 0
        %885 = vmatprep.subr.bf16.mxu0 0
        %886 = vmatpush1.bf16.msra.mxu0 0
        %887 = vmatprep.subr.bf16.mxu0 0
        %888 = vmatpush1.bf16.msra.mxu0 0
        %889 = vmatprep.subr.bf16.mxu0 0
        %890 = vmatpush1.bf16.msra.mxu0 0
        %891 = vmatprep.subr.bf16.mxu0 0
        %892 = vmatpush1.bf16.msra.mxu0 0
        %893 = vmatprep.subr.bf16.mxu0 0
        %894 = vmatpush1.bf16.msra.mxu0 0
        %895 = vmatprep.subr.bf16.mxu0 0
        %896 = vmatpush1.bf16.msra.mxu0 0
        %897 = vmatprep.subr.bf16.mxu0 0
        %898 = vmatpush1.bf16.msra.mxu0 0
        %899 = vmatprep.subr.bf16.mxu0 0
        %900 = vmatpush1.bf16.msra.mxu0 0
        %901 = vmatprep.subr.bf16.mxu0 0
        %902 = vmatpush1.bf16.msra.mxu0 0
        %903 = vmatprep.subr.bf16.mxu0 0
        %904 = vmatpush1.bf16.msra.mxu0 0
        %905 = vmatprep.mubr.bf16.mxu0 0
        %906 = vmatmul.mubr.bf16.gmra.mrb[0].mxu0 %v655
        %v907 = vpop.f32.mrb[0].mxu0
        %v908 = vadd.f32 0.0, %v907
        %v909 = vpop.f32.mrb[0].mxu0
        %v910 = vadd.f32 0.0, %v909
        %v911 = vpop.f32.mrb[0].mxu0
        %v912 = vpop.f32.mrb[0].mxu0
        %913 = vdwg.mxu0
        %v914 = vadd.f32 %v867, %v908
        %v915 = vadd.f32 %v869, %v910
        %916 = vmatprep.subr.bf16.mxu0 %v649
        %917 = vmatpush1.bf16.msra.mxu0 %v648
        %918 = vmatprep.subr.bf16.mxu0 %v661
        %919 = vmatpush1.bf16.msra.mxu0 %v658
        %920 = vmatprep.subr.bf16.mxu0 0
        %921 = vmatpush1.bf16.msra.mxu0 0
        %922 = vmatprep.subr.bf16.mxu0 0
        %923 = vmatpush1.bf16.msra.mxu0 0
        %924 = vmatprep.subr.bf16.mxu0 0
        %925 = vmatpush1.bf16.msra.mxu0 0
        %926 = vmatprep.subr.bf16.mxu0 0
        %927 = vmatpush1.bf16.msra.mxu0 0
        %928 = vmatprep.subr.bf16.mxu0 0
        %929 = vmatpush1.bf16.msra.mxu0 0
        %930 = vmatprep.subr.bf16.mxu0 0
        %931 = vmatpush1.bf16.msra.mxu0 0
        %932 = vmatprep.subr.bf16.mxu0 0
        %933 = vmatpush1.bf16.msra.mxu0 0
        %934 = vmatprep.subr.bf16.mxu0 0
        %935 = vmatpush1.bf16.msra.mxu0 0
        %936 = vmatprep.subr.bf16.mxu0 0
        %937 = vmatpush1.bf16.msra.mxu0 0
        %938 = vmatprep.subr.bf16.mxu0 0
        %939 = vmatpush1.bf16.msra.mxu0 0
        %940 = vmatprep.subr.bf16.mxu0 0
        %941 = vmatpush1.bf16.msra.mxu0 0
        %942 = vmatprep.subr.bf16.mxu0 0
        %943 = vmatpush1.bf16.msra.mxu0 0
        %944 = vmatprep.subr.bf16.mxu0 0
        %945 = vmatpush1.bf16.msra.mxu0 0
        %946 = vmatprep.subr.bf16.mxu0 0
        %947 = vmatpush1.bf16.msra.mxu0 0
        %948 = vmatprep.mubr.bf16.mxu0 0
        %949 = vmatmul.mubr.bf16.gmra.mrb[0].mxu0 %v740
        %v950 = vpop.f32.mrb[0].mxu0
        %v951 = vadd.f32 0.0, %v950
        %v952 = vpop.f32.mrb[0].mxu0
        %v953 = vadd.f32 0.0, %v952
        %v954 = vpop.f32.mrb[0].mxu0
        %v955 = vpop.f32.mrb[0].mxu0
        %956 = vdwg.mxu0
        %v957 = vadd.f32 %v914, %v951
        %v958 = vadd.f32 %v915, %v953
        %v960 = vunpack.c.l.b16 %v406
        %v961 = vpack.c.b16 %v960, %v960
        %v963 = vshrl.u32 %v961, 16
        %v965 = vshll.u32 %v961, 16
        %v967 = vrot.slane %v965, 1
        %v968 = vor.u32 %v963, %v967
        %v970 = vsel %vm436, %v968, 0
        %972 = vmatprep.subr.bf16.mxu0 %v734
        %973 = vmatpush1.bf16.msra.mxu0 %v733
        %974 = vmatprep.subr.bf16.mxu0 %v746
        %975 = vmatpush1.bf16.msra.mxu0 %v743
        %976 = vmatprep.subr.bf16.mxu0 0
        %977 = vmatpush1.bf16.msra.mxu0 0
        %978 = vmatprep.subr.bf16.mxu0 0
        %979 = vmatpush1.bf16.msra.mxu0 0
        %980 = vmatprep.subr.bf16.mxu0 0
        %981 = vmatpush1.bf16.msra.mxu0 0
        %982 = vmatprep.subr.bf16.mxu0 0
        %983 = vmatpush1.bf16.msra.mxu0 0
        %984 = vmatprep.subr.bf16.mxu0 0
        %985 = vmatpush1.bf16.msra.mxu0 0
        %986 = vmatprep.subr.bf16.mxu0 0
        %987 = vmatpush1.bf16.msra.mxu0 0
        %988 = vmatprep.subr.bf16.mxu0 0
        %989 = vmatpush1.bf16.msra.mxu0 0
        %990 = vmatprep.subr.bf16.mxu0 0
        %991 = vmatpush1.bf16.msra.mxu0 0
        %992 = vmatprep.subr.bf16.mxu0 0
        %993 = vmatpush1.bf16.msra.mxu0 0
        %994 = vmatprep.subr.bf16.mxu0 0
        %995 = vmatpush1.bf16.msra.mxu0 0
        %996 = vmatprep.subr.bf16.mxu0 0
        %997 = vmatpush1.bf16.msra.mxu0 0
        %998 = vmatprep.subr.bf16.mxu0 0
        %999 = vmatpush1.bf16.msra.mxu0 0
        %1000 = vmatprep.subr.bf16.mxu0 0
        %1001 = vmatpush1.bf16.msra.mxu0 0
        %1002 = vmatprep.subr.bf16.mxu0 0
        %1003 = vmatpush1.bf16.msra.mxu0 0
        %1004 = vmatprep.mubr.bf16.mxu0 0
        %1005 = vmatmul.mubr.bf16.gmra.mrb[0].mxu0 %v970
        %v1006 = vpop.f32.mrb[0].mxu0
        %v1007 = vadd.f32 0.0, %v1006
        %v1008 = vpop.f32.mrb[0].mxu0
        %v1009 = vadd.f32 0.0, %v1008
        %v1010 = vpop.f32.mrb[0].mxu0
        %v1011 = vpop.f32.mrb[0].mxu0
        %1012 = vdwg.mxu0
        %v1013 = vadd.f32 %v957, %v1007
        %v1014 = vadd.f32 %v958, %v1009
        %v1015 = vmax.f32 %v789, %v1013
        %v1016 = vmax.f32 %v790, %v1014
        %1019 = vrot.lane.b32.xlu0 %v1015, 56
        %v1020 = vpop.permute.xlu0 %1019
        %1021 = vrot.lane.b32.xlu0 %v1016, 56
        %v1022 = vpop.permute.xlu0 %1021
        %vm1023 = vcmask 457728
        %v1024 = vsel %vm1023, %v1020, %v1022
        %v1026 = vmax.f32 %v1015, %v1024
        %v1028 = vlaneseq
        %v1029 = vshrl.u32 %v1028, 7
        %v1030 = vsub.s32 0, %v1029
        %v1031 = vrot.slane %v400, %v1030
        %v1033 = vadd.f32 %v1026, %v1031
        %v1034 = vmax.f32 %v1033, 0.0
        %v1035 = vpack.c.bf16 %v1034, %v1034
        %1036 = vmatprep.subr.bf16.mxu0 %v431
        %1037 = vmatpush1.bf16.msra.mxu0 %v430
        %1038 = vmatprep.subr.bf16.mxu0 %v445
        %1039 = vmatpush1.bf16.msra.mxu0 %v442
        %1040 = vmatprep.subr.bf16.mxu0 0
        %1041 = vmatpush1.bf16.msra.mxu0 0
        %1042 = vmatprep.subr.bf16.mxu0 0
        %1043 = vmatpush1.bf16.msra.mxu0 0
        %1044 = vmatprep.subr.bf16.mxu0 0
        %1045 = vmatpush1.bf16.msra.mxu0 0
        %1046 = vmatprep.subr.bf16.mxu0 0
        %1047 = vmatpush1.bf16.msra.mxu0 0
        %1048 = vmatprep.subr.bf16.mxu0 0
        %1049 = vmatpush1.bf16.msra.mxu0 0
        %1050 = vmatprep.subr.bf16.mxu0 0
        %1051 = vmatpush1.bf16.msra.mxu0 0
        %1052 = vmatprep.subr.bf16.mxu0 0
        %1053 = vmatpush1.bf16.msra.mxu0 0
        %1054 = vmatprep.subr.bf16.mxu0 0
        %1055 = vmatpush1.bf16.msra.mxu0 0
        %1056 = vmatprep.subr.bf16.mxu0 0
        %1057 = vmatpush1.bf16.msra.mxu0 0
        %1058 = vmatprep.subr.bf16.mxu0 0
        %1059 = vmatpush1.bf16.msra.mxu0 0
        %1060 = vmatprep.subr.bf16.mxu0 0
        %1061 = vmatpush1.bf16.msra.mxu0 0
        %1062 = vmatprep.subr.bf16.mxu0 0
        %1063 = vmatpush1.bf16.msra.mxu0 0
        %1064 = vmatprep.subr.bf16.mxu0 0
        %1065 = vmatpush1.bf16.msra.mxu0 0
        %1066 = vmatprep.subr.bf16.mxu0 0
        %1067 = vmatpush1.bf16.msra.mxu0 0
        %1068 = vmatprep.mubr.bf16.mxu0 0
        %1069 = vmatmul.mubr.bf16.gmra.mrb[0].mxu0 %v655
        %v1070 = vpop.f32.mrb[0].mxu0
        %v1071 = vadd.f32 0.0, %v1070
        %v1072 = vpop.f32.mrb[0].mxu0
        %v1073 = vadd.f32 0.0, %v1072
        %v1074 = vpop.f32.mrb[0].mxu0
        %v1075 = vpop.f32.mrb[0].mxu0
        %1076 = vdwg.mxu0
        %1077 = vmatprep.subr.bf16.mxu0 %v501
        %1078 = vmatpush1.bf16.msra.mxu0 %v500
        %1079 = vmatprep.subr.bf16.mxu0 %v513
        %1080 = vmatpush1.bf16.msra.mxu0 %v510
        %1081 = vmatprep.subr.bf16.mxu0 0
        %1082 = vmatpush1.bf16.msra.mxu0 0
        %1083 = vmatprep.subr.bf16.mxu0 0
        %1084 = vmatpush1.bf16.msra.mxu0 0
        %1085 = vmatprep.subr.bf16.mxu0 0
        %1086 = vmatpush1.bf16.msra.mxu0 0
        %1087 = vmatprep.subr.bf16.mxu0 0
        %1088 = vmatpush1.bf16.msra.mxu0 0
        %1089 = vmatprep.subr.bf16.mxu0 0
        %1090 = vmatpush1.bf16.msra.mxu0 0
        %1091 = vmatprep.subr.bf16.mxu0 0
        %1092 = vmatpush1.bf16.msra.mxu0 0
        %1093 = vmatprep.subr.bf16.mxu0 0
        %1094 = vmatpush1.bf16.msra.mxu0 0
        %1095 = vmatprep.subr.bf16.mxu0 0
        %1096 = vmatpush1.bf16.msra.mxu0 0
        %1097 = vmatprep.subr.bf16.mxu0 0
        %1098 = vmatpush1.bf16.msra.mxu0 0
        %1099 = vmatprep.subr.bf16.mxu0 0
        %1100 = vmatpush1.bf16.msra.mxu0 0
        %1101 = vmatprep.subr.bf16.mxu0 0
        %1102 = vmatpush1.bf16.msra.mxu0 0
        %1103 = vmatprep.subr.bf16.mxu0 0
        %1104 = vmatpush1.bf16.msra.mxu0 0
        %1105 = vmatprep.subr.bf16.mxu0 0
        %1106 = vmatpush1.bf16.msra.mxu0 0
        %1107 = vmatprep.subr.bf16.mxu0 0
        %1108 = vmatpush1.bf16.msra.mxu0 0
        %1109 = vmatprep.mubr.bf16.mxu0 0
        %1110 = vmatmul.mubr.bf16.gmra.mrb[0].mxu0 %v580
        %v1111 = vpop.f32.mrb[0].mxu0
        %v1112 = vadd.f32 %v1071, %v1111
        %v1113 = vpop.f32.mrb[0].mxu0
        %v1114 = vadd.f32 %v1073, %v1113
        %v1115 = vpop.f32.mrb[0].mxu0
        %v1116 = vpop.f32.mrb[0].mxu0
        %1117 = vdwg.mxu0
        %1118 = vmatprep.subr.bf16.mxu0 %v574
        %1119 = vmatpush1.bf16.msra.mxu0 %v573
        %1120 = vmatprep.subr.bf16.mxu0 %v586
        %1121 = vmatpush1.bf16.msra.mxu0 %v583
        %1122 = vmatprep.subr.bf16.mxu0 0
        %1123 = vmatpush1.bf16.msra.mxu0 0
        %1124 = vmatprep.subr.bf16.mxu0 0
        %1125 = vmatpush1.bf16.msra.mxu0 0
        %1126 = vmatprep.subr.bf16.mxu0 0
        %1127 = vmatpush1.bf16.msra.mxu0 0
        %1128 = vmatprep.subr.bf16.mxu0 0
        %1129 = vmatpush1.bf16.msra.mxu0 0
        %1130 = vmatprep.subr.bf16.mxu0 0
        %1131 = vmatpush1.bf16.msra.mxu0 0
        %1132 = vmatprep.subr.bf16.mxu0 0
        %1133 = vmatpush1.bf16.msra.mxu0 0
        %1134 = vmatprep.subr.bf16.mxu0 0
        %1135 = vmatpush1.bf16.msra.mxu0 0
        %1136 = vmatprep.subr.bf16.mxu0 0
        %1137 = vmatpush1.bf16.msra.mxu0 0
        %1138 = vmatprep.subr.bf16.mxu0 0
        %1139 = vmatpush1.bf16.msra.mxu0 0
        %1140 = vmatprep.subr.bf16.mxu0 0
        %1141 = vmatpush1.bf16.msra.mxu0 0
        %1142 = vmatprep.subr.bf16.mxu0 0
        %1143 = vmatpush1.bf16.msra.mxu0 0
        %1144 = vmatprep.subr.bf16.mxu0 0
        %1145 = vmatpush1.bf16.msra.mxu0 0
        %1146 = vmatprep.subr.bf16.mxu0 0
        %1147 = vmatpush1.bf16.msra.mxu0 0
        %1148 = vmatprep.subr.bf16.mxu0 0
        %1149 = vmatpush1.bf16.msra.mxu0 0
        %1150 = vmatprep.mubr.bf16.mxu0 0
        %1151 = vmatmul.mubr.bf16.gmra.mrb[0].mxu0 %v740
        %v1152 = vpop.f32.mrb[0].mxu0
        %v1153 = vadd.f32 0.0, %v1152
        %v1154 = vpop.f32.mrb[0].mxu0
        %v1155 = vadd.f32 0.0, %v1154
        %v1156 = vpop.f32.mrb[0].mxu0
        %v1157 = vpop.f32.mrb[0].mxu0
        %1158 = vdwg.mxu0
        %v1159 = vadd.f32 %v1112, %v1153
        %v1160 = vadd.f32 %v1114, %v1155
        %1161 = vmatprep.subr.bf16.mxu0 %v649
        %1162 = vmatpush1.bf16.msra.mxu0 %v648
        %1163 = vmatprep.subr.bf16.mxu0 %v661
        %1164 = vmatpush1.bf16.msra.mxu0 %v658
        %1165 = vmatprep.subr.bf16.mxu0 0
        %1166 = vmatpush1.bf16.msra.mxu0 0
        %1167 = vmatprep.subr.bf16.mxu0 0
        %1168 = vmatpush1.bf16.msra.mxu0 0
        %1169 = vmatprep.subr.bf16.mxu0 0
        %1170 = vmatpush1.bf16.msra.mxu0 0
        %1171 = vmatprep.subr.bf16.mxu0 0
        %1172 = vmatpush1.bf16.msra.mxu0 0
        %1173 = vmatprep.subr.bf16.mxu0 0
        %1174 = vmatpush1.bf16.msra.mxu0 0
        %1175 = vmatprep.subr.bf16.mxu0 0
        %1176 = vmatpush1.bf16.msra.mxu0 0
        %1177 = vmatprep.subr.bf16.mxu0 0
        %1178 = vmatpush1.bf16.msra.mxu0 0
        %1179 = vmatprep.subr.bf16.mxu0 0
        %1180 = vmatpush1.bf16.msra.mxu0 0
        %1181 = vmatprep.subr.bf16.mxu0 0
        %1182 = vmatpush1.bf16.msra.mxu0 0
        %1183 = vmatprep.subr.bf16.mxu0 0
        %1184 = vmatpush1.bf16.msra.mxu0 0
        %1185 = vmatprep.subr.bf16.mxu0 0
        %1186 = vmatpush1.bf16.msra.mxu0 0
        %1187 = vmatprep.subr.bf16.mxu0 0
        %1188 = vmatpush1.bf16.msra.mxu0 0
        %1189 = vmatprep.subr.bf16.mxu0 0
        %1190 = vmatpush1.bf16.msra.mxu0 0
        %1191 = vmatprep.subr.bf16.mxu0 0
        %1192 = vmatpush1.bf16.msra.mxu0 0
        %1193 = vmatprep.mubr.bf16.mxu0 0
        %1194 = vmatmul.mubr.bf16.gmra.mrb[0].mxu0 %v970
        %v1195 = vpop.f32.mrb[0].mxu0
        %v1196 = vadd.f32 0.0, %v1195
        %v1197 = vpop.f32.mrb[0].mxu0
        %v1198 = vadd.f32 0.0, %v1197
        %v1199 = vpop.f32.mrb[0].mxu0
        %v1200 = vpop.f32.mrb[0].mxu0
        %1201 = vdwg.mxu0
        %v1202 = vadd.f32 %v1159, %v1196
        %v1203 = vadd.f32 %v1160, %v1198
        %v1205 = vunpack.c.l.b16 %v407
        %v1206 = vpack.c.b16 %v1205, %v1205
        %v1208 = vshrl.u32 %v1206, 16
        %v1210 = vshll.u32 %v1206, 16
        %v1212 = vrot.slane %v1210, 1
        %v1213 = vor.u32 %v1208, %v1212
        %v1215 = vsel %vm436, %v1213, 0
        %1217 = vmatprep.subr.bf16.mxu0 %v734
        %1218 = vmatpush1.bf16.msra.mxu0 %v733
        %1219 = vmatprep.subr.bf16.mxu0 %v746
        %1220 = vmatpush1.bf16.msra.mxu0 %v743
        %1221 = vmatprep.subr.bf16.mxu0 0
        %1222 = vmatpush1.bf16.msra.mxu0 0
        %1223 = vmatprep.subr.bf16.mxu0 0
        %1224 = vmatpush1.bf16.msra.mxu0 0
        %1225 = vmatprep.subr.bf16.mxu0 0
        %1226 = vmatpush1.bf16.msra.mxu0 0
        %1227 = vmatprep.subr.bf16.mxu0 0
        %1228 = vmatpush1.bf16.msra.mxu0 0
        %1229 = vmatprep.subr.bf16.mxu0 0
        %1230 = vmatpush1.bf16.msra.mxu0 0
        %1231 = vmatprep.subr.bf16.mxu0 0
        %1232 = vmatpush1.bf16.msra.mxu0 0
        %1233 = vmatprep.subr.bf16.mxu0 0
        %1234 = vmatpush1.bf16.msra.mxu0 0
        %1235 = vmatprep.subr.bf16.mxu0 0
        %1236 = vmatpush1.bf16.msra.mxu0 0
        %1237 = vmatprep.subr.bf16.mxu0 0
        %1238 = vmatpush1.bf16.msra.mxu0 0
        %1239 = vmatprep.subr.bf16.mxu0 0
        %1240 = vmatpush1.bf16.msra.mxu0 0
        %1241 = vmatprep.subr.bf16.mxu0 0
        %1242 = vmatpush1.bf16.msra.mxu0 0
        %1243 = vmatprep.subr.bf16.mxu0 0
        %1244 = vmatpush1.bf16.msra.mxu0 0
        %1245 = vmatprep.subr.bf16.mxu0 0
        %1246 = vmatpush1.bf16.msra.mxu0 0
        %1247 = vmatprep.subr.bf16.mxu0 0
        %1248 = vmatpush1.bf16.msra.mxu0 0
        %1249 = vmatprep.mubr.bf16.mxu0 0
        %1250 = vmatmul.mubr.bf16.gmra.mrb[0].mxu0 %v1215
        %v1251 = vpop.f32.mrb[0].mxu0
        %v1252 = vadd.f32 0.0, %v1251
        %v1253 = vpop.f32.mrb[0].mxu0
        %v1254 = vadd.f32 0.0, %v1253
        %v1255 = vpop.f32.mrb[0].mxu0
        %v1256 = vpop.f32.mrb[0].mxu0
        %1257 = vdwg.mxu0
        %v1258 = vadd.f32 %v1202, %v1252
        %v1259 = vadd.f32 %v1203, %v1254
        %1260 = vmatprep.subr.bf16.mxu0 %v431
        %1261 = vmatpush1.bf16.msra.mxu0 %v430
        %1262 = vmatprep.subr.bf16.mxu0 %v445
        %1263 = vmatpush1.bf16.msra.mxu0 %v442
        %1264 = vmatprep.subr.bf16.mxu0 0
        %1265 = vmatpush1.bf16.msra.mxu0 0
        %1266 = vmatprep.subr.bf16.mxu0 0
        %1267 = vmatpush1.bf16.msra.mxu0 0
        %1268 = vmatprep.subr.bf16.mxu0 0
        %1269 = vmatpush1.bf16.msra.mxu0 0
        %1270 = vmatprep.subr.bf16.mxu0 0
        %1271 = vmatpush1.bf16.msra.mxu0 0
        %1272 = vmatprep.subr.bf16.mxu0 0
        %1273 = vmatpush1.bf16.msra.mxu0 0
        %1274 = vmatprep.subr.bf16.mxu0 0
        %1275 = vmatpush1.bf16.msra.mxu0 0
        %1276 = vmatprep.subr.bf16.mxu0 0
        %1277 = vmatpush1.bf16.msra.mxu0 0
        %1278 = vmatprep.subr.bf16.mxu0 0
        %1279 = vmatpush1.bf16.msra.mxu0 0
        %1280 = vmatprep.subr.bf16.mxu0 0
        %1281 = vmatpush1.bf16.msra.mxu0 0
        %1282 = vmatprep.subr.bf16.mxu0 0
        %1283 = vmatpush1.bf16.msra.mxu0 0
        %1284 = vmatprep.subr.bf16.mxu0 0
        %1285 = vmatpush1.bf16.msra.mxu0 0
        %1286 = vmatprep.subr.bf16.mxu0 0
        %1287 = vmatpush1.bf16.msra.mxu0 0
        %1288 = vmatprep.subr.bf16.mxu0 0
        %1289 = vmatpush1.bf16.msra.mxu0 0
        %1290 = vmatprep.subr.bf16.mxu0 0
        %1291 = vmatpush1.bf16.msra.mxu0 0
        %1292 = vmatprep.mubr.bf16.mxu0 0
        %1293 = vmatmul.mubr.bf16.gmra.mrb[0].mxu0 %v740
        %v1294 = vpop.f32.mrb[0].mxu0
        %v1295 = vadd.f32 0.0, %v1294
        %v1296 = vpop.f32.mrb[0].mxu0
        %v1297 = vadd.f32 0.0, %v1296
        %v1298 = vpop.f32.mrb[0].mxu0
        %v1299 = vpop.f32.mrb[0].mxu0
        %1300 = vdwg.mxu0
        %1301 = vmatprep.subr.bf16.mxu0 %v501
        %1302 = vmatpush1.bf16.msra.mxu0 %v500
        %1303 = vmatprep.subr.bf16.mxu0 %v513
        %1304 = vmatpush1.bf16.msra.mxu0 %v510
        %1305 = vmatprep.subr.bf16.mxu0 0
        %1306 = vmatpush1.bf16.msra.mxu0 0
        %1307 = vmatprep.subr.bf16.mxu0 0
        %1308 = vmatpush1.bf16.msra.mxu0 0
        %1309 = vmatprep.subr.bf16.mxu0 0
        %1310 = vmatpush1.bf16.msra.mxu0 0
        %1311 = vmatprep.subr.bf16.mxu0 0
        %1312 = vmatpush1.bf16.msra.mxu0 0
        %1313 = vmatprep.subr.bf16.mxu0 0
        %1314 = vmatpush1.bf16.msra.mxu0 0
        %1315 = vmatprep.subr.bf16.mxu0 0
        %1316 = vmatpush1.bf16.msra.mxu0 0
        %1317 = vmatprep.subr.bf16.mxu0 0
        %1318 = vmatpush1.bf16.msra.mxu0 0
        %1319 = vmatprep.subr.bf16.mxu0 0
        %1320 = vmatpush1.bf16.msra.mxu0 0
        %1321 = vmatprep.subr.bf16.mxu0 0
        %1322 = vmatpush1.bf16.msra.mxu0 0
        %1323 = vmatprep.subr.bf16.mxu0 0
        %1324 = vmatpush1.bf16.msra.mxu0 0
        %1325 = vmatprep.subr.bf16.mxu0 0
        %1326 = vmatpush1.bf16.msra.mxu0 0
        %1327 = vmatprep.subr.bf16.mxu0 0
        %1328 = vmatpush1.bf16.msra.mxu0 0
        %1329 = vmatprep.subr.bf16.mxu0 0
        %1330 = vmatpush1.bf16.msra.mxu0 0
        %1331 = vmatprep.subr.bf16.mxu0 0
        %1332 = vmatpush1.bf16.msra.mxu0 0
        %1333 = vmatprep.mubr.bf16.mxu0 0
        %1334 = vmatmul.mubr.bf16.gmra.mrb[0].mxu0 %v655
        %v1335 = vpop.f32.mrb[0].mxu0
        %v1336 = vadd.f32 %v1295, %v1335
        %v1337 = vpop.f32.mrb[0].mxu0
        %v1338 = vadd.f32 %v1297, %v1337
        %v1339 = vpop.f32.mrb[0].mxu0
        %v1340 = vpop.f32.mrb[0].mxu0
        %1341 = vdwg.mxu0
        %1342 = vmatprep.subr.bf16.mxu0 %v574
        %1343 = vmatpush1.bf16.msra.mxu0 %v573
        %1344 = vmatprep.subr.bf16.mxu0 %v586
        %1345 = vmatpush1.bf16.msra.mxu0 %v583
        %1346 = vmatprep.subr.bf16.mxu0 0
        %1347 = vmatpush1.bf16.msra.mxu0 0
        %1348 = vmatprep.subr.bf16.mxu0 0
        %1349 = vmatpush1.bf16.msra.mxu0 0
        %1350 = vmatprep.subr.bf16.mxu0 0
        %1351 = vmatpush1.bf16.msra.mxu0 0
        %1352 = vmatprep.subr.bf16.mxu0 0
        %1353 = vmatpush1.bf16.msra.mxu0 0
        %1354 = vmatprep.subr.bf16.mxu0 0
        %1355 = vmatpush1.bf16.msra.mxu0 0
        %1356 = vmatprep.subr.bf16.mxu0 0
        %1357 = vmatpush1.bf16.msra.mxu0 0
        %1358 = vmatprep.subr.bf16.mxu0 0
        %1359 = vmatpush1.bf16.msra.mxu0 0
        %1360 = vmatprep.subr.bf16.mxu0 0
        %1361 = vmatpush1.bf16.msra.mxu0 0
        %1362 = vmatprep.subr.bf16.mxu0 0
        %1363 = vmatpush1.bf16.msra.mxu0 0
        %1364 = vmatprep.subr.bf16.mxu0 0
        %1365 = vmatpush1.bf16.msra.mxu0 0
        %1366 = vmatprep.subr.bf16.mxu0 0
        %1367 = vmatpush1.bf16.msra.mxu0 0
        %1368 = vmatprep.subr.bf16.mxu0 0
        %1369 = vmatpush1.bf16.msra.mxu0 0
        %1370 = vmatprep.subr.bf16.mxu0 0
        %1371 = vmatpush1.bf16.msra.mxu0 0
        %1372 = vmatprep.subr.bf16.mxu0 0
        %1373 = vmatpush1.bf16.msra.mxu0 0
        %1374 = vmatprep.mubr.bf16.mxu0 0
        %1375 = vmatmul.mubr.bf16.gmra.mrb[0].mxu0 %v970
        %v1376 = vpop.f32.mrb[0].mxu0
        %v1377 = vadd.f32 0.0, %v1376
        %v1378 = vpop.f32.mrb[0].mxu0
        %v1379 = vadd.f32 0.0, %v1378
        %v1380 = vpop.f32.mrb[0].mxu0
        %v1381 = vpop.f32.mrb[0].mxu0
        %1382 = vdwg.mxu0
        %v1383 = vadd.f32 %v1336, %v1377
        %v1384 = vadd.f32 %v1338, %v1379
        %1385 = vmatprep.subr.bf16.mxu0 %v649
        %1386 = vmatpush1.bf16.msra.mxu0 %v648
        %1387 = vmatprep.subr.bf16.mxu0 %v661
        %1388 = vmatpush1.bf16.msra.mxu0 %v658
        %1389 = vmatprep.subr.bf16.mxu0 0
        %1390 = vmatpush1.bf16.msra.mxu0 0
        %1391 = vmatprep.subr.bf16.mxu0 0
        %1392 = vmatpush1.bf16.msra.mxu0 0
        %1393 = vmatprep.subr.bf16.mxu0 0
        %1394 = vmatpush1.bf16.msra.mxu0 0
        %1395 = vmatprep.subr.bf16.mxu0 0
        %1396 = vmatpush1.bf16.msra.mxu0 0
        %1397 = vmatprep.subr.bf16.mxu0 0
        %1398 = vmatpush1.bf16.msra.mxu0 0
        %1399 = vmatprep.subr.bf16.mxu0 0
        %1400 = vmatpush1.bf16.msra.mxu0 0
        %1401 = vmatprep.subr.bf16.mxu0 0
        %1402 = vmatpush1.bf16.msra.mxu0 0
        %1403 = vmatprep.subr.bf16.mxu0 0
        %1404 = vmatpush1.bf16.msra.mxu0 0
        %1405 = vmatprep.subr.bf16.mxu0 0
        %1406 = vmatpush1.bf16.msra.mxu0 0
        %1407 = vmatprep.subr.bf16.mxu0 0
        %1408 = vmatpush1.bf16.msra.mxu0 0
        %1409 = vmatprep.subr.bf16.mxu0 0
        %1410 = vmatpush1.bf16.msra.mxu0 0
        %1411 = vmatprep.subr.bf16.mxu0 0
        %1412 = vmatpush1.bf16.msra.mxu0 0
        %1413 = vmatprep.subr.bf16.mxu0 0
        %1414 = vmatpush1.bf16.msra.mxu0 0
        %1415 = vmatprep.subr.bf16.mxu0 0
        %1416 = vmatpush1.bf16.msra.mxu0 0
        %1417 = vmatprep.mubr.bf16.mxu0 0
        %1418 = vmatmul.mubr.bf16.gmra.mrb[0].mxu0 %v1215
        %v1419 = vpop.f32.mrb[0].mxu0
        %v1420 = vadd.f32 0.0, %v1419
        %v1421 = vpop.f32.mrb[0].mxu0
        %v1422 = vadd.f32 0.0, %v1421
        %v1423 = vpop.f32.mrb[0].mxu0
        %v1424 = vpop.f32.mrb[0].mxu0
        %1425 = vdwg.mxu0
        %v1426 = vadd.f32 %v1383, %v1420
        %v1427 = vadd.f32 %v1384, %v1422
        %v1429 = vunpack.c.l.b16 %v408
        %v1430 = vpack.c.b16 %v1429, %v1429
        %v1432 = vshrl.u32 %v1430, 16
        %v1434 = vshll.u32 %v1430, 16
        %v1436 = vrot.slane %v1434, 1
        %v1437 = vor.u32 %v1432, %v1436
        %v1439 = vsel %vm436, %v1437, 0
        %1441 = vmatprep.subr.bf16.mxu0 %v734
        %1442 = vmatpush1.bf16.msra.mxu0 %v733
        %1443 = vmatprep.subr.bf16.mxu0 %v746
        %1444 = vmatpush1.bf16.msra.mxu0 %v743
        %1445 = vmatprep.subr.bf16.mxu0 0
        %1446 = vmatpush1.bf16.msra.mxu0 0
        %1447 = vmatprep.subr.bf16.mxu0 0
        %1448 = vmatpush1.bf16.msra.mxu0 0
        %1449 = vmatprep.subr.bf16.mxu0 0
        %1450 = vmatpush1.bf16.msra.mxu0 0
        %1451 = vmatprep.subr.bf16.mxu0 0
        %1452 = vmatpush1.bf16.msra.mxu0 0
        %1453 = vmatprep.subr.bf16.mxu0 0
        %1454 = vmatpush1.bf16.msra.mxu0 0
        %1455 = vmatprep.subr.bf16.mxu0 0
        %1456 = vmatpush1.bf16.msra.mxu0 0
        %1457 = vmatprep.subr.bf16.mxu0 0
        %1458 = vmatpush1.bf16.msra.mxu0 0
        %1459 = vmatprep.subr.bf16.mxu0 0
        %1460 = vmatpush1.bf16.msra.mxu0 0
        %1461 = vmatprep.subr.bf16.mxu0 0
        %1462 = vmatpush1.bf16.msra.mxu0 0
        %1463 = vmatprep.subr.bf16.mxu0 0
        %1464 = vmatpush1.bf16.msra.mxu0 0
        %1465 = vmatprep.subr.bf16.mxu0 0
        %1466 = vmatpush1.bf16.msra.mxu0 0
        %1467 = vmatprep.subr.bf16.mxu0 0
        %1468 = vmatpush1.bf16.msra.mxu0 0
        %1469 = vmatprep.subr.bf16.mxu0 0
        %1470 = vmatpush1.bf16.msra.mxu0 0
        %1471 = vmatprep.subr.bf16.mxu0 0
        %1472 = vmatpush1.bf16.msra.mxu0 0
        %1473 = vmatprep.mubr.bf16.mxu0 0
        %1474 = vmatmul.mubr.bf16.gmra.mrb[0].mxu0 %v1439
        %v1475 = vpop.f32.mrb[0].mxu0
        %v1476 = vadd.f32 0.0, %v1475
        %v1477 = vpop.f32.mrb[0].mxu0
        %v1478 = vadd.f32 0.0, %v1477
        %v1479 = vpop.f32.mrb[0].mxu0
        %v1480 = vpop.f32.mrb[0].mxu0
        %1481 = vdwg.mxu0
        %v1482 = vadd.f32 %v1426, %v1476
        %v1483 = vadd.f32 %v1427, %v1478
        %v1484 = vmax.f32 %v1258, %v1482
        %v1485 = vmax.f32 %v1259, %v1483
        %1488 = vrot.lane.b32.xlu0 %v1484, 56
        %v1489 = vpop.permute.xlu0 %1488
        %1490 = vrot.lane.b32.xlu0 %v1485, 56
        %v1491 = vpop.permute.xlu0 %1490
        %v1492 = vsel %vm1023, %v1489, %v1491
        %v1494 = vmax.f32 %v1484, %v1492
        %v1495 = vadd.f32 %v1494, %v1031
        %v1496 = vmax.f32 %v1495, 0.0
        %v1497 = vpack.c.bf16 %v1496, %v1496
        %v1498 = vld [vmem:[%s3] sm:$0xf]
        %v1499 = vld [vmem:[%s3 + $0x4] sm:$0xf]
        %v1500 = vld [vmem:[%s3 + $0x8] sm:$0xf]
        %v1501 = vld [vmem:[%s3 + $0xc] sm:$0xf]
        %v1502 = vld [vmem:[%s3 + $0x10] sm:$0xf]
        %v1503 = vld [vmem:[%s3 + $0x14] sm:$0xf]
        %v1504 = vld [vmem:[%s3 + $0x18] sm:$0xf]
        %v1505 = vld [vmem:[%s3 + $0x1c] sm:$0xf]
        %v1506 = vld [vmem:[%s3 + $0x20] sm:$0xf]
        %s1507 = scalar_lea.vmem %s3, 36
        %v1508 = vld [vmem:[%s1507] sm:$0xf]
        %v1509 = vld [vmem:[%s1507 + $0x4] sm:$0xf]
        %v1510 = vld [vmem:[%s1507 + $0x8] sm:$0xf]
        %v1511 = vld [vmem:[%s1507 + $0xc] sm:$0xf]
        %v1512 = vld [vmem:[%s1507 + $0x10] sm:$0xf]
        %v1513 = vld [vmem:[%s1507 + $0x14] sm:$0xf]
        %v1514 = vld [vmem:[%s1507 + $0x18] sm:$0xf]
        %v1515 = vld [vmem:[%s1507 + $0x1c] sm:$0xf]
        %v1516 = vld [vmem:[%s1507 + $0x20] sm:$0xf]
        %v1526 = vunpack.c.l.b16 %v1508
        %v1527 = vunpack.c.l.b16 %v1509
        %v1528 = vunpack.c.l.b16 %v1510
        %v1529 = vunpack.c.l.b16 %v1511
        %v1530 = vunpack.c.l.b16 %v1512
        %v1531 = vunpack.c.l.b16 %v1513
        %v1532 = vunpack.c.l.b16 %v1514
        %v1533 = vunpack.c.l.b16 %v1515
        %v1534 = vunpack.c.l.b16 %v1516
        %v1535 = vpack.c.b16 %v1527, %v1526
        %v1536 = vpack.c.b16 %v1529, %v1528
        %v1537 = vpack.c.b16 %v1531, %v1530
        %v1538 = vpack.c.b16 %v1533, %v1532
        %v1539 = vpack.c.b16 %v1534, %v1534
        %vm1544 = vcmask 588800
        %v1546 = vsel %vm1544, %v1497, 0
        %vm1548 = vcmask 1043456
        %v1550 = vsel %vm1548, %v1539, 0
        %1552 = vmatprep.subr.bf16.mxu0 0
        %1553 = vmatpush1.bf16.msra.mxu0 %v1535
        %1554 = vmatprep.subr.bf16.mxu0 0
        %1555 = vmatpush1.bf16.msra.mxu0 %v1536
        %1556 = vmatprep.subr.bf16.mxu0 0
        %1557 = vmatpush1.bf16.msra.mxu0 %v1537
        %1558 = vmatprep.subr.bf16.mxu0 0
        %1559 = vmatpush1.bf16.msra.mxu0 %v1538
        %1560 = vmatprep.subr.bf16.mxu0 0
        %1561 = vmatpush1.bf16.msra.mxu0 %v1550
        %1562 = vmatprep.subr.bf16.mxu0 0
        %1563 = vmatpush1.bf16.msra.mxu0 0
        %1564 = vmatprep.subr.bf16.mxu0 0
        %1565 = vmatpush1.bf16.msra.mxu0 0
        %1566 = vmatprep.subr.bf16.mxu0 0
        %1567 = vmatpush1.bf16.msra.mxu0 0
        %1568 = vmatprep.subr.bf16.mxu0 0
        %1569 = vmatpush1.bf16.msra.mxu0 0
        %1570 = vmatprep.subr.bf16.mxu0 0
        %1571 = vmatpush1.bf16.msra.mxu0 0
        %1572 = vmatprep.subr.bf16.mxu0 0
        %1573 = vmatpush1.bf16.msra.mxu0 0
        %1574 = vmatprep.subr.bf16.mxu0 0
        %1575 = vmatpush1.bf16.msra.mxu0 0
        %1576 = vmatprep.subr.bf16.mxu0 0
        %1577 = vmatpush1.bf16.msra.mxu0 0
        %1578 = vmatprep.subr.bf16.mxu0 0
        %1579 = vmatpush1.bf16.msra.mxu0 0
        %1580 = vmatprep.subr.bf16.mxu0 0
        %1581 = vmatpush1.bf16.msra.mxu0 0
        %1582 = vmatprep.subr.bf16.mxu0 0
        %1583 = vmatpush1.bf16.msra.mxu0 0
        %1584 = vmatprep.mubr.bf16.mxu0 0
        %1585 = vmatmul.mubr.bf16.gmra.mrb[0].mxu0 %v1546
        %v1586 = vpop.f32.mrb[0].mxu0
        %v1587 = vadd.f32 0.0, %v1586
        %v1588 = vpop.f32.mrb[0].mxu0
        %v1589 = vpop.f32.mrb[0].mxu0
        %v1590 = vpop.f32.mrb[0].mxu0
        %1591 = vdwg.mxu0
        %v1601 = vunpack.c.l.b16 %v1498
        %v1602 = vunpack.c.l.b16 %v1499
        %v1603 = vunpack.c.l.b16 %v1500
        %v1604 = vunpack.c.l.b16 %v1501
        %v1605 = vunpack.c.l.b16 %v1502
        %v1606 = vunpack.c.l.b16 %v1503
        %v1607 = vunpack.c.l.b16 %v1504
        %v1608 = vunpack.c.l.b16 %v1505
        %v1609 = vunpack.c.l.b16 %v1506
        %v1610 = vpack.c.b16 %v1602, %v1601
        %v1611 = vpack.c.b16 %v1604, %v1603
        %v1612 = vpack.c.b16 %v1606, %v1605
        %v1613 = vpack.c.b16 %v1608, %v1607
        %v1614 = vpack.c.b16 %v1609, %v1609
        %v1620 = vsel %vm1544, %v1035, 0
        %v1623 = vsel %vm1548, %v1614, 0
        %1625 = vmatprep.subr.bf16.mxu0 0
        %1626 = vmatpush1.bf16.msra.mxu0 %v1610
        %1627 = vmatprep.subr.bf16.mxu0 0
        %1628 = vmatpush1.bf16.msra.mxu0 %v1611
        %1629 = vmatprep.subr.bf16.mxu0 0
        %1630 = vmatpush1.bf16.msra.mxu0 %v1612
        %1631 = vmatprep.subr.bf16.mxu0 0
        %1632 = vmatpush1.bf16.msra.mxu0 %v1613
        %1633 = vmatprep.subr.bf16.mxu0 0
        %1634 = vmatpush1.bf16.msra.mxu0 %v1623
        %1635 = vmatprep.subr.bf16.mxu0 0
        %1636 = vmatpush1.bf16.msra.mxu0 0
        %1637 = vmatprep.subr.bf16.mxu0 0
        %1638 = vmatpush1.bf16.msra.mxu0 0
        %1639 = vmatprep.subr.bf16.mxu0 0
        %1640 = vmatpush1.bf16.msra.mxu0 0
        %1641 = vmatprep.subr.bf16.mxu0 0
        %1642 = vmatpush1.bf16.msra.mxu0 0
        %1643 = vmatprep.subr.bf16.mxu0 0
        %1644 = vmatpush1.bf16.msra.mxu0 0
        %1645 = vmatprep.subr.bf16.mxu0 0
        %1646 = vmatpush1.bf16.msra.mxu0 0
        %1647 = vmatprep.subr.bf16.mxu0 0
        %1648 = vmatpush1.bf16.msra.mxu0 0
        %1649 = vmatprep.subr.bf16.mxu0 0
        %1650 = vmatpush1.bf16.msra.mxu0 0
        %1651 = vmatprep.subr.bf16.mxu0 0
        %1652 = vmatpush1.bf16.msra.mxu0 0
        %1653 = vmatprep.subr.bf16.mxu0 0
        %1654 = vmatpush1.bf16.msra.mxu0 0
        %1655 = vmatprep.subr.bf16.mxu0 0
        %1656 = vmatpush1.bf16.msra.mxu0 0
        %1657 = vmatprep.mubr.bf16.mxu0 0
        %1658 = vmatmul.mubr.bf16.gmra.mrb[0].mxu0 %v1620
        %v1659 = vpop.f32.mrb[0].mxu0
        %v1660 = vadd.f32 %v1587, %v1659
        %v1661 = vpop.f32.mrb[0].mxu0
        %v1662 = vpop.f32.mrb[0].mxu0
        %v1663 = vpop.f32.mrb[0].mxu0
        %1664 = vdwg.mxu0
        %s1665 = scalar_lea.vmem %s3, 72
        %v1666 = vld [vmem:[%s1665] sm:$0xf]
        %v1667 = vld [vmem:[%s1665 + $0x4] sm:$0xf]
        %v1668 = vld [vmem:[%s1665 + $0x8] sm:$0xf]
        %v1669 = vld [vmem:[%s1665 + $0xc] sm:$0xf]
        %v1670 = vld [vmem:[%s1665 + $0x10] sm:$0xf]
        %v1671 = vld [vmem:[%s1665 + $0x14] sm:$0xf]
        %v1672 = vld [vmem:[%s1665 + $0x18] sm:$0xf]
        %v1673 = vld [vmem:[%s1665 + $0x1c] sm:$0xf]
        %v1674 = vld [vmem:[%s1665 + $0x20] sm:$0xf]
        %v1675 = vshrl.u32 %v1035, 16
        %v1677 = vshll.u32 %v1035, 16
        %v1679 = vrot.slane %v1677, 1
        %v1680 = vor.u32 %v1675, %v1679
        %v1690 = vunpack.c.l.b16 %v1666
        %v1691 = vunpack.c.l.b16 %v1667
        %v1692 = vunpack.c.l.b16 %v1668
        %v1693 = vunpack.c.l.b16 %v1669
        %v1694 = vunpack.c.l.b16 %v1670
        %v1695 = vunpack.c.l.b16 %v1671
        %v1696 = vunpack.c.l.b16 %v1672
        %v1697 = vunpack.c.l.b16 %v1673
        %v1698 = vunpack.c.l.b16 %v1674
        %v1699 = vpack.c.b16 %v1691, %v1690
        %v1700 = vpack.c.b16 %v1693, %v1692
        %v1701 = vpack.c.b16 %v1695, %v1694
        %v1702 = vpack.c.b16 %v1697, %v1696
        %v1703 = vpack.c.b16 %v1698, %v1698
        %v1709 = vsel %vm1544, %v1680, 0
        %v1712 = vsel %vm1548, %v1703, 0
        %1714 = vmatprep.subr.bf16.mxu0 0
        %1715 = vmatpush1.bf16.msra.mxu0 %v1699
        %1716 = vmatprep.subr.bf16.mxu0 0
        %1717 = vmatpush1.bf16.msra.mxu0 %v1700
        %1718 = vmatprep.subr.bf16.mxu0 0
        %1719 = vmatpush1.bf16.msra.mxu0 %v1701
        %1720 = vmatprep.subr.bf16.mxu0 0
        %1721 = vmatpush1.bf16.msra.mxu0 %v1702
        %1722 = vmatprep.subr.bf16.mxu0 0
        %1723 = vmatpush1.bf16.msra.mxu0 %v1712
        %1724 = vmatprep.subr.bf16.mxu0 0
        %1725 = vmatpush1.bf16.msra.mxu0 0
        %1726 = vmatprep.subr.bf16.mxu0 0
        %1727 = vmatpush1.bf16.msra.mxu0 0
        %1728 = vmatprep.subr.bf16.mxu0 0
        %1729 = vmatpush1.bf16.msra.mxu0 0
        %1730 = vmatprep.subr.bf16.mxu0 0
        %1731 = vmatpush1.bf16.msra.mxu0 0
        %1732 = vmatprep.subr.bf16.mxu0 0
        %1733 = vmatpush1.bf16.msra.mxu0 0
        %1734 = vmatprep.subr.bf16.mxu0 0
        %1735 = vmatpush1.bf16.msra.mxu0 0
        %1736 = vmatprep.subr.bf16.mxu0 0
        %1737 = vmatpush1.bf16.msra.mxu0 0
        %1738 = vmatprep.subr.bf16.mxu0 0
        %1739 = vmatpush1.bf16.msra.mxu0 0
        %1740 = vmatprep.subr.bf16.mxu0 0
        %1741 = vmatpush1.bf16.msra.mxu0 0
        %1742 = vmatprep.subr.bf16.mxu0 0
        %1743 = vmatpush1.bf16.msra.mxu0 0
        %1744 = vmatprep.subr.bf16.mxu0 0
        %1745 = vmatpush1.bf16.msra.mxu0 0
        %1746 = vmatprep.mubr.bf16.mxu0 0
        %1747 = vmatmul.mubr.bf16.gmra.mrb[0].mxu0 %v1709
        %v1748 = vpop.f32.mrb[0].mxu0
        %v1749 = vadd.f32 0.0, %v1748
        %v1750 = vpop.f32.mrb[0].mxu0
        %v1751 = vpop.f32.mrb[0].mxu0
        %v1752 = vpop.f32.mrb[0].mxu0
        %1753 = vdwg.mxu0
        %v1754 = vadd.f32 %v1660, %v1749
        %s1755 = scalar_lea.vmem %s3, 108
        %v1756 = vld [vmem:[%s1755] sm:$0xf]
        %v1757 = vld [vmem:[%s1755 + $0x4] sm:$0xf]
        %v1758 = vld [vmem:[%s1755 + $0x8] sm:$0xf]
        %v1759 = vld [vmem:[%s1755 + $0xc] sm:$0xf]
        %v1760 = vld [vmem:[%s1755 + $0x10] sm:$0xf]
        %v1761 = vld [vmem:[%s1755 + $0x14] sm:$0xf]
        %v1762 = vld [vmem:[%s1755 + $0x18] sm:$0xf]
        %v1763 = vld [vmem:[%s1755 + $0x1c] sm:$0xf]
        %v1764 = vld [vmem:[%s1755 + $0x20] sm:$0xf]
        %v1765 = vshrl.u32 %v1497, 16
        %v1767 = vshll.u32 %v1497, 16
        %v1769 = vrot.slane %v1767, 1
        %v1770 = vor.u32 %v1765, %v1769
        %v1780 = vunpack.c.l.b16 %v1756
        %v1781 = vunpack.c.l.b16 %v1757
        %v1782 = vunpack.c.l.b16 %v1758
        %v1783 = vunpack.c.l.b16 %v1759
        %v1784 = vunpack.c.l.b16 %v1760
        %v1785 = vunpack.c.l.b16 %v1761
        %v1786 = vunpack.c.l.b16 %v1762
        %v1787 = vunpack.c.l.b16 %v1763
        %v1788 = vunpack.c.l.b16 %v1764
        %v1789 = vpack.c.b16 %v1781, %v1780
        %v1790 = vpack.c.b16 %v1783, %v1782
        %v1791 = vpack.c.b16 %v1785, %v1784
        %v1792 = vpack.c.b16 %v1787, %v1786
        %v1793 = vpack.c.b16 %v1788, %v1788
        %v1799 = vsel %vm1544, %v1770, 0
        %v1802 = vsel %vm1548, %v1793, 0
        %1804 = vmatprep.subr.bf16.mxu0 0
        %1805 = vmatpush1.bf16.msra.mxu0 %v1789
        %1806 = vmatprep.subr.bf16.mxu0 0
        %1807 = vmatpush1.bf16.msra.mxu0 %v1790
        %1808 = vmatprep.subr.bf16.mxu0 0
        %1809 = vmatpush1.bf16.msra.mxu0 %v1791
        %1810 = vmatprep.subr.bf16.mxu0 0
        %1811 = vmatpush1.bf16.msra.mxu0 %v1792
        %1812 = vmatprep.subr.bf16.mxu0 0
        %1813 = vmatpush1.bf16.msra.mxu0 %v1802
        %1814 = vmatprep.subr.bf16.mxu0 0
        %1815 = vmatpush1.bf16.msra.mxu0 0
        %1816 = vmatprep.subr.bf16.mxu0 0
        %1817 = vmatpush1.bf16.msra.mxu0 0
        %1818 = vmatprep.subr.bf16.mxu0 0
        %1819 = vmatpush1.bf16.msra.mxu0 0
        %1820 = vmatprep.subr.bf16.mxu0 0
        %1821 = vmatpush1.bf16.msra.mxu0 0
        %1822 = vmatprep.subr.bf16.mxu0 0
        %1823 = vmatpush1.bf16.msra.mxu0 0
        %1824 = vmatprep.subr.bf16.mxu0 0
        %1825 = vmatpush1.bf16.msra.mxu0 0
        %1826 = vmatprep.subr.bf16.mxu0 0
        %1827 = vmatpush1.bf16.msra.mxu0 0
        %1828 = vmatprep.subr.bf16.mxu0 0
        %1829 = vmatpush1.bf16.msra.mxu0 0
        %1830 = vmatprep.subr.bf16.mxu0 0
        %1831 = vmatpush1.bf16.msra.mxu0 0
        %1832 = vmatprep.subr.bf16.mxu0 0
        %1833 = vmatpush1.bf16.msra.mxu0 0
        %1834 = vmatprep.subr.bf16.mxu0 0
        %1835 = vmatpush1.bf16.msra.mxu0 0
        %1836 = vmatprep.mubr.bf16.mxu0 0
        %1837 = vmatmul.mubr.bf16.gmra.mrb[0].mxu0 %v1799
        %v1838 = vpop.f32.mrb[0].mxu0
        %v1839 = vadd.f32 0.0, %v1838
        %v1840 = vpop.f32.mrb[0].mxu0
        %v1841 = vpop.f32.mrb[0].mxu0
        %v1842 = vpop.f32.mrb[0].mxu0
        %1843 = vdwg.mxu0
        %v1844 = vadd.f32 %v1754, %v1839
        %s1845 = scalar_lea.vmem %s3, 144
        %v1846 = vld [vmem:[%s1845] sm:$0xf]
        %v1847 = vld [vmem:[%s1845 + $0x4] sm:$0xf]
        %v1848 = vld [vmem:[%s1845 + $0x8] sm:$0xf]
        %v1849 = vld [vmem:[%s1845 + $0xc] sm:$0xf]
        %v1850 = vld [vmem:[%s1845 + $0x10] sm:$0xf]
        %v1851 = vld [vmem:[%s1845 + $0x14] sm:$0xf]
        %v1852 = vld [vmem:[%s1845 + $0x18] sm:$0xf]
        %v1853 = vld [vmem:[%s1845 + $0x1c] sm:$0xf]
        %v1854 = vld [vmem:[%s1845 + $0x20] sm:$0xf]
        %v1856 = vrot.slane %v1035, 1
        %v1866 = vunpack.c.l.b16 %v1846
        %v1867 = vunpack.c.l.b16 %v1847
        %v1868 = vunpack.c.l.b16 %v1848
        %v1869 = vunpack.c.l.b16 %v1849
        %v1870 = vunpack.c.l.b16 %v1850
        %v1871 = vunpack.c.l.b16 %v1851
        %v1872 = vunpack.c.l.b16 %v1852
        %v1873 = vunpack.c.l.b16 %v1853
        %v1874 = vunpack.c.l.b16 %v1854
        %v1875 = vpack.c.b16 %v1867, %v1866
        %v1876 = vpack.c.b16 %v1869, %v1868
        %v1877 = vpack.c.b16 %v1871, %v1870
        %v1878 = vpack.c.b16 %v1873, %v1872
        %v1879 = vpack.c.b16 %v1874, %v1874
        %v1885 = vsel %vm1544, %v1856, 0
        %v1888 = vsel %vm1548, %v1879, 0
        %1890 = vmatprep.subr.bf16.mxu0 0
        %1891 = vmatpush1.bf16.msra.mxu0 %v1875
        %1892 = vmatprep.subr.bf16.mxu0 0
        %1893 = vmatpush1.bf16.msra.mxu0 %v1876
        %1894 = vmatprep.subr.bf16.mxu0 0
        %1895 = vmatpush1.bf16.msra.mxu0 %v1877
        %1896 = vmatprep.subr.bf16.mxu0 0
        %1897 = vmatpush1.bf16.msra.mxu0 %v1878
        %1898 = vmatprep.subr.bf16.mxu0 0
        %1899 = vmatpush1.bf16.msra.mxu0 %v1888
        %1900 = vmatprep.subr.bf16.mxu0 0
        %1901 = vmatpush1.bf16.msra.mxu0 0
        %1902 = vmatprep.subr.bf16.mxu0 0
        %1903 = vmatpush1.bf16.msra.mxu0 0
        %1904 = vmatprep.subr.bf16.mxu0 0
        %1905 = vmatpush1.bf16.msra.mxu0 0
        %1906 = vmatprep.subr.bf16.mxu0 0
        %1907 = vmatpush1.bf16.msra.mxu0 0
        %1908 = vmatprep.subr.bf16.mxu0 0
        %1909 = vmatpush1.bf16.msra.mxu0 0
        %1910 = vmatprep.subr.bf16.mxu0 0
        %1911 = vmatpush1.bf16.msra.mxu0 0
        %1912 = vmatprep.subr.bf16.mxu0 0
        %1913 = vmatpush1.bf16.msra.mxu0 0
        %1914 = vmatprep.subr.bf16.mxu0 0
        %1915 = vmatpush1.bf16.msra.mxu0 0
        %1916 = vmatprep.subr.bf16.mxu0 0
        %1917 = vmatpush1.bf16.msra.mxu0 0
        %1918 = vmatprep.subr.bf16.mxu0 0
        %1919 = vmatpush1.bf16.msra.mxu0 0
        %1920 = vmatprep.subr.bf16.mxu0 0
        %1921 = vmatpush1.bf16.msra.mxu0 0
        %1922 = vmatprep.mubr.bf16.mxu0 0
        %1923 = vmatmul.mubr.bf16.gmra.mrb[0].mxu0 %v1885
        %v1924 = vpop.f32.mrb[0].mxu0
        %v1925 = vadd.f32 0.0, %v1924
        %v1926 = vpop.f32.mrb[0].mxu0
        %v1927 = vpop.f32.mrb[0].mxu0
        %v1928 = vpop.f32.mrb[0].mxu0
        %1929 = vdwg.mxu0
        %v1930 = vadd.f32 %v1844, %v1925
        %1931 = vmatprep.subr.bf16.mxu0 0
        %1932 = vmatpush1.bf16.msra.mxu0 %v1535
        %1933 = vmatprep.subr.bf16.mxu0 0
        %1934 = vmatpush1.bf16.msra.mxu0 %v1536
        %1935 = vmatprep.subr.bf16.mxu0 0
        %1936 = vmatpush1.bf16.msra.mxu0 %v1537
        %1937 = vmatprep.subr.bf16.mxu0 0
        %1938 = vmatpush1.bf16.msra.mxu0 %v1538
        %1939 = vmatprep.subr.bf16.mxu0 0
        %1940 = vmatpush1.bf16.msra.mxu0 %v1550
        %1941 = vmatprep.subr.bf16.mxu0 0
        %1942 = vmatpush1.bf16.msra.mxu0 0
        %1943 = vmatprep.subr.bf16.mxu0 0
        %1944 = vmatpush1.bf16.msra.mxu0 0
        %1945 = vmatprep.subr.bf16.mxu0 0
        %1946 = vmatpush1.bf16.msra.mxu0 0
        %1947 = vmatprep.subr.bf16.mxu0 0
        %1948 = vmatpush1.bf16.msra.mxu0 0
        %1949 = vmatprep.subr.bf16.mxu0 0
        %1950 = vmatpush1.bf16.msra.mxu0 0
        %1951 = vmatprep.subr.bf16.mxu0 0
        %1952 = vmatpush1.bf16.msra.mxu0 0
        %1953 = vmatprep.subr.bf16.mxu0 0
        %1954 = vmatpush1.bf16.msra.mxu0 0
        %1955 = vmatprep.subr.bf16.mxu0 0
        %1956 = vmatpush1.bf16.msra.mxu0 0
        %1957 = vmatprep.subr.bf16.mxu0 0
        %1958 = vmatpush1.bf16.msra.mxu0 0
        %1959 = vmatprep.subr.bf16.mxu0 0
        %1960 = vmatpush1.bf16.msra.mxu0 0
        %1961 = vmatprep.subr.bf16.mxu0 0
        %1962 = vmatpush1.bf16.msra.mxu0 0
        %1963 = vmatprep.mubr.bf16.mxu0 0
        %1964 = vmatmul.mubr.bf16.gmra.mrb[0].mxu0 %v1709
        %v1965 = vpop.f32.mrb[0].mxu0
        %v1966 = vadd.f32 0.0, %v1965
        %v1967 = vpop.f32.mrb[0].mxu0
        %v1968 = vpop.f32.mrb[0].mxu0
        %v1969 = vpop.f32.mrb[0].mxu0
        %1970 = vdwg.mxu0
        %1971 = vmatprep.subr.bf16.mxu0 0
        %1972 = vmatpush1.bf16.msra.mxu0 %v1610
        %1973 = vmatprep.subr.bf16.mxu0 0
        %1974 = vmatpush1.bf16.msra.mxu0 %v1611
        %1975 = vmatprep.subr.bf16.mxu0 0
        %1976 = vmatpush1.bf16.msra.mxu0 %v1612
        %1977 = vmatprep.subr.bf16.mxu0 0
        %1978 = vmatpush1.bf16.msra.mxu0 %v1613
        %1979 = vmatprep.subr.bf16.mxu0 0
        %1980 = vmatpush1.bf16.msra.mxu0 %v1623
        %1981 = vmatprep.subr.bf16.mxu0 0
        %1982 = vmatpush1.bf16.msra.mxu0 0
        %1983 = vmatprep.subr.bf16.mxu0 0
        %1984 = vmatpush1.bf16.msra.mxu0 0
        %1985 = vmatprep.subr.bf16.mxu0 0
        %1986 = vmatpush1.bf16.msra.mxu0 0
        %1987 = vmatprep.subr.bf16.mxu0 0
        %1988 = vmatpush1.bf16.msra.mxu0 0
        %1989 = vmatprep.subr.bf16.mxu0 0
        %1990 = vmatpush1.bf16.msra.mxu0 0
        %1991 = vmatprep.subr.bf16.mxu0 0
        %1992 = vmatpush1.bf16.msra.mxu0 0
        %1993 = vmatprep.subr.bf16.mxu0 0
        %1994 = vmatpush1.bf16.msra.mxu0 0
        %1995 = vmatprep.subr.bf16.mxu0 0
        %1996 = vmatpush1.bf16.msra.mxu0 0
        %1997 = vmatprep.subr.bf16.mxu0 0
        %1998 = vmatpush1.bf16.msra.mxu0 0
        %1999 = vmatprep.subr.bf16.mxu0 0
        %2000 = vmatpush1.bf16.msra.mxu0 0
        %2001 = vmatprep.subr.bf16.mxu0 0
        %2002 = vmatpush1.bf16.msra.mxu0 0
        %2003 = vmatprep.mubr.bf16.mxu0 0
        %2004 = vmatmul.mubr.bf16.gmra.mrb[0].mxu0 %v1546
        %v2005 = vpop.f32.mrb[0].mxu0
        %v2006 = vadd.f32 %v1966, %v2005
        %v2007 = vpop.f32.mrb[0].mxu0
        %v2008 = vpop.f32.mrb[0].mxu0
        %v2009 = vpop.f32.mrb[0].mxu0
        %2010 = vdwg.mxu0
        %2011 = vmatprep.subr.bf16.mxu0 0
        %2012 = vmatpush1.bf16.msra.mxu0 %v1699
        %2013 = vmatprep.subr.bf16.mxu0 0
        %2014 = vmatpush1.bf16.msra.mxu0 %v1700
        %2015 = vmatprep.subr.bf16.mxu0 0
        %2016 = vmatpush1.bf16.msra.mxu0 %v1701
        %2017 = vmatprep.subr.bf16.mxu0 0
        %2018 = vmatpush1.bf16.msra.mxu0 %v1702
        %2019 = vmatprep.subr.bf16.mxu0 0
        %2020 = vmatpush1.bf16.msra.mxu0 %v1712
        %2021 = vmatprep.subr.bf16.mxu0 0
        %2022 = vmatpush1.bf16.msra.mxu0 0
        %2023 = vmatprep.subr.bf16.mxu0 0
        %2024 = vmatpush1.bf16.msra.mxu0 0
        %2025 = vmatprep.subr.bf16.mxu0 0
        %2026 = vmatpush1.bf16.msra.mxu0 0
        %2027 = vmatprep.subr.bf16.mxu0 0
        %2028 = vmatpush1.bf16.msra.mxu0 0
        %2029 = vmatprep.subr.bf16.mxu0 0
        %2030 = vmatpush1.bf16.msra.mxu0 0
        %2031 = vmatprep.subr.bf16.mxu0 0
        %2032 = vmatpush1.bf16.msra.mxu0 0
        %2033 = vmatprep.subr.bf16.mxu0 0
        %2034 = vmatpush1.bf16.msra.mxu0 0
        %2035 = vmatprep.subr.bf16.mxu0 0
        %2036 = vmatpush1.bf16.msra.mxu0 0
        %2037 = vmatprep.subr.bf16.mxu0 0
        %2038 = vmatpush1.bf16.msra.mxu0 0
        %2039 = vmatprep.subr.bf16.mxu0 0
        %2040 = vmatpush1.bf16.msra.mxu0 0
        %2041 = vmatprep.subr.bf16.mxu0 0
        %2042 = vmatpush1.bf16.msra.mxu0 0
        %2043 = vmatprep.mubr.bf16.mxu0 0
        %2044 = vmatmul.mubr.bf16.gmra.mrb[0].mxu0 %v1799
        %v2045 = vpop.f32.mrb[0].mxu0
        %v2046 = vadd.f32 0.0, %v2045
        %v2047 = vpop.f32.mrb[0].mxu0
        %v2048 = vpop.f32.mrb[0].mxu0
        %v2049 = vpop.f32.mrb[0].mxu0
        %2050 = vdwg.mxu0
        %v2051 = vadd.f32 %v2006, %v2046
        %2052 = vmatprep.subr.bf16.mxu0 0
        %2053 = vmatpush1.bf16.msra.mxu0 %v1789
        %2054 = vmatprep.subr.bf16.mxu0 0
        %2055 = vmatpush1.bf16.msra.mxu0 %v1790
        %2056 = vmatprep.subr.bf16.mxu0 0
        %2057 = vmatpush1.bf16.msra.mxu0 %v1791
        %2058 = vmatprep.subr.bf16.mxu0 0
        %2059 = vmatpush1.bf16.msra.mxu0 %v1792
        %2060 = vmatprep.subr.bf16.mxu0 0
        %2061 = vmatpush1.bf16.msra.mxu0 %v1802
        %2062 = vmatprep.subr.bf16.mxu0 0
        %2063 = vmatpush1.bf16.msra.mxu0 0
        %2064 = vmatprep.subr.bf16.mxu0 0
        %2065 = vmatpush1.bf16.msra.mxu0 0
        %2066 = vmatprep.subr.bf16.mxu0 0
        %2067 = vmatpush1.bf16.msra.mxu0 0
        %2068 = vmatprep.subr.bf16.mxu0 0
        %2069 = vmatpush1.bf16.msra.mxu0 0
        %2070 = vmatprep.subr.bf16.mxu0 0
        %2071 = vmatpush1.bf16.msra.mxu0 0
        %2072 = vmatprep.subr.bf16.mxu0 0
        %2073 = vmatpush1.bf16.msra.mxu0 0
        %2074 = vmatprep.subr.bf16.mxu0 0
        %2075 = vmatpush1.bf16.msra.mxu0 0
        %2076 = vmatprep.subr.bf16.mxu0 0
        %2077 = vmatpush1.bf16.msra.mxu0 0
        %2078 = vmatprep.subr.bf16.mxu0 0
        %2079 = vmatpush1.bf16.msra.mxu0 0
        %2080 = vmatprep.subr.bf16.mxu0 0
        %2081 = vmatpush1.bf16.msra.mxu0 0
        %2082 = vmatprep.subr.bf16.mxu0 0
        %2083 = vmatpush1.bf16.msra.mxu0 0
        %2084 = vmatprep.mubr.bf16.mxu0 0
        %2085 = vmatmul.mubr.bf16.gmra.mrb[0].mxu0 %v1885
        %v2086 = vpop.f32.mrb[0].mxu0
        %v2087 = vadd.f32 0.0, %v2086
        %v2088 = vpop.f32.mrb[0].mxu0
        %v2089 = vpop.f32.mrb[0].mxu0
        %v2090 = vpop.f32.mrb[0].mxu0
        %2091 = vdwg.mxu0
        %v2092 = vadd.f32 %v2051, %v2087
        %v2094 = vrot.slane %v1497, 1
        %v2096 = vsel %vm1544, %v2094, 0
        %2098 = vmatprep.subr.bf16.mxu0 0
        %2099 = vmatpush1.bf16.msra.mxu0 %v1875
        %2100 = vmatprep.subr.bf16.mxu0 0
        %2101 = vmatpush1.bf16.msra.mxu0 %v1876
        %2102 = vmatprep.subr.bf16.mxu0 0
        %2103 = vmatpush1.bf16.msra.mxu0 %v1877
        %2104 = vmatprep.subr.bf16.mxu0 0
        %2105 = vmatpush1.bf16.msra.mxu0 %v1878
        %2106 = vmatprep.subr.bf16.mxu0 0
        %2107 = vmatpush1.bf16.msra.mxu0 %v1888
        %2108 = vmatprep.subr.bf16.mxu0 0
        %2109 = vmatpush1.bf16.msra.mxu0 0
        %2110 = vmatprep.subr.bf16.mxu0 0
        %2111 = vmatpush1.bf16.msra.mxu0 0
        %2112 = vmatprep.subr.bf16.mxu0 0
        %2113 = vmatpush1.bf16.msra.mxu0 0
        %2114 = vmatprep.subr.bf16.mxu0 0
        %2115 = vmatpush1.bf16.msra.mxu0 0
        %2116 = vmatprep.subr.bf16.mxu0 0
        %2117 = vmatpush1.bf16.msra.mxu0 0
        %2118 = vmatprep.subr.bf16.mxu0 0
        %2119 = vmatpush1.bf16.msra.mxu0 0
        %2120 = vmatprep.subr.bf16.mxu0 0
        %2121 = vmatpush1.bf16.msra.mxu0 0
        %2122 = vmatprep.subr.bf16.mxu0 0
        %2123 = vmatpush1.bf16.msra.mxu0 0
        %2124 = vmatprep.subr.bf16.mxu0 0
        %2125 = vmatpush1.bf16.msra.mxu0 0
        %2126 = vmatprep.subr.bf16.mxu0 0
        %2127 = vmatpush1.bf16.msra.mxu0 0
        %2128 = vmatprep.subr.bf16.mxu0 0
        %2129 = vmatpush1.bf16.msra.mxu0 0
        %2130 = vmatprep.mubr.bf16.mxu0 0
        %2131 = vmatmul.mubr.bf16.gmra.mrb[0].mxu0 %v2096
        %v2132 = vpop.f32.mrb[0].mxu0
        %v2133 = vadd.f32 0.0, %v2132
        %v2134 = vpop.f32.mrb[0].mxu0
        %v2135 = vpop.f32.mrb[0].mxu0
        %v2136 = vpop.f32.mrb[0].mxu0
        %2137 = vdwg.mxu0
        %v2138 = vadd.f32 %v2092, %v2133
        %v2139 = vmax.f32 %v1930, %v2138
        %2141 = vrot.lane.b32.xlu0 %v2139, 64
        %v2142 = vpop.permute.xlu0 %2141
        %v2144 = vmax.f32 %v2139, %v2142
        %v2146 = vlaneseq
        %v2147 = vshrl.u32 %v2146, 7
        %v2148 = vsub.s32 0, %v2147
        %v2149 = vrot.slane %v401, %v2148
        %v2151 = vadd.f32 %v2144, %v2149
        %v2152 = vmax.f32 %v2151, 0.0
        %v2153 = vpack.c.bf16 %v2152, %v2152
        %v2154 = vld [vmem:[#allocation2] sm:$0xf]
        %v2155 = vld [vmem:[#allocation2 + $0x4] sm:$0xf]
        %v2156 = vld [vmem:[#allocation2 + $0x8] sm:$0xf]
        %v2157 = vld [vmem:[#allocation2 + $0xc] sm:$0xf]
        %v2158 = vld [vmem:[#allocation2 + $0x10] sm:$0xf]
        %v2159 = vld [vmem:[#allocation2 + $0x14] sm:$0xf]
        %v2160 = vld [vmem:[#allocation2 + $0x18] sm:$0xf]
        %v2161 = vld [vmem:[#allocation2 + $0x1c] sm:$0xf]
        %s2162 = scalar_lea.vmem [#allocation2], 32
        %v2163 = vld [vmem:[%s2162] sm:$0xf]
        %v2164 = vld [vmem:[%s2162 + $0x4] sm:$0xf]
        %v2165 = vld [vmem:[%s2162 + $0x8] sm:$0xf]
        %v2166 = vld [vmem:[%s2162 + $0xc] sm:$0xf]
        %v2167 = vld [vmem:[%s2162 + $0x10] sm:$0xf]
        %v2168 = vld [vmem:[%s2162 + $0x14] sm:$0xf]
        %v2169 = vld [vmem:[%s2162 + $0x18] sm:$0xf]
        %v2170 = vld [vmem:[%s2162 + $0x1c] sm:$0xf]
        %v2172 = vshrl.u32 %v2153, 16
        %v2182 = vunpack.c.l.b16 %v2163
        %v2183 = vunpack.c.l.b16 %v2164
        %v2184 = vunpack.c.l.b16 %v2165
        %v2185 = vunpack.c.l.b16 %v2166
        %v2186 = vunpack.c.l.b16 %v2167
        %v2187 = vunpack.c.l.b16 %v2168
        %v2188 = vunpack.c.l.b16 %v2169
        %v2189 = vunpack.c.l.b16 %v2170
        %v2190 = vpack.c.b16 %v2183, %v2182
        %v2191 = vpack.c.b16 %v2185, %v2184
        %v2192 = vpack.c.b16 %v2187, %v2186
        %v2193 = vpack.c.b16 %v2189, %v2188
        %vm2198 = vcmask 523264
        %v2200 = vsel %vm2198, %v2172, 0
        %2202 = vmatprep.subr.bf16.mxu0 0
        %2203 = vmatpush1.bf16.msra.mxu0 %v2190
        %2204 = vmatprep.subr.bf16.mxu0 0
        %2205 = vmatpush1.bf16.msra.mxu0 %v2191
        %2206 = vmatprep.subr.bf16.mxu0 0
        %2207 = vmatpush1.bf16.msra.mxu0 %v2192
        %2208 = vmatprep.subr.bf16.mxu0 0
        %2209 = vmatpush1.bf16.msra.mxu0 %v2193
        %2210 = vmatprep.subr.bf16.mxu0 0
        %2211 = vmatpush1.bf16.msra.mxu0 0
        %2212 = vmatprep.subr.bf16.mxu0 0
        %2213 = vmatpush1.bf16.msra.mxu0 0
        %2214 = vmatprep.subr.bf16.mxu0 0
        %2215 = vmatpush1.bf16.msra.mxu0 0
        %2216 = vmatprep.subr.bf16.mxu0 0
        %2217 = vmatpush1.bf16.msra.mxu0 0
        %2218 = vmatprep.subr.bf16.mxu0 0
        %2219 = vmatpush1.bf16.msra.mxu0 0
        %2220 = vmatprep.subr.bf16.mxu0 0
        %2221 = vmatpush1.bf16.msra.mxu0 0
        %2222 = vmatprep.subr.bf16.mxu0 0
        %2223 = vmatpush1.bf16.msra.mxu0 0
        %2224 = vmatprep.subr.bf16.mxu0 0
        %2225 = vmatpush1.bf16.msra.mxu0 0
        %2226 = vmatprep.subr.bf16.mxu0 0
        %2227 = vmatpush1.bf16.msra.mxu0 0
        %2228 = vmatprep.subr.bf16.mxu0 0
        %2229 = vmatpush1.bf16.msra.mxu0 0
        %2230 = vmatprep.subr.bf16.mxu0 0
        %2231 = vmatpush1.bf16.msra.mxu0 0
        %2232 = vmatprep.subr.bf16.mxu0 0
        %2233 = vmatpush1.bf16.msra.mxu0 0
        %2234 = vmatprep.mubr.bf16.mxu0 0
        %2235 = vmatmul.mubr.bf16.gmra.mrb[0].mxu0 %v2200
        %v2236 = vpop.f32.mrb[0].mxu0
        %v2237 = vadd.f32 0.0, %v2236
        %v2238 = vpop.f32.mrb[0].mxu0
        %v2239 = vpop.f32.mrb[0].mxu0
        %v2240 = vpop.f32.mrb[0].mxu0
        %2241 = vdwg.mxu0
        %v2250 = vunpack.c.l.b16 %v2154
        %v2251 = vunpack.c.l.b16 %v2155
        %v2252 = vunpack.c.l.b16 %v2156
        %v2253 = vunpack.c.l.b16 %v2157
        %v2254 = vunpack.c.l.b16 %v2158
        %v2255 = vunpack.c.l.b16 %v2159
        %v2256 = vunpack.c.l.b16 %v2160
        %v2257 = vunpack.c.l.b16 %v2161
        %v2258 = vpack.c.b16 %v2251, %v2250
        %v2259 = vpack.c.b16 %v2253, %v2252
        %v2260 = vpack.c.b16 %v2255, %v2254
        %v2261 = vpack.c.b16 %v2257, %v2256
        %v2266 = vsel %vm2198, %v2153, 0
        %2268 = vmatprep.subr.bf16.mxu0 0
        %2269 = vmatpush1.bf16.msra.mxu0 %v2258
        %2270 = vmatprep.subr.bf16.mxu0 0
        %2271 = vmatpush1.bf16.msra.mxu0 %v2259
        %2272 = vmatprep.subr.bf16.mxu0 0
        %2273 = vmatpush1.bf16.msra.mxu0 %v2260
        %2274 = vmatprep.subr.bf16.mxu0 0
        %2275 = vmatpush1.bf16.msra.mxu0 %v2261
        %2276 = vmatprep.subr.bf16.mxu0 0
        %2277 = vmatpush1.bf16.msra.mxu0 0
        %2278 = vmatprep.subr.bf16.mxu0 0
        %2279 = vmatpush1.bf16.msra.mxu0 0
        %2280 = vmatprep.subr.bf16.mxu0 0
        %2281 = vmatpush1.bf16.msra.mxu0 0
        %2282 = vmatprep.subr.bf16.mxu0 0
        %2283 = vmatpush1.bf16.msra.mxu0 0
        %2284 = vmatprep.subr.bf16.mxu0 0
        %2285 = vmatpush1.bf16.msra.mxu0 0
        %2286 = vmatprep.subr.bf16.mxu0 0
        %2287 = vmatpush1.bf16.msra.mxu0 0
        %2288 = vmatprep.subr.bf16.mxu0 0
        %2289 = vmatpush1.bf16.msra.mxu0 0
        %2290 = vmatprep.subr.bf16.mxu0 0
        %2291 = vmatpush1.bf16.msra.mxu0 0
        %2292 = vmatprep.subr.bf16.mxu0 0
        %2293 = vmatpush1.bf16.msra.mxu0 0
        %2294 = vmatprep.subr.bf16.mxu0 0
        %2295 = vmatpush1.bf16.msra.mxu0 0
        %2296 = vmatprep.subr.bf16.mxu0 0
        %2297 = vmatpush1.bf16.msra.mxu0 0
        %2298 = vmatprep.subr.bf16.mxu0 0
        %2299 = vmatpush1.bf16.msra.mxu0 0
        %2300 = vmatprep.mubr.bf16.mxu0 0
        %2301 = vmatmul.mubr.bf16.gmra.mrb[0].mxu0 %v2266
        %v2302 = vpop.f32.mrb[0].mxu0
        %v2303 = vadd.f32 %v2237, %v2302
        %v2304 = vpop.f32.mrb[0].mxu0
        %v2305 = vpop.f32.mrb[0].mxu0
        %v2306 = vpop.f32.mrb[0].mxu0
        %2307 = vdwg.mxu0
        %s2308 = scalar_lea.vmem [#allocation2], 64
        %v2309 = vld [vmem:[%s2308] sm:$0xf]
        %v2310 = vld [vmem:[%s2308 + $0x4] sm:$0xf]
        %v2311 = vld [vmem:[%s2308 + $0x8] sm:$0xf]
        %v2312 = vld [vmem:[%s2308 + $0xc] sm:$0xf]
        %v2313 = vld [vmem:[%s2308 + $0x10] sm:$0xf]
        %v2314 = vld [vmem:[%s2308 + $0x14] sm:$0xf]
        %v2315 = vld [vmem:[%s2308 + $0x18] sm:$0xf]
        %v2316 = vld [vmem:[%s2308 + $0x1c] sm:$0xf]
        %v2318 = vrot.slane %v2153, 1
        %v2327 = vunpack.c.l.b16 %v2309
        %v2328 = vunpack.c.l.b16 %v2310
        %v2329 = vunpack.c.l.b16 %v2311
        %v2330 = vunpack.c.l.b16 %v2312
        %v2331 = vunpack.c.l.b16 %v2313
        %v2332 = vunpack.c.l.b16 %v2314
        %v2333 = vunpack.c.l.b16 %v2315
        %v2334 = vunpack.c.l.b16 %v2316
        %v2335 = vpack.c.b16 %v2328, %v2327
        %v2336 = vpack.c.b16 %v2330, %v2329
        %v2337 = vpack.c.b16 %v2332, %v2331
        %v2338 = vpack.c.b16 %v2334, %v2333
        %v2344 = vsel %vm2198, %v2318, 0
        %2346 = vmatprep.subr.bf16.mxu0 0
        %2347 = vmatpush1.bf16.msra.mxu0 %v2335
        %2348 = vmatprep.subr.bf16.mxu0 0
        %2349 = vmatpush1.bf16.msra.mxu0 %v2336
        %2350 = vmatprep.subr.bf16.mxu0 0
        %2351 = vmatpush1.bf16.msra.mxu0 %v2337
        %2352 = vmatprep.subr.bf16.mxu0 0
        %2353 = vmatpush1.bf16.msra.mxu0 %v2338
        %2354 = vmatprep.subr.bf16.mxu0 0
        %2355 = vmatpush1.bf16.msra.mxu0 0
        %2356 = vmatprep.subr.bf16.mxu0 0
        %2357 = vmatpush1.bf16.msra.mxu0 0
        %2358 = vmatprep.subr.bf16.mxu0 0
        %2359 = vmatpush1.bf16.msra.mxu0 0
        %2360 = vmatprep.subr.bf16.mxu0 0
        %2361 = vmatpush1.bf16.msra.mxu0 0
        %2362 = vmatprep.subr.bf16.mxu0 0
        %2363 = vmatpush1.bf16.msra.mxu0 0
        %2364 = vmatprep.subr.bf16.mxu0 0
        %2365 = vmatpush1.bf16.msra.mxu0 0
        %2366 = vmatprep.subr.bf16.mxu0 0
        %2367 = vmatpush1.bf16.msra.mxu0 0
        %2368 = vmatprep.subr.bf16.mxu0 0
        %2369 = vmatpush1.bf16.msra.mxu0 0
        %2370 = vmatprep.subr.bf16.mxu0 0
        %2371 = vmatpush1.bf16.msra.mxu0 0
        %2372 = vmatprep.subr.bf16.mxu0 0
        %2373 = vmatpush1.bf16.msra.mxu0 0
        %2374 = vmatprep.subr.bf16.mxu0 0
        %2375 = vmatpush1.bf16.msra.mxu0 0
        %2376 = vmatprep.subr.bf16.mxu0 0
        %2377 = vmatpush1.bf16.msra.mxu0 0
        %2378 = vmatprep.mubr.bf16.mxu0 0
        %2379 = vmatmul.mubr.bf16.gmra.mrb[0].mxu0 %v2344
        %v2380 = vpop.f32.mrb[0].mxu0
        %v2381 = vadd.f32 0.0, %v2380
        %v2382 = vpop.f32.mrb[0].mxu0
        %v2383 = vpop.f32.mrb[0].mxu0
        %v2384 = vpop.f32.mrb[0].mxu0
        %2385 = vdwg.mxu0
        %v2386 = vadd.f32 %v2303, %v2381
        %s2387 = scalar_lea.vmem [#allocation2], 96
        %v2388 = vld [vmem:[%s2387] sm:$0xf]
        %v2389 = vld [vmem:[%s2387 + $0x4] sm:$0xf]
        %v2390 = vld [vmem:[%s2387 + $0x8] sm:$0xf]
        %v2391 = vld [vmem:[%s2387 + $0xc] sm:$0xf]
        %v2392 = vld [vmem:[%s2387 + $0x10] sm:$0xf]
        %v2393 = vld [vmem:[%s2387 + $0x14] sm:$0xf]
        %v2394 = vld [vmem:[%s2387 + $0x18] sm:$0xf]
        %v2395 = vld [vmem:[%s2387 + $0x1c] sm:$0xf]
        %v2396 = vrot.slane %v2172, 1
        %v2405 = vunpack.c.l.b16 %v2388
        %v2406 = vunpack.c.l.b16 %v2389
        %v2407 = vunpack.c.l.b16 %v2390
        %v2408 = vunpack.c.l.b16 %v2391
        %v2409 = vunpack.c.l.b16 %v2392
        %v2410 = vunpack.c.l.b16 %v2393
        %v2411 = vunpack.c.l.b16 %v2394
        %v2412 = vunpack.c.l.b16 %v2395
        %v2413 = vpack.c.b16 %v2406, %v2405
        %v2414 = vpack.c.b16 %v2408, %v2407
        %v2415 = vpack.c.b16 %v2410, %v2409
        %v2416 = vpack.c.b16 %v2412, %v2411
        %v2422 = vsel %vm2198, %v2396, 0
        %2424 = vmatprep.subr.bf16.mxu0 0
        %2425 = vmatpush1.bf16.msra.mxu0 %v2413
        %2426 = vmatprep.subr.bf16.mxu0 0
        %2427 = vmatpush1.bf16.msra.mxu0 %v2414
        %2428 = vmatprep.subr.bf16.mxu0 0
        %2429 = vmatpush1.bf16.msra.mxu0 %v2415
        %2430 = vmatprep.subr.bf16.mxu0 0
        %2431 = vmatpush1.bf16.msra.mxu0 %v2416
        %2432 = vmatprep.subr.bf16.mxu0 0
        %2433 = vmatpush1.bf16.msra.mxu0 0
        %2434 = vmatprep.subr.bf16.mxu0 0
        %2435 = vmatpush1.bf16.msra.mxu0 0
        %2436 = vmatprep.subr.bf16.mxu0 0
        %2437 = vmatpush1.bf16.msra.mxu0 0
        %2438 = vmatprep.subr.bf16.mxu0 0
        %2439 = vmatpush1.bf16.msra.mxu0 0
        %2440 = vmatprep.subr.bf16.mxu0 0
        %2441 = vmatpush1.bf16.msra.mxu0 0
        %2442 = vmatprep.subr.bf16.mxu0 0
        %2443 = vmatpush1.bf16.msra.mxu0 0
        %2444 = vmatprep.subr.bf16.mxu0 0
        %2445 = vmatpush1.bf16.msra.mxu0 0
        %2446 = vmatprep.subr.bf16.mxu0 0
        %2447 = vmatpush1.bf16.msra.mxu0 0
        %2448 = vmatprep.subr.bf16.mxu0 0
        %2449 = vmatpush1.bf16.msra.mxu0 0
        %2450 = vmatprep.subr.bf16.mxu0 0
        %2451 = vmatpush1.bf16.msra.mxu0 0
        %2452 = vmatprep.subr.bf16.mxu0 0
        %2453 = vmatpush1.bf16.msra.mxu0 0
        %2454 = vmatprep.subr.bf16.mxu0 0
        %2455 = vmatpush1.bf16.msra.mxu0 0
        %2456 = vmatprep.mubr.bf16.mxu0 0
        %2457 = vmatmul.mubr.bf16.gmra.mrb[0].mxu0 %v2422
        %v2458 = vpop.f32.mrb[0].mxu0
        %v2459 = vadd.f32 0.0, %v2458
        %v2460 = vpop.f32.mrb[0].mxu0
        %v2461 = vpop.f32.mrb[0].mxu0
        %v2462 = vpop.f32.mrb[0].mxu0
        %2463 = vdwg.mxu0
        %v2464 = vadd.f32 %v2386, %v2459
        %v2465 = vadd.f32 %v2464, %v402
        %v2466 = vmax.f32 %v2465, 0.0
        %v2467 = vpack.c.bf16 %v2466, %v2466
        %v2468 = vld [vmem:[%s7] sm:$0xf]
        %v2469 = vld [vmem:[%s7 + $0x4] sm:$0xf]
        %v2470 = vld [vmem:[%s7 + $0x8] sm:$0xf]
        %v2471 = vld [vmem:[%s7 + $0xc] sm:$0xf]
        %v2472 = vld [vmem:[%s7 + $0x10] sm:$0xf]
        %v2473 = vld [vmem:[%s7 + $0x14] sm:$0xf]
        %v2474 = vld [vmem:[%s7 + $0x18] sm:$0xf]
        %v2475 = vld [vmem:[%s7 + $0x1c] sm:$0xf]
        %v2476 = vld [vmem:[%s7 + $0x20] sm:$0xf]
        %v2477 = vld [vmem:[%s7 + $0x24] sm:$0xf]
        %v2478 = vld [vmem:[%s7 + $0x28] sm:$0xf]
        %v2479 = vld [vmem:[%s7 + $0x2c] sm:$0xf]
        %v2480 = vld [vmem:[%s7 + $0x30] sm:$0xf]
        %v2481 = vld [vmem:[%s7 + $0x34] sm:$0xf]
        %v2482 = vld [vmem:[%s7 + $0x38] sm:$0xf]
        %v2498 = vunpack.c.l.b16 %v2468
        %v2499 = vunpack.c.l.b16 %v2469
        %v2500 = vunpack.c.l.b16 %v2470
        %v2501 = vunpack.c.l.b16 %v2471
        %v2502 = vunpack.c.l.b16 %v2472
        %v2503 = vunpack.c.l.b16 %v2473
        %v2504 = vunpack.c.l.b16 %v2474
        %v2505 = vunpack.c.l.b16 %v2475
        %v2506 = vunpack.c.l.b16 %v2476
        %v2507 = vunpack.c.l.b16 %v2477
        %v2508 = vunpack.c.l.b16 %v2478
        %v2509 = vunpack.c.l.b16 %v2479
        %v2510 = vunpack.c.l.b16 %v2480
        %v2511 = vunpack.c.l.b16 %v2481
        %v2512 = vunpack.c.l.b16 %v2482
        %v2513 = vpack.c.b16 %v2499, %v2498
        %v2514 = vpack.c.b16 %v2501, %v2500
        %v2515 = vpack.c.b16 %v2503, %v2502
        %v2516 = vpack.c.b16 %v2505, %v2504
        %v2517 = vpack.c.b16 %v2507, %v2506
        %v2518 = vpack.c.b16 %v2509, %v2508
        %v2519 = vpack.c.b16 %v2511, %v2510
        %v2520 = vpack.c.b16 %v2512, %v2512
        %vm2528 = vcmask 982016
        %v2530 = vsel %vm2528, %v2467, 0
        %v2533 = vsel %vm1548, %v2520, 0
        %2535 = vmatprep.subr.bf16.mxu0 0
        %2536 = vmatpush1.bf16.msra.mxu0 %v2513
        %2537 = vmatprep.subr.bf16.mxu0 0
        %2538 = vmatpush1.bf16.msra.mxu0 %v2514
        %2539 = vmatprep.subr.bf16.mxu0 0
        %2540 = vmatpush1.bf16.msra.mxu0 %v2515
        %2541 = vmatprep.subr.bf16.mxu0 0
        %2542 = vmatpush1.bf16.msra.mxu0 %v2516
        %2543 = vmatprep.subr.bf16.mxu0 0
        %2544 = vmatpush1.bf16.msra.mxu0 %v2517
        %2545 = vmatprep.subr.bf16.mxu0 0
        %2546 = vmatpush1.bf16.msra.mxu0 %v2518
        %2547 = vmatprep.subr.bf16.mxu0 0
        %2548 = vmatpush1.bf16.msra.mxu0 %v2519
        %2549 = vmatprep.subr.bf16.mxu0 0
        %2550 = vmatpush1.bf16.msra.mxu0 %v2533
        %2551 = vmatprep.subr.bf16.mxu0 0
        %2552 = vmatpush1.bf16.msra.mxu0 0
        %2553 = vmatprep.subr.bf16.mxu0 0
        %2554 = vmatpush1.bf16.msra.mxu0 0
        %2555 = vmatprep.subr.bf16.mxu0 0
        %2556 = vmatpush1.bf16.msra.mxu0 0
        %2557 = vmatprep.subr.bf16.mxu0 0
        %2558 = vmatpush1.bf16.msra.mxu0 0
        %2559 = vmatprep.subr.bf16.mxu0 0
        %2560 = vmatpush1.bf16.msra.mxu0 0
        %2561 = vmatprep.subr.bf16.mxu0 0
        %2562 = vmatpush1.bf16.msra.mxu0 0
        %2563 = vmatprep.subr.bf16.mxu0 0
        %2564 = vmatpush1.bf16.msra.mxu0 0
        %2565 = vmatprep.subr.bf16.mxu0 0
        %2566 = vmatpush1.bf16.msra.mxu0 0
        %2567 = vmatprep.mubr.bf16.mxu0 0
        %2568 = vmatmul.mubr.bf16.gmra.mrb[0].mxu0 %v2530
        %v2569 = vpop.f32.mrb[0].mxu0
        %v2570 = vadd.f32 %v403, %v2569
        %v2571 = vpop.f32.mrb[0].mxu0
        %v2572 = vpop.f32.mrb[0].mxu0
        %v2573 = vpop.f32.mrb[0].mxu0
        %2574 = vdwg.mxu0
        %v2575 = vmax.f32 %v2570, 0.0
        %v2576 = vpack.c.bf16 %v2575, %v2575
        %v2577 = vld [vmem:[%s9] sm:$0xf]
        %v2578 = vld [vmem:[%s9 + $0x4] sm:$0xf]
        %v2579 = vld [vmem:[%s9 + $0x8] sm:$0xf]
        %v2580 = vld [vmem:[%s9 + $0xc] sm:$0xf]
        %v2581 = vld [vmem:[%s9 + $0x10] sm:$0xf]
        %v2582 = vld [vmem:[%s9 + $0x14] sm:$0xf]
        %v2583 = vld [vmem:[%s9 + $0x18] sm:$0xf]
        %v2584 = vld [vmem:[%s9 + $0x1c] sm:$0xf]
        %v2585 = vld [vmem:[%s9 + $0x20] sm:$0xf]
        %v2586 = vld [vmem:[%s9 + $0x24] sm:$0xf]
        %v2587 = vld [vmem:[%s9 + $0x28] sm:$0x3]
        %v2599 = vunpack.c.l.b16 %v2577
        %v2600 = vunpack.c.l.b16 %v2578
        %v2601 = vunpack.c.l.b16 %v2579
        %v2602 = vunpack.c.l.b16 %v2580
        %v2603 = vunpack.c.l.b16 %v2581
        %v2604 = vunpack.c.l.b16 %v2582
        %v2605 = vunpack.c.l.b16 %v2583
        %v2606 = vunpack.c.l.b16 %v2584
        %v2607 = vunpack.c.l.b16 %v2585
        %v2608 = vunpack.c.l.b16 %v2586
        %v2609 = vunpack.c.l.b16 %v2587
        %v2610 = vpack.c.b16 %v2600, %v2599
        %v2611 = vpack.c.b16 %v2602, %v2601
        %v2612 = vpack.c.b16 %v2604, %v2603
        %v2613 = vpack.c.b16 %v2606, %v2605
        %v2614 = vpack.c.b16 %v2608, %v2607
        %v2615 = vpack.c.b16 %v2609, %v2609
        %vm2621 = vcmask 687104
        %v2623 = vsel %vm2621, %v2576, 0
        %vm2625 = vcmask 1041408
        %v2627 = vsel %vm2625, %v2615, 0
        %2629 = vmatprep.subr.bf16.mxu0 0
        %2630 = vmatpush1.bf16.msra.mxu0 %v2610
        %2631 = vmatprep.subr.bf16.mxu0 0
        %2632 = vmatpush1.bf16.msra.mxu0 %v2611
        %2633 = vmatprep.subr.bf16.mxu0 0
        %2634 = vmatpush1.bf16.msra.mxu0 %v2612
        %2635 = vmatprep.subr.bf16.mxu0 0
        %2636 = vmatpush1.bf16.msra.mxu0 %v2613
        %2637 = vmatprep.subr.bf16.mxu0 0
        %2638 = vmatpush1.bf16.msra.mxu0 %v2614
        %2639 = vmatprep.subr.bf16.mxu0 0
        %2640 = vmatpush1.bf16.msra.mxu0 %v2627
        %2641 = vmatprep.subr.bf16.mxu0 0
        %2642 = vmatpush1.bf16.msra.mxu0 0
        %2643 = vmatprep.subr.bf16.mxu0 0
        %2644 = vmatpush1.bf16.msra.mxu0 0
        %2645 = vmatprep.subr.bf16.mxu0 0
        %2646 = vmatpush1.bf16.msra.mxu0 0
        %2647 = vmatprep.subr.bf16.mxu0 0
        %2648 = vmatpush1.bf16.msra.mxu0 0
        %2649 = vmatprep.subr.bf16.mxu0 0
        %2650 = vmatpush1.bf16.msra.mxu0 0
        %2651 = vmatprep.subr.bf16.mxu0 0
        %2652 = vmatpush1.bf16.msra.mxu0 0
        %2653 = vmatprep.subr.bf16.mxu0 0
        %2654 = vmatpush1.bf16.msra.mxu0 0
        %2655 = vmatprep.subr.bf16.mxu0 0
        %2656 = vmatpush1.bf16.msra.mxu0 0
        %2657 = vmatprep.subr.bf16.mxu0 0
        %2658 = vmatpush1.bf16.msra.mxu0 0
        %2659 = vmatprep.subr.bf16.mxu0 0
        %2660 = vmatpush1.bf16.msra.mxu0 0
        %2661 = vmatprep.mubr.bf16.mxu0 0
        %2662 = vmatmul.mubr.bf16.gmra.mrb[0].mxu0 %v2623
        %v2663 = vpop.f32.mrb[0].mxu0
        %v2664 = vadd.f32 %v404, %v2663
        %v2665 = vpop.f32.mrb[0].mxu0
        %v2666 = vpop.f32.mrb[0].mxu0
        %v2667 = vpop.f32.mrb[0].mxu0
        %2668 = vdwg.mxu0
        %vm2669 = vcmask 73728
        %v2670 = vsel %vm2669, %v2664, -inf
        %2671 = vmax.xlane.f32.xlu0 %v2670
        %v2672 = vpop.xlane.xlu0 %2671
        %v2673 = vsub.f32 %v2664, %v2672
        %v2674 = vmul.f32 %v2673, 1.442695
        %v2675 = vpow.pop %v2674
        %v2676 = vsel %vm2669, %v2675, 0.0
        %2677 = vadd.xlane.f32.xlu0 %v2676
        %v2678 = vpop.xlane.xlu0 %2677
        %v2679 = vlog2.pop %v2678
        %v2680 = vmul.f32 %v2679, 0.6931472
        %v2681 = vsub.f32 %v2673, %v2680
        %2682 = vst.msk [vmem:[%s393] sm:$0x1] %vm2669, %v2681
        %s2683 = sand.u32 %s270, 1
        %s2684 = scalar_lea.sflag [#allocation4], %s2683
        %s2685 = sand.u32 %s270, 1
        %s2686 = scalar_lea.vmem [#allocation5], %s2685
        // Predicated region
        $region69: #{net_forward.1} parent=63 // pred_check
          %p2687 = pneg %p280
        $region70: #{net_forward.1} parent=63 // pred_check_branch
          %2689 = sbr.rel (%p2687) target = $region72
        $region71: #{net_forward.1} parent=63 // pred_region
          %s2691 = ssub.s32 16, 16
          %2692 = vsyncadd %s2684, %s2691
          %s2693 = smul.addr %s26, 16
          %s2694 = scalar_lea.hbm %s11, %s2693
          %s2696 = sshll.u32 %s2686, 4
          %s2697 = int_to_ptr.vmem [resolvable:$true] %s2696
          %2699 = dma.vmem_to_hbm [thread:$0]  %s2697, 16, %s2694, %s2684
        $region72: #{net_forward.1} parent=63 // pred_fallthru
          _
      $region64: #{net_forward.1} parent=5 // pred_fallthru
        _
      %p2700 = scmp.le.s32.totalorder 2, %s21
      // Predicated region
      $region73: #{net_forward.1} parent=5 // pred_check
        %p2701 = pneg %p2700
      $region74: #{net_forward.1} parent=5 // pred_check_branch
        %2703 = sbr.rel (%p2701) target = $region76
      $region75: #{net_forward.1} parent=5 // pred_region
        %s2704 = ssub.s32 %s21, 2
        // Predicated region
        $region77: #{net_forward.1} parent=75 // pred_check
          %p2705 = pneg %p286
        $region78: #{net_forward.1} parent=75 // pred_check_branch
          %2707 = sbr.rel (%p2705) target = $region80
        $region79: #{net_forward.1} parent=75 // pred_region
          %s2708 = sand.u32 %s271, 1
          %s2709 = scalar_lea.sflag [#allocation4], %s2708
          %s2710 = sand.u32 %s271, 1
          %s2711 = scalar_lea.vmem [#allocation5], %s2710
          %2712 = dma.done %s2709, 16
        $region80: #{net_forward.1} parent=75 // pred_fallthru
          _
      $region76: #{net_forward.1} parent=5 // pred_fallthru
        _
    $region6: #{net_forward.1} parent=1 // loop_footer
      %s25 = sadd.s32 1, %s21
    $region7: #{net_forward.1} parent=1 // loop_footer_branch
      %20 = sbr.rel target = $region3
    $region8: #{net_forward.1} parent=1 // loop_exit
      _
    %2713 = vsyncpa [#allocation3], 1
    %s2714 = scalar_lea.sflag [#allocation3], 1
    %2715 = vsyncpa %s2714, 1
    %2716 = vsyncpa [#allocation4], 1
    %s2717 = scalar_lea.sflag [#allocation4], 1
    %2718 = vsyncpa %s2717, 1

</llo_original>
